<compile_context>
chip_gen: v6e
topology: v6e:2x2x1
jax: 0.10.0
libtpu: 0.0.40
codegen_flags: <defaults>
</compile_context>

<pallas_src>
import jax
import jax.numpy as jnp
from jax.experimental import pallas as pl
from jax.experimental.pallas import tpu as pltpu

KSIZE = 3


# --------------------------------------------------------------------------- #
# In-kernel helpers
# --------------------------------------------------------------------------- #
def _mish_f32(v):
    # mish(v) = v * tanh(softplus(v)), softplus threshold = 20 as in PyTorch.
    # tanh(log1p(e^v)) == (t*t - 1) / (t*t + 1) with t = 1 + e^v
    #   -> one exp + one (approx, EUP) reciprocal instead of exp + log1p + tanh.
    e = jnp.exp(jnp.minimum(v, 20.0))
    t2 = (1.0 + e) * (1.0 + e)
    tanh_sp = (t2 - 1.0) * pl.reciprocal(t2 + 1.0, approx=True)
    tanh_sp = jnp.where(v > 20.0, 1.0, tanh_sp)
    return v * tanh_sp


def _width_taps(x):
    """x: (R, W, C) -> (R, W, 3C) with channel blocks [x[w-1], x[w], x[w+1]].

    Zero-padded at the width edges (the 3x3 conv's width padding).  One lane
    concat per conv instead of the old 9-tap concat from a (W+2)-wide buffer.
    """
    R, W, C = x.shape
    zcol = jnp.zeros((R, 1, C), x.dtype)
    x_m1 = jnp.concatenate([zcol, x[:, : W - 1, :]], axis=1)   # value at w == x[w-1]
    x_p1 = jnp.concatenate([x[:, 1:, :], zcol], axis=1)        # value at w == x[w+1]
    return jnp.concatenate([x_m1, x, x_p1], axis=-1)


def _conv3x3(cat3, w_ref, rows_out, W, C):
    """3x3 conv as 3 MXU matmuls (one per ky), K = 3C, f32 accumulation.

    cat3: (rows_out + 2, W, 3C) bf16 width-tap buffer; row i of cat3 is input
    row (first_output_row + i - 1).  w_ref: (3, 3C, Cout).
    Returns (rows_out * W, Cout) f32.
    """
    acc = None
    for ky in range(KSIZE):                      # 3 static iterations (unrolled)
        p = cat3[ky:ky + rows_out].reshape(rows_out * W, KSIZE * C)
        d = jnp.dot(p, w_ref[ky], preferred_element_type=jnp.float32)
        acc = d if acc is None else acc + d
    return acc


# --------------------------------------------------------------------------- #
# Fused ResidualBlock kernel
# --------------------------------------------------------------------------- #
def _residual_block_kernel(xc_ref, xt_ref, xb_ref,
                           w1_ref, b1_ref, w2_ref, b2_ref,
                           o_ref, xs_ref):
    # xc_ref: (1, ht, W, C)   input rows of this tile (also the residual)
    # xt_ref: (1, 1, 2, W, C) rows [r0-2, r0)        (zeros above the image)
    # xb_ref: (1, 1, 2, W, C) rows [r0+ht, r0+ht+2)  (zeros below the image)
    # w*_ref: (3, 3C, C) bf16 folded conv+BN weights (per-ky slabs)
    # b*_ref: (1, C) f32 folded BN bias
    # o_ref:  (1, ht, W, C) bf16
    # xs_ref: (ht+4, W, C) bf16 VMEM scratch (assembled row window)
    _, ht, W, C = xc_ref.shape
    h = pl.program_id(1)
    n_h = pl.num_programs(1)

    # ---- assemble rows [r0-2, r0+ht+2) straight into the scratch (no concat) --
    xc = xc_ref[0]                                            # (ht, W, C) input dtype
    xs_ref[0:2] = xt_ref[0, 0].astype(jnp.bfloat16)
    xs_ref[2:2 + ht] = xc.astype(jnp.bfloat16)
    xs_ref[2 + ht:ht + 4] = xb_ref[0, 0].astype(jnp.bfloat16)
    xs = xs_ref[...]                                          # (ht+4, W, C) bf16

    # ---- ConvBlock 1: rows [r0-1, r0+ht+1) so conv2 has its row halo ----------
    cat1 = _width_taps(xs)                                    # (ht+4, W, 3C) bf16
    y1 = _conv3x3(cat1, w1_ref, ht + 2, W, C) + b1_ref[...]   # ((ht+2)*W, C) f32
    a1 = _mish_f32(y1).reshape(ht + 2, W, C)

    # Rows that fall outside the image are conv2's *zero padding*, not
    # conv1-of-padded-x: zero them at the first / last row tile.
    ridx = jax.lax.broadcasted_iota(jnp.int32, (ht + 2, 1, 1), 0)
    pad_row = ((ridx == 0) & (h == 0)) | ((ridx == ht + 1) & (h == n_h - 1))
    a1 = jnp.where(pad_row, 0.0, a1).astype(jnp.bfloat16)

    # ---- ConvBlock 2 ----------------------------------------------------------
    cat2 = _width_taps(a1)                                    # (ht+2, W, 3C) bf16
    y2 = _conv3x3(cat2, w2_ref, ht, W, C) + b2_ref[...]       # (ht*W, C) f32
    a2 = _mish_f32(y2)

    # ---- residual add (un-cast input, f32 math) and bf16 store ---------------
    out = a2 + xc.reshape(ht * W, C).astype(jnp.float32)
    o_ref[...] = out.reshape(1, ht, W, C).astype(o_ref.dtype)


# --------------------------------------------------------------------------- #
# Parameter folding and wrapper
# --------------------------------------------------------------------------- #
def fold_conv_bn(w_oihw, gamma, beta, running_mean, running_var, eps=1e-5):
    """Fold eval-mode BN into the bias-free 3x3 conv.

    Returns (wk, b): wk is (3, 3*Cin, Cout) bf16 — per-ky slabs with row order
    (kx, cin) matching the kernel's width-tap layout; b is (1, Cout) f32.
    """
    scale = gamma / jnp.sqrt(running_var + eps)                    # (Cout,)
    w = w_oihw * scale[:, None, None, None]                        # (Cout, Cin, 3, 3)
    b = beta - running_mean * scale                                # (Cout,)
    cout, cin = w.shape[0], w.shape[1]
    wk = jnp.transpose(w, (2, 3, 1, 0)).reshape(KSIZE, KSIZE * cin, cout)
    return wk.astype(jnp.bfloat16), b.reshape(1, cout).astype(jnp.float32)


def _vmem_limit_bytes():
    # Generation-aware scoped-VMEM target: ~40 MiB on v7x (64 MiB physical per
    # core), ~100 MiB on v5e/v6e (128 MiB).  Falls back conservatively.
    cap = 64 << 20
    try:
        info = pltpu.get_tpu_info()
        cap = int(getattr(info, "vmem_capacity_bytes", cap))
    except Exception:
        pass
    return (40 << 20) if cap <= (64 << 20) else (100 << 20)


def _pick_row_tile(H, W, C, N, vmem_budget):
    """Largest divisor of H whose per-step working set fits the VMEM budget.

    ht is a leading (untiled) block dim, so it needs no sublane alignment.
    Prefers >= 2 row tiles when N == 1 so both v7x TensorCores get work.
    """
    weights = 2 * 2 * (KSIZE * KSIZE * C * C * 2 + 4 * C)   # dbl-buffered folded weights
    per_row = 80 * W * C                                     # conservative bf16/f32 temps
    max_rows = max(1, (vmem_budget - weights - (2 << 20)) // per_row)

    divisors = [d for d in range(1, H + 1) if H % d == 0]
    pool = [d for d in divisors if d <= max_rows] or [divisors[0]]
    if N == 1:
        multi = [d for d in pool if H // d >= 2]
        if multi:
            return max(multi)
    return max(pool)


def residual_block_nhwc(x, params, out_dtype=jnp.bfloat16):
    """Fused ResidualBlock on NHWC activations (the native layout)."""
    N, H, W, C = x.shape
    vmem_limit = _vmem_limit_bytes()
    ht = _pick_row_tile(H, W, C, N, vmem_limit)
    n_h = H // ht

    # Halo slabs: rows [r0-2, r0) and [r0+ht, r0+ht+2) per row tile (zeros at
    # the image border).  Cheap pad/reshape/slice that XLA fuses into the small
    # (N, n_h, 2, W, C) outputs — only 4/ht of x is duplicated in HBM, and ht
    # is now sized from VMEM instead of capped at 8.
    top = jnp.pad(x, ((0, 0), (2, 0), (0, 0), (0, 0)))[:, :H]
    top = top.reshape(N, n_h, ht, W, C)[:, :, :2]
    bot = jnp.pad(x, ((0, 0), (0, ht), (0, 0), (0, 0)))[:, ht:]
    bot = bot.reshape(N, n_h, ht, W, C)[:, :, :2]

    w1, b1 = params["conv1"]
    w2, b2 = params["conv2"]
    c3 = KSIZE * C

    out = pl.pallas_call(
        _residual_block_kernel,
        out_shape=jax.ShapeDtypeStruct((N, H, W, C), out_dtype),
        grid_spec=pltpu.PrefetchScalarGridSpec(
            num_scalar_prefetch=0,
            grid=(N, n_h),
            in_specs=[
                pl.BlockSpec((1, ht, W, C), lambda n, h: (n, h, 0, 0)),
                pl.BlockSpec((1, 1, 2, W, C), lambda n, h: (n, h, 0, 0, 0)),
                pl.BlockSpec((1, 1, 2, W, C), lambda n, h: (n, h, 0, 0, 0)),
                pl.BlockSpec((KSIZE, c3, C), lambda n, h: (0, 0, 0)),
                pl.BlockSpec((1, C), lambda n, h: (0, 0)),
                pl.BlockSpec((KSIZE, c3, C), lambda n, h: (0, 0, 0)),
                pl.BlockSpec((1, C), lambda n, h: (0, 0)),
                # NOTE: add pipeline_mode=pl.Buffered(3) on the activation specs
                # only if profiling shows exposed DMA once ht is large.
            ],
            out_specs=pl.BlockSpec((1, ht, W, C), lambda n, h: (n, h, 0, 0)),
            scratch_shapes=[pltpu.VMEM((ht + 4, W, C), jnp.bfloat16)],
        ),
        compiler_params=pltpu.CompilerParams(
            dimension_semantics=("parallel", "parallel"),
            vmem_limit_bytes=vmem_limit,
        ),
    )(x, top, bot, w1, b1, w2, b2)
    return out


def residual_block(x_nchw, params, out_dtype=jnp.bfloat16):
    """NCHW-in / NCHW-out wrapper matching the PyTorch module's layout.

    The two transposes exist only for drop-in PyTorch semantics; in a real
    network keep activations NHWC end-to-end and call residual_block_nhwc.
    """
    x = jnp.transpose(x_nchw, (0, 2, 3, 1))
    out = residual_block_nhwc(x, params, out_dtype)
    return jnp.transpose(out, (0, 3, 1, 2))


# --------------- reference (plain JAX, f32) for verification ---------------- #
def conv_block_ref(x_nhwc, w_oihw, gamma, beta, rm, rv, eps=1e-5):
    y = jax.lax.conv_general_dilated(
        x_nhwc, jnp.transpose(w_oihw, (2, 3, 1, 0)),
        window_strides=(1, 1), padding=((1, 1), (1, 1)),
        dimension_numbers=("NHWC", "HWIO", "NHWC"))
    y = (y - rm) / jnp.sqrt(rv + eps) * gamma + beta
    sp = jnp.where(y > 20.0, y, jnp.log1p(jnp.exp(jnp.minimum(y, 20.0))))
    return y * jnp.tanh(sp)


if __name__ == "__main__":
    key = jax.random.PRNGKey(0)
    N, C, H, W = 2, 4, 16, 16
    keys = jax.random.split(key, 11)

    x = jax.random.normal(keys[0], (N, C, H, W), jnp.float32)

    def init_convblock(ks):
        w = jax.random.normal(ks[0], (C, C, KSIZE, KSIZE), jnp.float32) * 0.1
        gamma = 1.0 + 0.1 * jax.random.normal(ks[1], (C,), jnp.float32)
        beta = 0.1 * jax.random.normal(ks[2], (C,), jnp.float32)
        rmean = 0.1 * jax.random.normal(ks[3], (C,), jnp.float32)
        rvar = jax.random.uniform(ks[4], (C,), jnp.float32, minval=0.5, maxval=1.5)
        return w, gamma, beta, rmean, rvar

    p1 = init_convblock(keys[1:6])
    p2 = init_convblock(keys[6:11])
    params = {"conv1": fold_conv_bn(*p1), "conv2": fold_conv_bn(*p2)}

    fwd = jax.jit(residual_block)
    out = jax.block_until_ready(fwd(x, params))

    # Verify against an all-f32 reference.  The kernel uses bf16 matmul
    # operands, a bf16 output, and an approx reciprocal in Mish, so the
    # tolerance is intentionally looser than a pure-f32 check.
    x_nhwc = jnp.transpose(x, (0, 2, 3, 1))
    r1 = conv_block_ref(x_nhwc, *p1)
    r2 = conv_block_ref(r1, *p2) + x_nhwc
    ref = jnp.transpose(r2, (0, 3, 1, 2))
    out_f32 = out.astype(jnp.float32)
    err = float(jnp.max(jnp.abs(out_f32 - ref)))
    assert jnp.allclose(out_f32, ref, atol=7.5e-2, rtol=5e-2), f"max abs err {err}"

    print("KERNEL_OK")
</pallas_src>

<mosaic_0001>
module attributes {stable_mosaic.version = 11 : i64} {
  func.func @_residual_block_kernel(%arg0: i32, %arg1: i32, %arg2: memref<1x16x16x4xf32, #tpu.memory_space<vmem>>, %arg3: memref<1x1x2x16x4xf32, #tpu.memory_space<vmem>>, %arg4: memref<1x1x2x16x4xf32, #tpu.memory_space<vmem>>, %arg5: memref<3x12x4xbf16, #tpu.memory_space<vmem>>, %arg6: memref<1x4xf32, #tpu.memory_space<vmem>>, %arg7: memref<3x12x4xbf16, #tpu.memory_space<vmem>>, %arg8: memref<1x4xf32, #tpu.memory_space<vmem>>, %arg9: memref<1x16x16x4xbf16, #tpu.memory_space<vmem>>, %arg10: memref<20x16x4xbf16, #tpu.memory_space<vmem>>) attributes {dimension_semantics = [#tpu.dimension_semantics<parallel>, #tpu.dimension_semantics<parallel>], iteration_bounds = array<i64: 2, 1>, scalar_prefetch = 0 : i64, scratch_operands = 1 : i64, tpu.core_type = #tpu.core_type<tc>, window_params = [{transform_indices = @transform_0, window_bounds = array<i64: 1, 16, 16, 4>}, {transform_indices = @transform_1, window_bounds = array<i64: 1, 1, 2, 16, 4>}, {transform_indices = @transform_2, window_bounds = array<i64: 1, 1, 2, 16, 4>}, {pipeline_mode = #tpu.pipeline_mode<synchronous>, transform_indices = @transform_3, window_bounds = array<i64: 3, 12, 4>}, {pipeline_mode = #tpu.pipeline_mode<synchronous>, transform_indices = @transform_4, window_bounds = array<i64: 1, 4>}, {pipeline_mode = #tpu.pipeline_mode<synchronous>, transform_indices = @transform_5, window_bounds = array<i64: 3, 12, 4>}, {pipeline_mode = #tpu.pipeline_mode<synchronous>, transform_indices = @transform_6, window_bounds = array<i64: 1, 4>}, {transform_indices = @transform_7, window_bounds = array<i64: 1, 16, 16, 4>}]} {
    %c0 = arith.constant 0 : index
    %c0_0 = arith.constant 0 : index
    %c0_1 = arith.constant 0 : index
    %c0_2 = arith.constant 0 : index
    %0 = vector.load %arg2[%c0, %c0_0, %c0_1, %c0_2] : memref<1x16x16x4xf32, #tpu.memory_space<vmem>>, vector<1x16x16x4xf32>
    %1 = vector.shape_cast %0 : vector<1x16x16x4xf32> to vector<16x16x4xf32>
    %c0_3 = arith.constant 0 : index
    %c0_4 = arith.constant 0 : index
    %c0_5 = arith.constant 0 : index
    %c0_6 = arith.constant 0 : index
    %c0_7 = arith.constant 0 : index
    %2 = vector.load %arg3[%c0_3, %c0_4, %c0_5, %c0_6, %c0_7] : memref<1x1x2x16x4xf32, #tpu.memory_space<vmem>>, vector<1x1x2x16x4xf32>
    %3 = vector.shape_cast %2 : vector<1x1x2x16x4xf32> to vector<2x16x4xf32>
    %4 = arith.truncf %3 : vector<2x16x4xf32> to vector<2x16x4xbf16>
    %c0_8 = arith.constant 0 : index
    %c0_9 = arith.constant 0 : index
    %c0_10 = arith.constant 0 : index
    %5 = vector.load %arg10[%c0_8, %c0_9, %c0_10] : memref<20x16x4xbf16, #tpu.memory_space<vmem>>, vector<2x16x4xbf16>
    tpu.vector_store %arg10[%c0_8, %c0_9, %c0_10], %4 {strides = array<i32>} : memref<20x16x4xbf16, #tpu.memory_space<vmem>>, vector<2x16x4xbf16>,
    %6 = arith.truncf %1 : vector<16x16x4xf32> to vector<16x16x4xbf16>
    %c2 = arith.constant 2 : index
    %c0_11 = arith.constant 0 : index
    %c0_12 = arith.constant 0 : index
    %7 = vector.load %arg10[%c2, %c0_11, %c0_12] : memref<20x16x4xbf16, #tpu.memory_space<vmem>>, vector<16x16x4xbf16>
    tpu.vector_store %arg10[%c2, %c0_11, %c0_12], %6 {strides = array<i32>} : memref<20x16x4xbf16, #tpu.memory_space<vmem>>, vector<16x16x4xbf16>,
    %c0_13 = arith.constant 0 : index
    %c0_14 = arith.constant 0 : index
    %c0_15 = arith.constant 0 : index
    %c0_16 = arith.constant 0 : index
    %c0_17 = arith.constant 0 : index
    %8 = vector.load %arg4[%c0_13, %c0_14, %c0_15, %c0_16, %c0_17] : memref<1x1x2x16x4xf32, #tpu.memory_space<vmem>>, vector<1x1x2x16x4xf32>
    %9 = vector.shape_cast %8 : vector<1x1x2x16x4xf32> to vector<2x16x4xf32>
    %10 = arith.truncf %9 : vector<2x16x4xf32> to vector<2x16x4xbf16>
    %c18 = arith.constant 18 : index
    %c0_18 = arith.constant 0 : index
    %c0_19 = arith.constant 0 : index
    %11 = vector.load %arg10[%c18, %c0_18, %c0_19] : memref<20x16x4xbf16, #tpu.memory_space<vmem>>, vector<2x16x4xbf16>
    tpu.vector_store %arg10[%c18, %c0_18, %c0_19], %10 {strides = array<i32>} : memref<20x16x4xbf16, #tpu.memory_space<vmem>>, vector<2x16x4xbf16>,
    %c0_20 = arith.constant 0 : index
    %c0_21 = arith.constant 0 : index
    %c0_22 = arith.constant 0 : index
    %12 = vector.load %arg10[%c0_20, %c0_21, %c0_22] : memref<20x16x4xbf16, #tpu.memory_space<vmem>>, vector<20x16x4xbf16>
    %cst = arith.constant 0.000000e+00 : bf16
    %13 = vector.broadcast %cst : bf16 to vector<20x1x4xbf16>
    %14 = vector.extract_strided_slice %12 {offsets = [0, 0, 0], sizes = [20, 15, 4], strides = [1, 1, 1]} : vector<20x16x4xbf16> to vector<20x15x4xbf16>
    %15 = tpu.concatenate %13, %14 in 1 : vector<20x1x4xbf16>, vector<20x15x4xbf16> -> vector<20x16x4xbf16>
    %16 = vector.extract_strided_slice %12 {offsets = [0, 1, 0], sizes = [20, 15, 4], strides = [1, 1, 1]} : vector<20x16x4xbf16> to vector<20x15x4xbf16>
    %17 = tpu.concatenate %16, %13 in 1 : vector<20x15x4xbf16>, vector<20x1x4xbf16> -> vector<20x16x4xbf16>
    %18 = tpu.concatenate %15, %12, %17 in 2 : vector<20x16x4xbf16>, vector<20x16x4xbf16>, vector<20x16x4xbf16> -> vector<20x16x12xbf16>
    %19 = vector.extract_strided_slice %18 {offsets = [0, 0, 0], sizes = [18, 16, 12], strides = [1, 1, 1]} : vector<20x16x12xbf16> to vector<18x16x12xbf16>
    %20 = vector.shape_cast %19 : vector<18x16x12xbf16> to vector<288x12xbf16>
    %c0_23 = arith.constant 0 : index
    %c0_24 = arith.constant 0 : index
    %c0_25 = arith.constant 0 : index
    %21 = vector.load %arg5[%c0_23, %c0_24, %c0_25] : memref<3x12x4xbf16, #tpu.memory_space<vmem>>, vector<1x12x4xbf16>
    %22 = vector.shape_cast %21 : vector<1x12x4xbf16> to vector<12x4xbf16>
    %cst_26 = arith.constant dense<0.000000e+00> : vector<288x4xf32>
    %23 = tpu.matmul %20, %22, %cst_26 {dimension_numbers = #tpu.dot_dimension_numbers<[1], [0], [0], [1], [0, 0, 1, 1], [], []>} : vector<288x12xbf16>, vector<12x4xbf16>, vector<288x4xf32> -> vector<288x4xf32>
    %24 = vector.extract_strided_slice %18 {offsets = [1, 0, 0], sizes = [18, 16, 12], strides = [1, 1, 1]} : vector<20x16x12xbf16> to vector<18x16x12xbf16>
    %25 = vector.shape_cast %24 : vector<18x16x12xbf16> to vector<288x12xbf16>
    %c1 = arith.constant 1 : index
    %c0_27 = arith.constant 0 : index
    %c0_28 = arith.constant 0 : index
    %26 = vector.load %arg5[%c1, %c0_27, %c0_28] : memref<3x12x4xbf16, #tpu.memory_space<vmem>>, vector<1x12x4xbf16>
    %27 = vector.shape_cast %26 : vector<1x12x4xbf16> to vector<12x4xbf16>
    %cst_29 = arith.constant dense<0.000000e+00> : vector<288x4xf32>
    %28 = tpu.matmul %25, %27, %cst_29 {dimension_numbers = #tpu.dot_dimension_numbers<[1], [0], [0], [1], [0, 0, 1, 1], [], []>} : vector<288x12xbf16>, vector<12x4xbf16>, vector<288x4xf32> -> vector<288x4xf32>
    %29 = arith.addf %23, %28 : vector<288x4xf32>
    %30 = vector.extract_strided_slice %18 {offsets = [2, 0, 0], sizes = [18, 16, 12], strides = [1, 1, 1]} : vector<20x16x12xbf16> to vector<18x16x12xbf16>
    %31 = vector.shape_cast %30 : vector<18x16x12xbf16> to vector<288x12xbf16>
    %c2_30 = arith.constant 2 : index
    %c0_31 = arith.constant 0 : index
    %c0_32 = arith.constant 0 : index
    %32 = vector.load %arg5[%c2_30, %c0_31, %c0_32] : memref<3x12x4xbf16, #tpu.memory_space<vmem>>, vector<1x12x4xbf16>
    %33 = vector.shape_cast %32 : vector<1x12x4xbf16> to vector<12x4xbf16>
    %cst_33 = arith.constant dense<0.000000e+00> : vector<288x4xf32>
    %34 = tpu.matmul %31, %33, %cst_33 {dimension_numbers = #tpu.dot_dimension_numbers<[1], [0], [0], [1], [0, 0, 1, 1], [], []>} : vector<288x12xbf16>, vector<12x4xbf16>, vector<288x4xf32> -> vector<288x4xf32>
    %35 = arith.addf %29, %34 : vector<288x4xf32>
    %c0_34 = arith.constant 0 : index
    %c0_35 = arith.constant 0 : index
    %36 = vector.load %arg6[%c0_34, %c0_35] : memref<1x4xf32, #tpu.memory_space<vmem>>, vector<1x4xf32>
    %37 = vector.broadcast %36 : vector<1x4xf32> to vector<288x4xf32>
    %38 = arith.addf %35, %37 : vector<288x4xf32>
    %cst_36 = arith.constant 2.000000e+01 : f32
    %39 = vector.broadcast %cst_36 : f32 to vector<288x4xf32>
    %40 = arith.minimumf %38, %39 : vector<288x4xf32>
    %41 = math.exp %40 : vector<288x4xf32>
    %cst_37 = arith.constant 1.000000e+00 : f32
    %42 = vector.broadcast %cst_37 : f32 to vector<288x4xf32>
    %43 = arith.addf %42, %41 : vector<288x4xf32>
    %cst_38 = arith.constant 1.000000e+00 : f32
    %44 = vector.broadcast %cst_38 : f32 to vector<288x4xf32>
    %45 = arith.addf %44, %41 : vector<288x4xf32>
    %46 = arith.mulf %43, %45 : vector<288x4xf32>
    %cst_39 = arith.constant 1.000000e+00 : f32
    %47 = vector.broadcast %cst_39 : f32 to vector<288x4xf32>
    %48 = arith.subf %46, %47 : vector<288x4xf32>
    %cst_40 = arith.constant 1.000000e+00 : f32
    %49 = vector.broadcast %cst_40 : f32 to vector<288x4xf32>
    %50 = arith.addf %46, %49 : vector<288x4xf32>
    %51 = tpu.reciprocal %50 {approx = true} : vector<288x4xf32> -> vector<288x4xf32>
    %52 = arith.mulf %48, %51 : vector<288x4xf32>
    %cst_41 = arith.constant 2.000000e+01 : f32
    %53 = vector.broadcast %cst_41 : f32 to vector<288x4xf32>
    %54 = arith.cmpf ogt, %38, %53 : vector<288x4xf32>
    %cst_42 = arith.constant 1.000000e+00 : f32
    %55 = vector.broadcast %cst_42 : f32 to vector<288x4xf32>
    %56 = arith.select %54, %55, %52 : vector<288x4xi1>, vector<288x4xf32>
    %57 = arith.mulf %38, %56 : vector<288x4xf32>
    %58 = vector.shape_cast %57 : vector<288x4xf32> to vector<18x16x4xf32>
    %59 = tpu.iota {dimensions = array<i32: 0>} : vector<18x1x1xi32>
    %c0_i32 = arith.constant 0 : i32
    %60 = vector.broadcast %c0_i32 : i32 to vector<18x1x1xi32>
    %61 = arith.cmpi eq, %59, %60 : vector<18x1x1xi32>
    %c0_i32_43 = arith.constant 0 : i32
    %62 = arith.cmpi eq, %arg1, %c0_i32_43 : i32
    %63 = vector.broadcast %62 : i1 to vector<18x1x1xi1>
    %64 = arith.andi %61, %63 : vector<18x1x1xi1>
    %c17_i32 = arith.constant 17 : i32
    %65 = vector.broadcast %c17_i32 : i32 to vector<18x1x1xi32>
    %66 = arith.cmpi eq, %59, %65 : vector<18x1x1xi32>
    %c0_i32_44 = arith.constant 0 : i32
    %67 = arith.cmpi eq, %arg1, %c0_i32_44 : i32
    %68 = vector.broadcast %67 : i1 to vector<18x1x1xi1>
    %69 = arith.andi %66, %68 : vector<18x1x1xi1>
    %70 = arith.ori %64, %69 : vector<18x1x1xi1>
    %cst_45 = arith.constant 0.000000e+00 : f32
    %71 = vector.shape_cast %70 : vector<18x1x1xi1> to vector<18x1x1xi1>
    %72 = vector.broadcast %71 : vector<18x1x1xi1> to vector<18x16x4xi1>
    %73 = vector.broadcast %cst_45 : f32 to vector<18x16x4xf32>
    %74 = arith.select %72, %73, %58 : vector<18x16x4xi1>, vector<18x16x4xf32>
    %75 = arith.truncf %74 : vector<18x16x4xf32> to vector<18x16x4xbf16>
    %cst_46 = arith.constant 0.000000e+00 : bf16
    %76 = vector.broadcast %cst_46 : bf16 to vector<18x1x4xbf16>
    %77 = vector.extract_strided_slice %75 {offsets = [0, 0, 0], sizes = [18, 15, 4], strides = [1, 1, 1]} : vector<18x16x4xbf16> to vector<18x15x4xbf16>
    %78 = tpu.concatenate %76, %77 in 1 : vector<18x1x4xbf16>, vector<18x15x4xbf16> -> vector<18x16x4xbf16>
    %79 = vector.extract_strided_slice %75 {offsets = [0, 1, 0], sizes = [18, 15, 4], strides = [1, 1, 1]} : vector<18x16x4xbf16> to vector<18x15x4xbf16>
    %80 = tpu.concatenate %79, %76 in 1 : vector<18x15x4xbf16>, vector<18x1x4xbf16> -> vector<18x16x4xbf16>
    %81 = tpu.concatenate %78, %75, %80 in 2 : vector<18x16x4xbf16>, vector<18x16x4xbf16>, vector<18x16x4xbf16> -> vector<18x16x12xbf16>
    %82 = vector.extract_strided_slice %81 {offsets = [0, 0, 0], sizes = [16, 16, 12], strides = [1, 1, 1]} : vector<18x16x12xbf16> to vector<16x16x12xbf16>
    %83 = vector.shape_cast %82 : vector<16x16x12xbf16> to vector<256x12xbf16>
    %c0_47 = arith.constant 0 : index
    %c0_48 = arith.constant 0 : index
    %c0_49 = arith.constant 0 : index
    %84 = vector.load %arg7[%c0_47, %c0_48, %c0_49] : memref<3x12x4xbf16, #tpu.memory_space<vmem>>, vector<1x12x4xbf16>
    %85 = vector.shape_cast %84 : vector<1x12x4xbf16> to vector<12x4xbf16>
    %cst_50 = arith.constant dense<0.000000e+00> : vector<256x4xf32>
    %86 = tpu.matmul %83, %85, %cst_50 {dimension_numbers = #tpu.dot_dimension_numbers<[1], [0], [0], [1], [0, 0, 1, 1], [], []>} : vector<256x12xbf16>, vector<12x4xbf16>, vector<256x4xf32> -> vector<256x4xf32>
    %87 = vector.extract_strided_slice %81 {offsets = [1, 0, 0], sizes = [16, 16, 12], strides = [1, 1, 1]} : vector<18x16x12xbf16> to vector<16x16x12xbf16>
    %88 = vector.shape_cast %87 : vector<16x16x12xbf16> to vector<256x12xbf16>
    %c1_51 = arith.constant 1 : index
    %c0_52 = arith.constant 0 : index
    %c0_53 = arith.constant 0 : index
    %89 = vector.load %arg7[%c1_51, %c0_52, %c0_53] : memref<3x12x4xbf16, #tpu.memory_space<vmem>>, vector<1x12x4xbf16>
    %90 = vector.shape_cast %89 : vector<1x12x4xbf16> to vector<12x4xbf16>
    %cst_54 = arith.constant dense<0.000000e+00> : vector<256x4xf32>
    %91 = tpu.matmul %88, %90, %cst_54 {dimension_numbers = #tpu.dot_dimension_numbers<[1], [0], [0], [1], [0, 0, 1, 1], [], []>} : vector<256x12xbf16>, vector<12x4xbf16>, vector<256x4xf32> -> vector<256x4xf32>
    %92 = arith.addf %86, %91 : vector<256x4xf32>
    %93 = vector.extract_strided_slice %81 {offsets = [2, 0, 0], sizes = [16, 16, 12], strides = [1, 1, 1]} : vector<18x16x12xbf16> to vector<16x16x12xbf16>
    %94 = vector.shape_cast %93 : vector<16x16x12xbf16> to vector<256x12xbf16>
    %c2_55 = arith.constant 2 : index
    %c0_56 = arith.constant 0 : index
    %c0_57 = arith.constant 0 : index
    %95 = vector.load %arg7[%c2_55, %c0_56, %c0_57] : memref<3x12x4xbf16, #tpu.memory_space<vmem>>, vector<1x12x4xbf16>
    %96 = vector.shape_cast %95 : vector<1x12x4xbf16> to vector<12x4xbf16>
    %cst_58 = arith.constant dense<0.000000e+00> : vector<256x4xf32>
    %97 = tpu.matmul %94, %96, %cst_58 {dimension_numbers = #tpu.dot_dimension_numbers<[1], [0], [0], [1], [0, 0, 1, 1], [], []>} : vector<256x12xbf16>, vector<12x4xbf16>, vector<256x4xf32> -> vector<256x4xf32>
    %98 = arith.addf %92, %97 : vector<256x4xf32>
    %c0_59 = arith.constant 0 : index
    %c0_60 = arith.constant 0 : index
    %99 = vector.load %arg8[%c0_59, %c0_60] : memref<1x4xf32, #tpu.memory_space<vmem>>, vector<1x4xf32>
    %100 = vector.broadcast %99 : vector<1x4xf32> to vector<256x4xf32>
    %101 = arith.addf %98, %100 : vector<256x4xf32>
    %cst_61 = arith.constant 2.000000e+01 : f32
    %102 = vector.broadcast %cst_61 : f32 to vector<256x4xf32>
    %103 = arith.minimumf %101, %102 : vector<256x4xf32>
    %104 = math.exp %103 : vector<256x4xf32>
    %cst_62 = arith.constant 1.000000e+00 : f32
    %105 = vector.broadcast %cst_62 : f32 to vector<256x4xf32>
    %106 = arith.addf %105, %104 : vector<256x4xf32>
    %cst_63 = arith.constant 1.000000e+00 : f32
    %107 = vector.broadcast %cst_63 : f32 to vector<256x4xf32>
    %108 = arith.addf %107, %104 : vector<256x4xf32>
    %109 = arith.mulf %106, %108 : vector<256x4xf32>
    %cst_64 = arith.constant 1.000000e+00 : f32
    %110 = vector.broadcast %cst_64 : f32 to vector<256x4xf32>
    %111 = arith.subf %109, %110 : vector<256x4xf32>
    %cst_65 = arith.constant 1.000000e+00 : f32
    %112 = vector.broadcast %cst_65 : f32 to vector<256x4xf32>
    %113 = arith.addf %109, %112 : vector<256x4xf32>
    %114 = tpu.reciprocal %113 {approx = true} : vector<256x4xf32> -> vector<256x4xf32>
    %115 = arith.mulf %111, %114 : vector<256x4xf32>
    %cst_66 = arith.constant 2.000000e+01 : f32
    %116 = vector.broadcast %cst_66 : f32 to vector<256x4xf32>
    %117 = arith.cmpf ogt, %101, %116 : vector<256x4xf32>
    %cst_67 = arith.constant 1.000000e+00 : f32
    %118 = vector.broadcast %cst_67 : f32 to vector<256x4xf32>
    %119 = arith.select %117, %118, %115 : vector<256x4xi1>, vector<256x4xf32>
    %120 = arith.mulf %101, %119 : vector<256x4xf32>
    %121 = vector.shape_cast %1 : vector<16x16x4xf32> to vector<256x4xf32>
    %122 = arith.addf %120, %121 : vector<256x4xf32>
    %123 = vector.shape_cast %122 : vector<256x4xf32> to vector<1x16x16x4xf32>
    %124 = arith.truncf %123 : vector<1x16x16x4xf32> to vector<1x16x16x4xbf16>
    %c0_68 = arith.constant 0 : index
    %c0_69 = arith.constant 0 : index
    %c0_70 = arith.constant 0 : index
    %c0_71 = arith.constant 0 : index
    %125 = vector.load %arg9[%c0_68, %c0_69, %c0_70, %c0_71] : memref<1x16x16x4xbf16, #tpu.memory_space<vmem>>, vector<1x16x16x4xbf16>
    tpu.vector_store %arg9[%c0_68, %c0_69, %c0_70, %c0_71], %124 {strides = array<i32>} : memref<1x16x16x4xbf16, #tpu.memory_space<vmem>>, vector<1x16x16x4xbf16>,
    return
  }
  func.func @transform_0(%arg0: i32, %arg1: i32) -> (i32, i32, i32, i32) {
    %c0_i32 = arith.constant 0 : i32
    %c0_i32_0 = arith.constant 0 : i32
    %c0_i32_1 = arith.constant 0 : i32
    return %arg0, %arg1, %c0_i32, %c0_i32_0 : i32, i32, i32, i32
  }
  func.func @transform_1(%arg0: i32, %arg1: i32) -> (i32, i32, i32, i32, i32) {
    %c0_i32 = arith.constant 0 : i32
    %c0_i32_0 = arith.constant 0 : i32
    %c0_i32_1 = arith.constant 0 : i32
    %c0_i32_2 = arith.constant 0 : i32
    return %arg0, %arg1, %c0_i32, %c0_i32_0, %c0_i32_1 : i32, i32, i32, i32, i32
  }
  func.func @transform_2(%arg0: i32, %arg1: i32) -> (i32, i32, i32, i32, i32) {
    %c0_i32 = arith.constant 0 : i32
    %c0_i32_0 = arith.constant 0 : i32
    %c0_i32_1 = arith.constant 0 : i32
    %c0_i32_2 = arith.constant 0 : i32
    return %arg0, %arg1, %c0_i32, %c0_i32_0, %c0_i32_1 : i32, i32, i32, i32, i32
  }
  func.func @transform_3(%arg0: i32, %arg1: i32) -> (i32, i32, i32) {
    %c0_i32 = arith.constant 0 : i32
    %c0_i32_0 = arith.constant 0 : i32
    %c0_i32_1 = arith.constant 0 : i32
    %c0_i32_2 = arith.constant 0 : i32
    return %c0_i32, %c0_i32_0, %c0_i32_1 : i32, i32, i32
  }
  func.func @transform_4(%arg0: i32, %arg1: i32) -> (i32, i32) {
    %c0_i32 = arith.constant 0 : i32
    %c0_i32_0 = arith.constant 0 : i32
    %c0_i32_1 = arith.constant 0 : i32
    return %c0_i32, %c0_i32_0 : i32, i32
  }
  func.func @transform_5(%arg0: i32, %arg1: i32) -> (i32, i32, i32) {
    %c0_i32 = arith.constant 0 : i32
    %c0_i32_0 = arith.constant 0 : i32
    %c0_i32_1 = arith.constant 0 : i32
    %c0_i32_2 = arith.constant 0 : i32
    return %c0_i32, %c0_i32_0, %c0_i32_1 : i32, i32, i32
  }
  func.func @transform_6(%arg0: i32, %arg1: i32) -> (i32, i32) {
    %c0_i32 = arith.constant 0 : i32
    %c0_i32_0 = arith.constant 0 : i32
    %c0_i32_1 = arith.constant 0 : i32
    return %c0_i32, %c0_i32_0 : i32, i32
  }
  func.func @transform_7(%arg0: i32, %arg1: i32) -> (i32, i32, i32, i32) {
    %c0_i32 = arith.constant 0 : i32
    %c0_i32_0 = arith.constant 0 : i32
    %c0_i32_1 = arith.constant 0 : i32
    return %arg0, %arg1, %c0_i32, %c0_i32_0 : i32, i32, i32, i32
  }
}

</mosaic_0001>

<llo_original>
// kernel: residual_block.1
$region0: #{residual_block.1}
  #allocation0 [shape = 'u32[]', space=smem, size = 0x4, offset = 0x4, fixed_abs, tag = 'smem constant byte address 0x4 - core index']
  #allocation1 [shape = 'u32[144,128]{1,0:T(1,128)}', space=vmem, size = 0x12000, scoped, tag = 'internal scratch']
  #allocation2 [shape = 'bf16[20,16,4]{2,1,0:T(8,128)(2,1)}', space=vmem, size = 0x14000, scoped, tag = 'scratch operand']
  %s0 = inlined_call_operand.vmem [shape: f32[2,16,16,4], index: 0, kind: input, shape index: {}]
  %s1 = inlined_call_operand.vmem [shape: f32[2,1,2,16,4], index: 1, kind: input, shape index: {}]
  %s2 = inlined_call_operand.vmem [shape: f32[2,1,2,16,4], index: 2, kind: input, shape index: {}]
  %s3 = inlined_call_operand.vmem [shape: bf16[3,12,4], index: 3, kind: input, shape index: {}]
  %s4 = inlined_call_operand.vmem [shape: f32[1,4], index: 4, kind: input, shape index: {}]
  %s5 = inlined_call_operand.vmem [shape: bf16[3,12,4], index: 5, kind: input, shape index: {}]
  %s6 = inlined_call_operand.vmem [shape: f32[1,4], index: 6, kind: input, shape index: {}]
  %s7 = inlined_call_operand.vmem [shape: bf16[2,16,16,4], index: 7, kind: output, shape index: {}]
  %s8 = sld [smem:[#allocation0]]
  $region61: #{residual_block.1} parent=0
    _
  %s10 = ssub.s32 1, %s8
  %s11 = scalar_select 0, %s10, %s8
  loop: start=0, step=1, limit=4
  $region2: #{residual_block.1} parent=0 // loop_pre_header
    _
  $region3: #{residual_block.1} parent=0 // loop_header
    %s13 = sphi 0, %s17
    %p14 = scmp.ge.s32.totalorder %s13, 4
    %s20 = sphi 0, %s32
    %s21 = sphi 0, %s28
    %s22 = sphi 0, %s20
    %s23 = sphi 0, %s21
    %s24 = sphi 0, %s22
    %s25 = sphi 0, %s23
    %s37 = sphi 0, %s39
    %s40 = sphi 0, %s37
    %s41 = sphi 0, %s40
    %s57 = sphi 0, %s41
    %s65 = sphi 0, %s67
    %s68 = sphi 0, %s65
    %s69 = sphi 0, %s68
    %s85 = sphi 0, %s69
    %s93 = sphi 0, %s95
    %s96 = sphi 0, %s93
    %s97 = sphi 0, %s96
    %s113 = sphi 0, %s97
    %s117 = sphi 0, %s117
    %s119 = sphi 0, %s117
    %s120 = sphi 0, %s119
    %s134 = sphi 0, %s120
    %s138 = sphi 0, %s138
    %s140 = sphi 0, %s138
    %s141 = sphi 0, %s140
    %s155 = sphi 0, %s141
    %s159 = sphi 0, %s159
    %s161 = sphi 0, %s159
    %s162 = sphi 0, %s161
    %s176 = sphi 0, %s162
    %s180 = sphi 0, %s180
    %s182 = sphi 0, %s180
    %s183 = sphi 0, %s182
    %s197 = sphi 0, %s183
    %s205 = sphi 0, %s207
    %s208 = sphi 0, %s205
    %s209 = sphi 0, %s208
    %s225 = sphi 0, %s209
  $region4: #{residual_block.1} parent=0 // loop_header_branch
    %16 = sbr.rel (%p14) target = $region8
  $region5: #{residual_block.1} parent=0 // loop_body
    %s18 = ssub.s32 %s13, 1
    %s19 = ssub.s32 %s13, 2
    %s26 = sadd.s32 1, %s21
    %p27 = scmp.ge.s32.totalorder %s26, 1
    %s28 = scalar_select %p27, 0, %s26
    %s29 = sadd.s32 1, %s20
    %s30 = scalar_select %p27, %s29, %s20
    %p31 = scmp.ge.s32.totalorder %s30, 2
    %s32 = scalar_select %p31, 0, %s30
    %s33 = ssub.s32 %s20, %s32
    %s34 = ssub.s32 %s21, %s28
    %s35 = sor.u32 %s33, %s34
    %p36 = scmp.eq.s32.totalorder %s35, 0
    %s38 = sadd.s32 %s37, 1
    %s39 = scalar_select %p36, %s37, %s38
    %p42 = pneg %p36
    %p43 = scmp.eq.s32.totalorder %s13, 1
    %p44 = por %p42, %p43
    %p45 = scmp.ne.s32.totalorder %s37, %s40
    %p46 = scmp.eq.s32.totalorder %s13, 0
    %p47 = por %p45, %p46
    %p48 = scmp.ne.s32.totalorder %s37, %s40
    %p49 = scmp.eq.s32.totalorder %s18, 1
    %p50 = por %p48, %p49
    %p51 = scmp.ne.s32.totalorder %s40, %s41
    %p52 = scmp.eq.s32.totalorder %s18, 0
    %p53 = por %p51, %p52
    %p54 = scmp.ne.s32.totalorder %s40, %s41
    %p55 = scmp.eq.s32.totalorder %s19, 1
    %p56 = por %p54, %p55
    %p58 = scmp.ne.s32.totalorder %s41, %s57
    %p59 = scmp.eq.s32.totalorder %s19, 0
    %p60 = por %p58, %p59
    %s61 = ssub.s32 %s20, %s32
    %s62 = ssub.s32 %s21, %s28
    %s63 = sor.u32 %s61, %s62
    %p64 = scmp.eq.s32.totalorder %s63, 0
    %s66 = sadd.s32 %s65, 1
    %s67 = scalar_select %p64, %s65, %s66
    %p70 = pneg %p64
    %p71 = scmp.eq.s32.totalorder %s13, 1
    %p72 = por %p70, %p71
    %p73 = scmp.ne.s32.totalorder %s65, %s68
    %p74 = scmp.eq.s32.totalorder %s13, 0
    %p75 = por %p73, %p74
    %p76 = scmp.ne.s32.totalorder %s65, %s68
    %p77 = scmp.eq.s32.totalorder %s18, 1
    %p78 = por %p76, %p77
    %p79 = scmp.ne.s32.totalorder %s68, %s69
    %p80 = scmp.eq.s32.totalorder %s18, 0
    %p81 = por %p79, %p80
    %p82 = scmp.ne.s32.totalorder %s68, %s69
    %p83 = scmp.eq.s32.totalorder %s19, 1
    %p84 = por %p82, %p83
    %p86 = scmp.ne.s32.totalorder %s69, %s85
    %p87 = scmp.eq.s32.totalorder %s19, 0
    %p88 = por %p86, %p87
    %s89 = ssub.s32 %s20, %s32
    %s90 = ssub.s32 %s21, %s28
    %s91 = sor.u32 %s89, %s90
    %p92 = scmp.eq.s32.totalorder %s91, 0
    %s94 = sadd.s32 %s93, 1
    %s95 = scalar_select %p92, %s93, %s94
    %p98 = pneg %p92
    %p99 = scmp.eq.s32.totalorder %s13, 1
    %p100 = por %p98, %p99
    %p101 = scmp.ne.s32.totalorder %s93, %s96
    %p102 = scmp.eq.s32.totalorder %s13, 0
    %p103 = por %p101, %p102
    %p104 = scmp.ne.s32.totalorder %s93, %s96
    %p105 = scmp.eq.s32.totalorder %s18, 1
    %p106 = por %p104, %p105
    %p107 = scmp.ne.s32.totalorder %s96, %s97
    %p108 = scmp.eq.s32.totalorder %s18, 0
    %p109 = por %p107, %p108
    %p110 = scmp.ne.s32.totalorder %s96, %s97
    %p111 = scmp.eq.s32.totalorder %s19, 1
    %p112 = por %p110, %p111
    %p114 = scmp.ne.s32.totalorder %s97, %s113
    %p115 = scmp.eq.s32.totalorder %s19, 0
    %p116 = por %p114, %p115
    %s118 = sadd.s32 %s117, 1
    %p121 = scmp.eq.s32.totalorder %s13, 1
    %p122 = scmp.ne.s32.totalorder %s117, %s119
    %p123 = scmp.eq.s32.totalorder %s13, 0
    %p124 = por %p122, %p123
    %p125 = scmp.ne.s32.totalorder %s117, %s119
    %p126 = scmp.eq.s32.totalorder %s18, 1
    %p127 = por %p125, %p126
    %p128 = scmp.ne.s32.totalorder %s119, %s120
    %p129 = scmp.eq.s32.totalorder %s18, 0
    %p130 = por %p128, %p129
    %p131 = scmp.ne.s32.totalorder %s119, %s120
    %p132 = scmp.eq.s32.totalorder %s19, 1
    %p133 = por %p131, %p132
    %p135 = scmp.ne.s32.totalorder %s120, %s134
    %p136 = scmp.eq.s32.totalorder %s19, 0
    %p137 = por %p135, %p136
    %s139 = sadd.s32 %s138, 1
    %p142 = scmp.eq.s32.totalorder %s13, 1
    %p143 = scmp.ne.s32.totalorder %s138, %s140
    %p144 = scmp.eq.s32.totalorder %s13, 0
    %p145 = por %p143, %p144
    %p146 = scmp.ne.s32.totalorder %s138, %s140
    %p147 = scmp.eq.s32.totalorder %s18, 1
    %p148 = por %p146, %p147
    %p149 = scmp.ne.s32.totalorder %s140, %s141
    %p150 = scmp.eq.s32.totalorder %s18, 0
    %p151 = por %p149, %p150
    %p152 = scmp.ne.s32.totalorder %s140, %s141
    %p153 = scmp.eq.s32.totalorder %s19, 1
    %p154 = por %p152, %p153
    %p156 = scmp.ne.s32.totalorder %s141, %s155
    %p157 = scmp.eq.s32.totalorder %s19, 0
    %p158 = por %p156, %p157
    %s160 = sadd.s32 %s159, 1
    %p163 = scmp.eq.s32.totalorder %s13, 1
    %p164 = scmp.ne.s32.totalorder %s159, %s161
    %p165 = scmp.eq.s32.totalorder %s13, 0
    %p166 = por %p164, %p165
    %p167 = scmp.ne.s32.totalorder %s159, %s161
    %p168 = scmp.eq.s32.totalorder %s18, 1
    %p169 = por %p167, %p168
    %p170 = scmp.ne.s32.totalorder %s161, %s162
    %p171 = scmp.eq.s32.totalorder %s18, 0
    %p172 = por %p170, %p171
    %p173 = scmp.ne.s32.totalorder %s161, %s162
    %p174 = scmp.eq.s32.totalorder %s19, 1
    %p175 = por %p173, %p174
    %p177 = scmp.ne.s32.totalorder %s162, %s176
    %p178 = scmp.eq.s32.totalorder %s19, 0
    %p179 = por %p177, %p178
    %s181 = sadd.s32 %s180, 1
    %p184 = scmp.eq.s32.totalorder %s13, 1
    %p185 = scmp.ne.s32.totalorder %s180, %s182
    %p186 = scmp.eq.s32.totalorder %s13, 0
    %p187 = por %p185, %p186
    %p188 = scmp.ne.s32.totalorder %s180, %s182
    %p189 = scmp.eq.s32.totalorder %s18, 1
    %p190 = por %p188, %p189
    %p191 = scmp.ne.s32.totalorder %s182, %s183
    %p192 = scmp.eq.s32.totalorder %s18, 0
    %p193 = por %p191, %p192
    %p194 = scmp.ne.s32.totalorder %s182, %s183
    %p195 = scmp.eq.s32.totalorder %s19, 1
    %p196 = por %p194, %p195
    %p198 = scmp.ne.s32.totalorder %s183, %s197
    %p199 = scmp.eq.s32.totalorder %s19, 0
    %p200 = por %p198, %p199
    %s201 = ssub.s32 %s20, %s32
    %s202 = ssub.s32 %s21, %s28
    %s203 = sor.u32 %s201, %s202
    %p204 = scmp.eq.s32.totalorder %s203, 0
    %s206 = sadd.s32 %s205, 1
    %s207 = scalar_select %p204, %s205, %s206
    %p210 = pneg %p204
    %p211 = scmp.eq.s32.totalorder %s13, 1
    %p212 = por %p210, %p211
    %p213 = scmp.ne.s32.totalorder %s205, %s208
    %p214 = scmp.eq.s32.totalorder %s13, 0
    %p215 = por %p213, %p214
    %p216 = scmp.ne.s32.totalorder %s205, %s208
    %p217 = scmp.eq.s32.totalorder %s18, 1
    %p218 = por %p216, %p217
    %p219 = scmp.ne.s32.totalorder %s208, %s209
    %p220 = scmp.eq.s32.totalorder %s18, 0
    %p221 = por %p219, %p220
    %p222 = scmp.ne.s32.totalorder %s208, %s209
    %p223 = scmp.eq.s32.totalorder %s19, 1
    %p224 = por %p222, %p223
    %p226 = scmp.ne.s32.totalorder %s209, %s225
    %p227 = scmp.eq.s32.totalorder %s19, 0
    %p228 = por %p226, %p227
    %p229 = scmp.le.s32.totalorder 1, %s13
    %p230 = scmp.lt.s32.totalorder %s13, 3
    %p231 = pnand %p229, %p230
    %p232 = pneg %p231
    // Predicated region
    $region9: #{residual_block.1} parent=5 // pred_check
      _
    $region10: #{residual_block.1} parent=5 // pred_check_branch
      %234 = sbr.rel (%p231) target = $region12
    $region11: #{residual_block.1} parent=5 // pred_region
      %s235 = ssub.s32 %s13, 1
      // Predicated region
      $region13: #{residual_block.1} parent=11 // pred_check
        %p236 = pneg %p130
      $region14: #{residual_block.1} parent=11 // pred_check_branch
        %238 = sbr.rel (%p236) target = $region16
      $region15: #{residual_block.1} parent=11 // pred_region
        _
      $region16: #{residual_block.1} parent=11 // pred_fallthru
        _
      // Predicated region
      $region17: #{residual_block.1} parent=11 // pred_check
        %p239 = pneg %p151
      $region18: #{residual_block.1} parent=11 // pred_check_branch
        %241 = sbr.rel (%p239) target = $region20
      $region19: #{residual_block.1} parent=11 // pred_region
        _
      $region20: #{residual_block.1} parent=11 // pred_fallthru
        _
      // Predicated region
      $region21: #{residual_block.1} parent=11 // pred_check
        %p242 = pneg %p172
      $region22: #{residual_block.1} parent=11 // pred_check_branch
        %244 = sbr.rel (%p242) target = $region24
      $region23: #{residual_block.1} parent=11 // pred_region
        _
      $region24: #{residual_block.1} parent=11 // pred_fallthru
        _
      // Predicated region
      $region25: #{residual_block.1} parent=11 // pred_check
        %p245 = pneg %p193
      $region26: #{residual_block.1} parent=11 // pred_check_branch
        %247 = sbr.rel (%p245) target = $region28
      $region27: #{residual_block.1} parent=11 // pred_region
        _
      $region28: #{residual_block.1} parent=11 // pred_fallthru
        _
    $region12: #{residual_block.1} parent=5 // pred_fallthru
      _
    %p248 = scmp.lt.s32.totalorder %s13, 2
    // Predicated region
    $region29: #{residual_block.1} parent=5 // pred_check
      %p249 = pneg %p248
    $region30: #{residual_block.1} parent=5 // pred_check_branch
      %251 = sbr.rel (%p249) target = $region32
    $region31: #{residual_block.1} parent=5 // pred_region
      // Predicated region
      $region33: #{residual_block.1} parent=31 // pred_check
        %p252 = pneg %p47
      $region34: #{residual_block.1} parent=31 // pred_check_branch
        %254 = sbr.rel (%p252) target = $region36
      $region35: #{residual_block.1} parent=31 // pred_region
        %s255 = smul.u32 16, %s21
        %p256 = scmp.lt.s32.totalorder %s20, 1
        %s257 = scalar_select %p256, %s20, 1
        %p258 = scmp.lt.s32.totalorder %s255, 15
        %s259 = scalar_select %p258, %s255, 15
        %s260 = smul.addr %s259, 2
        %s261 = smul.addr %s257, 32
        %s262 = sadd.s32 %s260, %s261
        %s263 = smul.addr %s262, 8
        %s264 = scalar_lea.vmem %s0, %s263
        %s265 = smul.u32 16, %s21
      $region36: #{residual_block.1} parent=31 // pred_fallthru
        _
      // Predicated region
      $region37: #{residual_block.1} parent=31 // pred_check
        %p266 = pneg %p75
      $region38: #{residual_block.1} parent=31 // pred_check_branch
        %268 = sbr.rel (%p266) target = $region40
      $region39: #{residual_block.1} parent=31 // pred_region
        %p269 = scmp.lt.s32.totalorder %s20, 1
        %s270 = scalar_select %p269, %s20, 1
        %p271 = scmp.lt.s32.totalorder %s21, 0
        %s272 = scalar_select %p271, %s21, 0
        %s273 = smul.addr %s272, 4
        %s274 = smul.addr %s270, 4
        %s275 = sadd.s32 %s273, %s274
        %s276 = smul.addr %s275, 8
        %s277 = scalar_lea.vmem %s1, %s276
      $region40: #{residual_block.1} parent=31 // pred_fallthru
        _
      // Predicated region
      $region41: #{residual_block.1} parent=31 // pred_check
        %p278 = pneg %p103
      $region42: #{residual_block.1} parent=31 // pred_check_branch
        %280 = sbr.rel (%p278) target = $region44
      $region43: #{residual_block.1} parent=31 // pred_region
        %p281 = scmp.lt.s32.totalorder %s20, 1
        %s282 = scalar_select %p281, %s20, 1
        %p283 = scmp.lt.s32.totalorder %s21, 0
        %s284 = scalar_select %p283, %s21, 0
        %s285 = smul.addr %s284, 4
        %s286 = smul.addr %s282, 4
        %s287 = sadd.s32 %s285, %s286
        %s288 = smul.addr %s287, 8
        %s289 = scalar_lea.vmem %s2, %s288
      $region44: #{residual_block.1} parent=31 // pred_fallthru
        _
    $region32: #{residual_block.1} parent=5 // pred_fallthru
      _
    %p290 = scmp.le.s32.totalorder 1, %s13
    %p291 = scmp.lt.s32.totalorder %s13, 3
    %p292 = pnand %p290, %p291
    %p293 = pneg %p292
    // Predicated region
    $region45: #{residual_block.1} parent=5 // pred_check
      _
    $region46: #{residual_block.1} parent=5 // pred_check_branch
      %295 = sbr.rel (%p292) target = $region48
    $region47: #{residual_block.1} parent=5 // pred_region
      %s296 = ssub.s32 %s13, 1
      %s297 = smul.u32 16, %s23
      %p298 = scmp.lt.s32.totalorder %s22, 1
      %s299 = scalar_select %p298, %s22, 1
      %p300 = scmp.lt.s32.totalorder %s297, 15
      %s301 = scalar_select %p300, %s297, 15
      %s302 = smul.addr %s301, 2
      %s303 = smul.addr %s299, 32
      %s304 = sadd.s32 %s302, %s303
      %s305 = smul.addr %s304, 8
      %s306 = scalar_lea.vmem %s0, %s305
      %p307 = pneg %p53
      %p308 = pneg %p50
      %p309 = scmp.lt.s32.totalorder %s22, 1
      %s310 = scalar_select %p309, %s22, 1
      %p311 = scmp.lt.s32.totalorder %s23, 0
      %s312 = scalar_select %p311, %s23, 0
      %s313 = smul.addr %s312, 4
      %s314 = smul.addr %s310, 4
      %s315 = sadd.s32 %s313, %s314
      %s316 = smul.addr %s315, 8
      %s317 = scalar_lea.vmem %s1, %s316
      %p318 = pneg %p81
      %p319 = pneg %p78
      %p320 = scmp.lt.s32.totalorder %s22, 1
      %s321 = scalar_select %p320, %s22, 1
      %p322 = scmp.lt.s32.totalorder %s23, 0
      %s323 = scalar_select %p322, %s23, 0
      %s324 = smul.addr %s323, 4
      %s325 = smul.addr %s321, 4
      %s326 = sadd.s32 %s324, %s325
      %s327 = smul.addr %s326, 8
      %s328 = scalar_lea.vmem %s2, %s327
      %p329 = pneg %p109
      %p330 = pneg %p106
      %p331 = pneg %p130
      %p332 = pneg %p127
      %p333 = pneg %p151
      %p334 = pneg %p148
      %p335 = pneg %p172
      %p336 = pneg %p169
      %p337 = pneg %p193
      %p338 = pneg %p190
      %p339 = pneg %p221
      %p340 = pneg %p218
      %s341 = smul.u32 16, %s23
      %p342 = scmp.lt.s32.totalorder %s22, 1
      %s343 = scalar_select %p342, %s22, 1
      %p344 = scmp.lt.s32.totalorder %s341, 15
      %s345 = scalar_select %p344, %s341, 15
      %s346 = smul.addr %s345, 2
      %s347 = smul.addr %s343, 32
      %s348 = sadd.s32 %s346, %s347
      %s349 = smul.addr %s348, 4
      %s350 = scalar_lea.vmem %s7, %s349
      %s351 = smul.u32 16, %s23
      %p352 = scmp.lt.s32.totalorder %s22, 1
      %s353 = scalar_select %p352, %s22, 1
      %p354 = scmp.lt.s32.totalorder %s351, 15
      %s355 = scalar_select %p354, %s351, 15
      %s356 = smul.addr %s355, 2
      %s357 = smul.addr %s353, 32
      %s358 = sadd.s32 %s356, %s357
      %s359 = smul.addr %s358, 8
      %s360 = scalar_lea.vmem %s0, %s359
      %s361 = smul.u32 16, %s23
      %p362 = scmp.lt.s32.totalorder %s22, 1
      %s363 = scalar_select %p362, %s22, 1
      %p364 = scmp.lt.s32.totalorder %s23, 0
      %s365 = scalar_select %p364, %s23, 0
      %s366 = smul.addr %s365, 4
      %s367 = smul.addr %s363, 4
      %s368 = sadd.s32 %s366, %s367
      %s369 = smul.addr %s368, 8
      %s370 = scalar_lea.vmem %s1, %s369
      %p371 = scmp.lt.s32.totalorder %s22, 1
      %s372 = scalar_select %p371, %s22, 1
      %p373 = scmp.lt.s32.totalorder %s23, 0
      %s374 = scalar_select %p373, %s23, 0
      %s375 = smul.addr %s374, 4
      %s376 = smul.addr %s372, 4
      %s377 = sadd.s32 %s375, %s376
      %s378 = smul.addr %s377, 8
      %s379 = scalar_lea.vmem %s2, %s378
      %s380 = smul.u32 16, %s23
      %p381 = scmp.lt.s32.totalorder %s22, 1
      %s382 = scalar_select %p381, %s22, 1
      %p383 = scmp.lt.s32.totalorder %s380, 15
      %s384 = scalar_select %p383, %s380, 15
      %s385 = smul.addr %s384, 2
      %s386 = smul.addr %s382, 32
      %s387 = sadd.s32 %s385, %s386
      %s388 = smul.addr %s387, 4
      %s389 = scalar_lea.vmem %s7, %s388
      %s390 = smul.u32 16, %s23
      %v392 = vld [vmem:[%s360] sm:$0xff]
      %v393 = vld [vmem:[%s360 + $0x8] sm:$0xff]
      %v394 = vld [vmem:[%s360 + $0x10] sm:$0xff]
      %v395 = vld [vmem:[%s360 + $0x18] sm:$0xff]
      %v396 = vld [vmem:[%s360 + $0x20] sm:$0xff]
      %v397 = vld [vmem:[%s360 + $0x28] sm:$0xff]
      %v398 = vld [vmem:[%s360 + $0x30] sm:$0xff]
      %v399 = vld [vmem:[%s360 + $0x38] sm:$0xff]
      %v400 = vld [vmem:[%s360 + $0x40] sm:$0xff]
      %v401 = vld [vmem:[%s360 + $0x48] sm:$0xff]
      %v402 = vld [vmem:[%s360 + $0x50] sm:$0xff]
      %v403 = vld [vmem:[%s360 + $0x58] sm:$0xff]
      %v404 = vld [vmem:[%s360 + $0x60] sm:$0xff]
      %v405 = vld [vmem:[%s360 + $0x68] sm:$0xff]
      %v406 = vld [vmem:[%s360 + $0x70] sm:$0xff]
      %v407 = vld [vmem:[%s360 + $0x78] sm:$0xff]
      %v408 = vld [vmem:[%s360 + $0x80] sm:$0xff]
      %v409 = vld [vmem:[%s360 + $0x88] sm:$0xff]
      %v410 = vld [vmem:[%s360 + $0x90] sm:$0xff]
      %v411 = vld [vmem:[%s360 + $0x98] sm:$0xff]
      %v412 = vld [vmem:[%s360 + $0xa0] sm:$0xff]
      %v413 = vld [vmem:[%s360 + $0xa8] sm:$0xff]
      %v414 = vld [vmem:[%s360 + $0xb0] sm:$0xff]
      %v415 = vld [vmem:[%s360 + $0xb8] sm:$0xff]
      %v416 = vld [vmem:[%s360 + $0xc0] sm:$0xff]
      %v417 = vld [vmem:[%s360 + $0xc8] sm:$0xff]
      %v418 = vld [vmem:[%s360 + $0xd0] sm:$0xff]
      %v419 = vld [vmem:[%s360 + $0xd8] sm:$0xff]
      %v420 = vld [vmem:[%s360 + $0xe0] sm:$0xff]
      %v421 = vld [vmem:[%s360 + $0xe8] sm:$0xff]
      %v422 = vld [vmem:[%s360 + $0xf0] sm:$0xff]
      %v423 = vld [vmem:[%s360 + $0xf8] sm:$0xff]
      %v424 = vld [vmem:[%s370] sm:$0xff]
      %v425 = vld [vmem:[%s370 + $0x8] sm:$0xff]
      %v426 = vld [vmem:[%s370 + $0x10] sm:$0xff]
      %v427 = vld [vmem:[%s370 + $0x18] sm:$0xff]
      %v428 = vpack.c.bf16 %v425, %v424
      %v429 = vpack.c.bf16 %v427, %v426
      %v432 = vunpack.c.l.b16 %v428
      %v433 = vunpack.c.h.b16 %v428
      %v434 = vunpack.c.l.b16 %v429
      %v435 = vunpack.c.h.b16 %v429
      %v436 = vpack.c.b16 %v432, %v432
      %v437 = vpack.c.b16 %v433, %v433
      %v438 = vpack.c.b16 %v434, %v434
      %v439 = vpack.c.b16 %v435, %v435
      %vm444 = vcmask 27648
      %445 = vst.msk [vmem:[#allocation2] sm:$0xf] %vm444, %v436
      %446 = vst.msk [vmem:[#allocation2 + $0x4] sm:$0xf] %vm444, %v437
      %447 = vst.msk [vmem:[#allocation2 + $0x8] sm:$0xf] %vm444, %v438
      %448 = vst.msk [vmem:[#allocation2 + $0xc] sm:$0xf] %vm444, %v439
      %v449 = vpack.c.bf16 %v393, %v392
      %v450 = vpack.c.bf16 %v395, %v394
      %v451 = vpack.c.bf16 %v397, %v396
      %v452 = vpack.c.bf16 %v399, %v398
      %v453 = vpack.c.bf16 %v401, %v400
      %v454 = vpack.c.bf16 %v403, %v402
      %v455 = vpack.c.bf16 %v405, %v404
      %v456 = vpack.c.bf16 %v407, %v406
      %v457 = vpack.c.bf16 %v409, %v408
      %v458 = vpack.c.bf16 %v411, %v410
      %v459 = vpack.c.bf16 %v413, %v412
      %v460 = vpack.c.bf16 %v415, %v414
      %v461 = vpack.c.bf16 %v417, %v416
      %v462 = vpack.c.bf16 %v419, %v418
      %v463 = vpack.c.bf16 %v421, %v420
      %v464 = vpack.c.bf16 %v423, %v422
      %v481 = vunpack.c.l.b16 %v449
      %v482 = vunpack.c.h.b16 %v449
      %v483 = vunpack.c.l.b16 %v450
      %v484 = vunpack.c.h.b16 %v450
      %v485 = vunpack.c.l.b16 %v451
      %v486 = vunpack.c.h.b16 %v451
      %v487 = vunpack.c.l.b16 %v452
      %v488 = vunpack.c.h.b16 %v452
      %v489 = vunpack.c.l.b16 %v453
      %v490 = vunpack.c.h.b16 %v453
      %v491 = vunpack.c.l.b16 %v454
      %v492 = vunpack.c.h.b16 %v454
      %v493 = vunpack.c.l.b16 %v455
      %v494 = vunpack.c.h.b16 %v455
      %v495 = vunpack.c.l.b16 %v456
      %v496 = vunpack.c.h.b16 %v456
      %v497 = vunpack.c.l.b16 %v457
      %v498 = vunpack.c.h.b16 %v457
      %v499 = vunpack.c.l.b16 %v458
      %v500 = vunpack.c.h.b16 %v458
      %v501 = vunpack.c.l.b16 %v459
      %v502 = vunpack.c.h.b16 %v459
      %v503 = vunpack.c.l.b16 %v460
      %v504 = vunpack.c.h.b16 %v460
      %v505 = vunpack.c.l.b16 %v461
      %v506 = vunpack.c.h.b16 %v461
      %v507 = vunpack.c.l.b16 %v462
      %v508 = vunpack.c.h.b16 %v462
      %v509 = vunpack.c.l.b16 %v463
      %v510 = vunpack.c.h.b16 %v463
      %v511 = vunpack.c.l.b16 %v464
      %v512 = vunpack.c.h.b16 %v464
      %v513 = vpack.c.b16 %v481, %v481
      %v514 = vpack.c.b16 %v482, %v482
      %v515 = vpack.c.b16 %v483, %v483
      %v516 = vpack.c.b16 %v484, %v484
      %v517 = vpack.c.b16 %v485, %v485
      %v518 = vpack.c.b16 %v486, %v486
      %v519 = vpack.c.b16 %v487, %v487
      %v520 = vpack.c.b16 %v488, %v488
      %v521 = vpack.c.b16 %v489, %v489
      %v522 = vpack.c.b16 %v490, %v490
      %v523 = vpack.c.b16 %v491, %v491
      %v524 = vpack.c.b16 %v492, %v492
      %v525 = vpack.c.b16 %v493, %v493
      %v526 = vpack.c.b16 %v494, %v494
      %v527 = vpack.c.b16 %v495, %v495
      %v528 = vpack.c.b16 %v496, %v496
      %v529 = vpack.c.b16 %v497, %v497
      %v530 = vpack.c.b16 %v498, %v498
      %v531 = vpack.c.b16 %v499, %v499
      %v532 = vpack.c.b16 %v500, %v500
      %v533 = vpack.c.b16 %v501, %v501
      %v534 = vpack.c.b16 %v502, %v502
      %v535 = vpack.c.b16 %v503, %v503
      %v536 = vpack.c.b16 %v504, %v504
      %v537 = vpack.c.b16 %v505, %v505
      %v538 = vpack.c.b16 %v506, %v506
      %v539 = vpack.c.b16 %v507, %v507
      %v540 = vpack.c.b16 %v508, %v508
      %v541 = vpack.c.b16 %v509, %v509
      %v542 = vpack.c.b16 %v510, %v510
      %v543 = vpack.c.b16 %v511, %v511
      %v544 = vpack.c.b16 %v512, %v512
      %s577 = scalar_lea.vmem [#allocation2], 16
      %578 = vst.msk [vmem:[%s577] sm:$0xf] %vm444, %v513
      %579 = vst.msk [vmem:[%s577 + $0x4] sm:$0xf] %vm444, %v514
      %580 = vst.msk [vmem:[%s577 + $0x8] sm:$0xf] %vm444, %v515
      %581 = vst.msk [vmem:[%s577 + $0xc] sm:$0xf] %vm444, %v516
      %582 = vst.msk [vmem:[%s577 + $0x10] sm:$0xf] %vm444, %v517
      %583 = vst.msk [vmem:[%s577 + $0x14] sm:$0xf] %vm444, %v518
      %584 = vst.msk [vmem:[%s577 + $0x18] sm:$0xf] %vm444, %v519
      %585 = vst.msk [vmem:[%s577 + $0x1c] sm:$0xf] %vm444, %v520
      %586 = vst.msk [vmem:[%s577 + $0x20] sm:$0xf] %vm444, %v521
      %587 = vst.msk [vmem:[%s577 + $0x24] sm:$0xf] %vm444, %v522
      %588 = vst.msk [vmem:[%s577 + $0x28] sm:$0xf] %vm444, %v523
      %589 = vst.msk [vmem:[%s577 + $0x2c] sm:$0xf] %vm444, %v524
      %590 = vst.msk [vmem:[%s577 + $0x30] sm:$0xf] %vm444, %v525
      %591 = vst.msk [vmem:[%s577 + $0x34] sm:$0xf] %vm444, %v526
      %592 = vst.msk [vmem:[%s577 + $0x38] sm:$0xf] %vm444, %v527
      %593 = vst.msk [vmem:[%s577 + $0x3c] sm:$0xf] %vm444, %v528
      %594 = vst.msk [vmem:[%s577 + $0x40] sm:$0xf] %vm444, %v529
      %595 = vst.msk [vmem:[%s577 + $0x44] sm:$0xf] %vm444, %v530
      %596 = vst.msk [vmem:[%s577 + $0x48] sm:$0xf] %vm444, %v531
      %597 = vst.msk [vmem:[%s577 + $0x4c] sm:$0xf] %vm444, %v532
      %598 = vst.msk [vmem:[%s577 + $0x50] sm:$0xf] %vm444, %v533
      %599 = vst.msk [vmem:[%s577 + $0x54] sm:$0xf] %vm444, %v534
      %600 = vst.msk [vmem:[%s577 + $0x58] sm:$0xf] %vm444, %v535
      %601 = vst.msk [vmem:[%s577 + $0x5c] sm:$0xf] %vm444, %v536
      %602 = vst.msk [vmem:[%s577 + $0x60] sm:$0xf] %vm444, %v537
      %603 = vst.msk [vmem:[%s577 + $0x64] sm:$0xf] %vm444, %v538
      %604 = vst.msk [vmem:[%s577 + $0x68] sm:$0xf] %vm444, %v539
      %605 = vst.msk [vmem:[%s577 + $0x6c] sm:$0xf] %vm444, %v540
      %606 = vst.msk [vmem:[%s577 + $0x70] sm:$0xf] %vm444, %v541
      %607 = vst.msk [vmem:[%s577 + $0x74] sm:$0xf] %vm444, %v542
      %608 = vst.msk [vmem:[%s577 + $0x78] sm:$0xf] %vm444, %v543
      %609 = vst.msk [vmem:[%s577 + $0x7c] sm:$0xf] %vm444, %v544
      %v610 = vld [vmem:[%s379] sm:$0xff]
      %v611 = vld [vmem:[%s379 + $0x8] sm:$0xff]
      %v612 = vld [vmem:[%s379 + $0x10] sm:$0xff]
      %v613 = vld [vmem:[%s379 + $0x18] sm:$0xff]
      %v614 = vpack.c.bf16 %v611, %v610
      %v615 = vpack.c.bf16 %v613, %v612
      %v618 = vunpack.c.l.b16 %v614
      %v619 = vunpack.c.h.b16 %v614
      %v620 = vunpack.c.l.b16 %v615
      %v621 = vunpack.c.h.b16 %v615
      %v622 = vpack.c.b16 %v618, %v618
      %v623 = vpack.c.b16 %v619, %v619
      %v624 = vpack.c.b16 %v620, %v620
      %v625 = vpack.c.b16 %v621, %v621
      %s630 = scalar_lea.vmem [#allocation2], 144
      %631 = vst.msk [vmem:[%s630] sm:$0xf] %vm444, %v622
      %632 = vst.msk [vmem:[%s630 + $0x4] sm:$0xf] %vm444, %v623
      %633 = vst.msk [vmem:[%s630 + $0x8] sm:$0xf] %vm444, %v624
      %634 = vst.msk [vmem:[%s630 + $0xc] sm:$0xf] %vm444, %v625
      %v635 = vld [vmem:[#allocation2] sm:$0xf]
      %v636 = vld [vmem:[#allocation2 + $0x4] sm:$0xf]
      %v637 = vld [vmem:[#allocation2 + $0x8] sm:$0xf]
      %v638 = vld [vmem:[#allocation2 + $0xc] sm:$0xf]
      %v639 = vld [vmem:[#allocation2 + $0x10] sm:$0xf]
      %v640 = vld [vmem:[#allocation2 + $0x14] sm:$0xf]
      %v641 = vld [vmem:[#allocation2 + $0x18] sm:$0xf]
      %v642 = vld [vmem:[#allocation2 + $0x1c] sm:$0xf]
      %v643 = vld [vmem:[#allocation2 + $0x20] sm:$0xf]
      %v644 = vld [vmem:[#allocation2 + $0x24] sm:$0xf]
      %v645 = vld [vmem:[#allocation2 + $0x28] sm:$0xf]
      %v646 = vld [vmem:[#allocation2 + $0x2c] sm:$0xf]
      %v647 = vld [vmem:[#allocation2 + $0x30] sm:$0xf]
      %v648 = vld [vmem:[#allocation2 + $0x34] sm:$0xf]
      %v649 = vld [vmem:[#allocation2 + $0x38] sm:$0xf]
      %v650 = vld [vmem:[#allocation2 + $0x3c] sm:$0xf]
      %v651 = vld [vmem:[#allocation2 + $0x40] sm:$0xf]
      %v652 = vld [vmem:[#allocation2 + $0x44] sm:$0xf]
      %v653 = vld [vmem:[#allocation2 + $0x48] sm:$0xf]
      %v654 = vld [vmem:[#allocation2 + $0x4c] sm:$0xf]
      %v655 = vld [vmem:[#allocation2 + $0x50] sm:$0xf]
      %v656 = vld [vmem:[#allocation2 + $0x54] sm:$0xf]
      %v657 = vld [vmem:[#allocation2 + $0x58] sm:$0xf]
      %v658 = vld [vmem:[#allocation2 + $0x5c] sm:$0xf]
      %v659 = vld [vmem:[#allocation2 + $0x60] sm:$0xf]
      %v660 = vld [vmem:[#allocation2 + $0x64] sm:$0xf]
      %v661 = vld [vmem:[#allocation2 + $0x68] sm:$0xf]
      %v662 = vld [vmem:[#allocation2 + $0x6c] sm:$0xf]
      %v663 = vld [vmem:[#allocation2 + $0x70] sm:$0xf]
      %v664 = vld [vmem:[#allocation2 + $0x74] sm:$0xf]
      %v665 = vld [vmem:[#allocation2 + $0x78] sm:$0xf]
      %v666 = vld [vmem:[#allocation2 + $0x7c] sm:$0xf]
      %v667 = vld [vmem:[#allocation2 + $0x80] sm:$0xf]
      %v668 = vld [vmem:[#allocation2 + $0x84] sm:$0xf]
      %v669 = vld [vmem:[#allocation2 + $0x88] sm:$0xf]
      %v670 = vld [vmem:[#allocation2 + $0x8c] sm:$0xf]
      %v671 = vld [vmem:[#allocation2 + $0x90] sm:$0xf]
      %v672 = vld [vmem:[#allocation2 + $0x94] sm:$0xf]
      %v673 = vld [vmem:[#allocation2 + $0x98] sm:$0xf]
      %v674 = vld [vmem:[#allocation2 + $0x9c] sm:$0xf]
      %v715 = vunpack.c.l.b16 %v635
      %v716 = vunpack.c.l.b16 %v636
      %v717 = vunpack.c.l.b16 %v637
      %v718 = vunpack.c.l.b16 %v638
      %v719 = vunpack.c.l.b16 %v639
      %v720 = vunpack.c.l.b16 %v640
      %v721 = vunpack.c.l.b16 %v641
      %v722 = vunpack.c.l.b16 %v642
      %v723 = vunpack.c.l.b16 %v643
      %v724 = vunpack.c.l.b16 %v644
      %v725 = vunpack.c.l.b16 %v645
      %v726 = vunpack.c.l.b16 %v646
      %v727 = vunpack.c.l.b16 %v647
      %v728 = vunpack.c.l.b16 %v648
      %v729 = vunpack.c.l.b16 %v649
      %v730 = vunpack.c.l.b16 %v650
      %v731 = vunpack.c.l.b16 %v651
      %v732 = vunpack.c.l.b16 %v652
      %v733 = vunpack.c.l.b16 %v653
      %v734 = vunpack.c.l.b16 %v654
      %v735 = vunpack.c.l.b16 %v655
      %v736 = vunpack.c.l.b16 %v656
      %v737 = vunpack.c.l.b16 %v657
      %v738 = vunpack.c.l.b16 %v658
      %v739 = vunpack.c.l.b16 %v659
      %v740 = vunpack.c.l.b16 %v660
      %v741 = vunpack.c.l.b16 %v661
      %v742 = vunpack.c.l.b16 %v662
      %v743 = vunpack.c.l.b16 %v663
      %v744 = vunpack.c.l.b16 %v664
      %v745 = vunpack.c.l.b16 %v665
      %v746 = vunpack.c.l.b16 %v666
      %v747 = vunpack.c.l.b16 %v667
      %v748 = vunpack.c.l.b16 %v668
      %v749 = vunpack.c.l.b16 %v669
      %v750 = vunpack.c.l.b16 %v670
      %v751 = vunpack.c.l.b16 %v671
      %v752 = vunpack.c.l.b16 %v672
      %v753 = vunpack.c.l.b16 %v673
      %v754 = vunpack.c.l.b16 %v674
      %v755 = vpack.c.b16 %v716, %v715
      %v756 = vpack.c.b16 %v718, %v717
      %v757 = vpack.c.b16 %v720, %v719
      %v758 = vpack.c.b16 %v722, %v721
      %v759 = vpack.c.b16 %v724, %v723
      %v760 = vpack.c.b16 %v726, %v725
      %v761 = vpack.c.b16 %v728, %v727
      %v762 = vpack.c.b16 %v730, %v729
      %v763 = vpack.c.b16 %v732, %v731
      %v764 = vpack.c.b16 %v734, %v733
      %v765 = vpack.c.b16 %v736, %v735
      %v766 = vpack.c.b16 %v738, %v737
      %v767 = vpack.c.b16 %v740, %v739
      %v768 = vpack.c.b16 %v742, %v741
      %v769 = vpack.c.b16 %v744, %v743
      %v770 = vpack.c.b16 %v746, %v745
      %v771 = vpack.c.b16 %v748, %v747
      %v772 = vpack.c.b16 %v750, %v749
      %v773 = vpack.c.b16 %v752, %v751
      %v774 = vpack.c.b16 %v754, %v753
      %v776 = vshrl.u32 %v755, 16
      %v778 = vrot.slane %v776, 7
      %v779 = vshll.u32 %v755, 16
      %v781 = vor.u32 %v778, %v779
      %v783 = vshrl.u32 %v756, 16
      %v785 = vrot.slane %v783, 7
      %v786 = vshll.u32 %v756, 16
      %v788 = vor.u32 %v785, %v786
      %v790 = vshrl.u32 %v757, 16
      %v792 = vrot.slane %v790, 7
      %v793 = vshll.u32 %v757, 16
      %v795 = vor.u32 %v792, %v793
      %v797 = vshrl.u32 %v758, 16
      %v799 = vrot.slane %v797, 7
      %v800 = vshll.u32 %v758, 16
      %v802 = vor.u32 %v799, %v800
      %v804 = vshrl.u32 %v759, 16
      %v806 = vrot.slane %v804, 7
      %v807 = vshll.u32 %v759, 16
      %v809 = vor.u32 %v806, %v807
      %v811 = vshrl.u32 %v760, 16
      %v813 = vrot.slane %v811, 7
      %v814 = vshll.u32 %v760, 16
      %v816 = vor.u32 %v813, %v814
      %v818 = vshrl.u32 %v761, 16
      %v820 = vrot.slane %v818, 7
      %v821 = vshll.u32 %v761, 16
      %v823 = vor.u32 %v820, %v821
      %v825 = vshrl.u32 %v762, 16
      %v827 = vrot.slane %v825, 7
      %v828 = vshll.u32 %v762, 16
      %v830 = vor.u32 %v827, %v828
      %v832 = vshrl.u32 %v763, 16
      %v834 = vrot.slane %v832, 7
      %v835 = vshll.u32 %v763, 16
      %v837 = vor.u32 %v834, %v835
      %v839 = vshrl.u32 %v764, 16
      %v841 = vrot.slane %v839, 7
      %v842 = vshll.u32 %v764, 16
      %v844 = vor.u32 %v841, %v842
      %v846 = vshrl.u32 %v765, 16
      %v848 = vrot.slane %v846, 7
      %v849 = vshll.u32 %v765, 16
      %v851 = vor.u32 %v848, %v849
      %v853 = vshrl.u32 %v766, 16
      %v855 = vrot.slane %v853, 7
      %v856 = vshll.u32 %v766, 16
      %v858 = vor.u32 %v855, %v856
      %v860 = vshrl.u32 %v767, 16
      %v862 = vrot.slane %v860, 7
      %v863 = vshll.u32 %v767, 16
      %v865 = vor.u32 %v862, %v863
      %v867 = vshrl.u32 %v768, 16
      %v869 = vrot.slane %v867, 7
      %v870 = vshll.u32 %v768, 16
      %v872 = vor.u32 %v869, %v870
      %v874 = vshrl.u32 %v769, 16
      %v876 = vrot.slane %v874, 7
      %v877 = vshll.u32 %v769, 16
      %v879 = vor.u32 %v876, %v877
      %v881 = vshrl.u32 %v770, 16
      %v883 = vrot.slane %v881, 7
      %v884 = vshll.u32 %v770, 16
      %v886 = vor.u32 %v883, %v884
      %v888 = vshrl.u32 %v771, 16
      %v890 = vrot.slane %v888, 7
      %v891 = vshll.u32 %v771, 16
      %v893 = vor.u32 %v890, %v891
      %v895 = vshrl.u32 %v772, 16
      %v897 = vrot.slane %v895, 7
      %v898 = vshll.u32 %v772, 16
      %v900 = vor.u32 %v897, %v898
      %v902 = vshrl.u32 %v773, 16
      %v904 = vrot.slane %v902, 7
      %v905 = vshll.u32 %v773, 16
      %v907 = vor.u32 %v904, %v905
      %v909 = vshrl.u32 %v774, 16
      %v911 = vrot.slane %v909, 7
      %v912 = vshll.u32 %v774, 16
      %v914 = vor.u32 %v911, %v912
      %vm935 = vcmask 1040384
      %vm936 = vsmask.f32 256
      %vm937 = vmand %vm935, %vm936
      %v938 = vsel %vm937, 0, %v781
      %v939 = vsel %vm937, 0, %v788
      %v940 = vsel %vm937, 0, %v795
      %v941 = vsel %vm937, 0, %v802
      %v942 = vsel %vm937, 0, %v809
      %v943 = vsel %vm937, 0, %v816
      %v944 = vsel %vm937, 0, %v823
      %v945 = vsel %vm937, 0, %v830
      %v946 = vsel %vm937, 0, %v837
      %v947 = vsel %vm937, 0, %v844
      %v948 = vsel %vm937, 0, %v851
      %v949 = vsel %vm937, 0, %v858
      %v950 = vsel %vm937, 0, %v865
      %v951 = vsel %vm937, 0, %v872
      %v952 = vsel %vm937, 0, %v879
      %v953 = vsel %vm937, 0, %v886
      %v954 = vsel %vm937, 0, %v893
      %v955 = vsel %vm937, 0, %v900
      %v956 = vsel %vm937, 0, %v907
      %v957 = vsel %vm937, 0, %v914
      %v958 = vrot.slane %v779, 1
      %v959 = vor.u32 %v776, %v958
      %v960 = vrot.slane %v786, 1
      %v961 = vor.u32 %v783, %v960
      %v962 = vrot.slane %v793, 1
      %v963 = vor.u32 %v790, %v962
      %v964 = vrot.slane %v800, 1
      %v965 = vor.u32 %v797, %v964
      %v966 = vrot.slane %v807, 1
      %v967 = vor.u32 %v804, %v966
      %v968 = vrot.slane %v814, 1
      %v969 = vor.u32 %v811, %v968
      %v970 = vrot.slane %v821, 1
      %v971 = vor.u32 %v818, %v970
      %v972 = vrot.slane %v828, 1
      %v973 = vor.u32 %v825, %v972
      %v974 = vrot.slane %v835, 1
      %v975 = vor.u32 %v832, %v974
      %v976 = vrot.slane %v842, 1
      %v977 = vor.u32 %v839, %v976
      %v978 = vrot.slane %v849, 1
      %v979 = vor.u32 %v846, %v978
      %v980 = vrot.slane %v856, 1
      %v981 = vor.u32 %v853, %v980
      %v982 = vrot.slane %v863, 1
      %v983 = vor.u32 %v860, %v982
      %v984 = vrot.slane %v870, 1
      %v985 = vor.u32 %v867, %v984
      %v986 = vrot.slane %v877, 1
      %v987 = vor.u32 %v874, %v986
      %v988 = vrot.slane %v884, 1
      %v989 = vor.u32 %v881, %v988
      %v990 = vrot.slane %v891, 1
      %v991 = vor.u32 %v888, %v990
      %v992 = vrot.slane %v898, 1
      %v993 = vor.u32 %v895, %v992
      %v994 = vrot.slane %v905, 1
      %v995 = vor.u32 %v902, %v994
      %v996 = vrot.slane %v912, 1
      %v997 = vor.u32 %v909, %v996
      %vm1018 = vcmask 1047552
      %vm1019 = vsmask.f32 7424
      %vm1020 = vmand %vm1018, %vm1019
      %v1021 = vsel %vm1020, %v959, 0
      %v1022 = vsel %vm1020, %v961, 0
      %v1023 = vsel %vm1020, %v963, 0
      %v1024 = vsel %vm1020, %v965, 0
      %v1025 = vsel %vm1020, %v967, 0
      %v1026 = vsel %vm1020, %v969, 0
      %v1027 = vsel %vm1020, %v971, 0
      %v1028 = vsel %vm1020, %v973, 0
      %v1029 = vsel %vm1020, %v975, 0
      %v1030 = vsel %vm1020, %v977, 0
      %v1031 = vsel %vm1020, %v979, 0
      %v1032 = vsel %vm1020, %v981, 0
      %v1033 = vsel %vm1020, %v983, 0
      %v1034 = vsel %vm1020, %v985, 0
      %v1035 = vsel %vm1020, %v987, 0
      %v1036 = vsel %vm1020, %v989, 0
      %v1037 = vsel %vm1020, %v991, 0
      %v1038 = vsel %vm1020, %v993, 0
      %v1039 = vsel %vm1020, %v995, 0
      %v1040 = vsel %vm1020, %v997, 0
      %1041 = vrot.lane.b32.xlu0 %v755, 4
      %v1042 = vpop.permute.xlu0 %1041
      %1043 = vrot.lane.b32.xlu0 %v756, 4
      %v1044 = vpop.permute.xlu0 %1043
      %1045 = vrot.lane.b32.xlu0 %v757, 4
      %v1046 = vpop.permute.xlu0 %1045
      %1047 = vrot.lane.b32.xlu0 %v758, 4
      %v1048 = vpop.permute.xlu0 %1047
      %1049 = vrot.lane.b32.xlu0 %v759, 4
      %v1050 = vpop.permute.xlu0 %1049
      %1051 = vrot.lane.b32.xlu0 %v760, 4
      %v1052 = vpop.permute.xlu0 %1051
      %1053 = vrot.lane.b32.xlu0 %v761, 4
      %v1054 = vpop.permute.xlu0 %1053
      %1055 = vrot.lane.b32.xlu0 %v762, 4
      %v1056 = vpop.permute.xlu0 %1055
      %1057 = vrot.lane.b32.xlu0 %v763, 4
      %v1058 = vpop.permute.xlu0 %1057
      %1059 = vrot.lane.b32.xlu0 %v764, 4
      %v1060 = vpop.permute.xlu0 %1059
      %1061 = vrot.lane.b32.xlu0 %v765, 4
      %v1062 = vpop.permute.xlu0 %1061
      %1063 = vrot.lane.b32.xlu0 %v766, 4
      %v1064 = vpop.permute.xlu0 %1063
      %1065 = vrot.lane.b32.xlu0 %v767, 4
      %v1066 = vpop.permute.xlu0 %1065
      %1067 = vrot.lane.b32.xlu0 %v768, 4
      %v1068 = vpop.permute.xlu0 %1067
      %1069 = vrot.lane.b32.xlu0 %v769, 4
      %v1070 = vpop.permute.xlu0 %1069
      %1071 = vrot.lane.b32.xlu0 %v770, 4
      %v1072 = vpop.permute.xlu0 %1071
      %1073 = vrot.lane.b32.xlu0 %v771, 4
      %v1074 = vpop.permute.xlu0 %1073
      %1075 = vrot.lane.b32.xlu0 %v772, 4
      %v1076 = vpop.permute.xlu0 %1075
      %1077 = vrot.lane.b32.xlu0 %v773, 4
      %v1078 = vpop.permute.xlu0 %1077
      %1079 = vrot.lane.b32.xlu0 %v774, 4
      %v1080 = vpop.permute.xlu0 %1079
      %1101 = vrot.lane.b32.xlu0 %v1021, 8
      %v1102 = vpop.permute.xlu0 %1101
      %1103 = vrot.lane.b32.xlu0 %v1022, 8
      %v1104 = vpop.permute.xlu0 %1103
      %1105 = vrot.lane.b32.xlu0 %v1023, 8
      %v1106 = vpop.permute.xlu0 %1105
      %1107 = vrot.lane.b32.xlu0 %v1024, 8
      %v1108 = vpop.permute.xlu0 %1107
      %1109 = vrot.lane.b32.xlu0 %v1025, 8
      %v1110 = vpop.permute.xlu0 %1109
      %1111 = vrot.lane.b32.xlu0 %v1026, 8
      %v1112 = vpop.permute.xlu0 %1111
      %1113 = vrot.lane.b32.xlu0 %v1027, 8
      %v1114 = vpop.permute.xlu0 %1113
      %1115 = vrot.lane.b32.xlu0 %v1028, 8
      %v1116 = vpop.permute.xlu0 %1115
      %1117 = vrot.lane.b32.xlu0 %v1029, 8
      %v1118 = vpop.permute.xlu0 %1117
      %1119 = vrot.lane.b32.xlu0 %v1030, 8
      %v1120 = vpop.permute.xlu0 %1119
      %1121 = vrot.lane.b32.xlu0 %v1031, 8
      %v1122 = vpop.permute.xlu0 %1121
      %1123 = vrot.lane.b32.xlu0 %v1032, 8
      %v1124 = vpop.permute.xlu0 %1123
      %1125 = vrot.lane.b32.xlu0 %v1033, 8
      %v1126 = vpop.permute.xlu0 %1125
      %1127 = vrot.lane.b32.xlu0 %v1034, 8
      %v1128 = vpop.permute.xlu0 %1127
      %1129 = vrot.lane.b32.xlu0 %v1035, 8
      %v1130 = vpop.permute.xlu0 %1129
      %1131 = vrot.lane.b32.xlu0 %v1036, 8
      %v1132 = vpop.permute.xlu0 %1131
      %1133 = vrot.lane.b32.xlu0 %v1037, 8
      %v1134 = vpop.permute.xlu0 %1133
      %1135 = vrot.lane.b32.xlu0 %v1038, 8
      %v1136 = vpop.permute.xlu0 %1135
      %1137 = vrot.lane.b32.xlu0 %v1039, 8
      %v1138 = vpop.permute.xlu0 %1137
      %1139 = vrot.lane.b32.xlu0 %v1040, 8
      %v1140 = vpop.permute.xlu0 %1139
      %vm1141 = vcmask 31744
      %v1144 = vsel %vm1141, %v938, %v1042
      %v1147 = vsel %vm1141, %v939, %v1044
      %v1150 = vsel %vm1141, %v940, %v1046
      %v1153 = vsel %vm1141, %v941, %v1048
      %v1156 = vsel %vm1141, %v942, %v1050
      %v1159 = vsel %vm1141, %v943, %v1052
      %v1162 = vsel %vm1141, %v944, %v1054
      %v1165 = vsel %vm1141, %v945, %v1056
      %v1168 = vsel %vm1141, %v946, %v1058
      %v1171 = vsel %vm1141, %v947, %v1060
      %v1174 = vsel %vm1141, %v948, %v1062
      %v1177 = vsel %vm1141, %v949, %v1064
      %v1180 = vsel %vm1141, %v950, %v1066
      %v1183 = vsel %vm1141, %v951, %v1068
      %v1186 = vsel %vm1141, %v952, %v1070
      %v1189 = vsel %vm1141, %v953, %v1072
      %v1192 = vsel %vm1141, %v954, %v1074
      %v1195 = vsel %vm1141, %v955, %v1076
      %v1198 = vsel %vm1141, %v956, %v1078
      %v1201 = vsel %vm1141, %v957, %v1080
      %vm1202 = vcmask 64512
      %v1204 = vsel %vm1202, %v1144, %v1102
      %v1206 = vsel %vm1202, %v1147, %v1104
      %v1208 = vsel %vm1202, %v1150, %v1106
      %v1210 = vsel %vm1202, %v1153, %v1108
      %v1212 = vsel %vm1202, %v1156, %v1110
      %v1214 = vsel %vm1202, %v1159, %v1112
      %v1216 = vsel %vm1202, %v1162, %v1114
      %v1218 = vsel %vm1202, %v1165, %v1116
      %v1220 = vsel %vm1202, %v1168, %v1118
      %v1222 = vsel %vm1202, %v1171, %v1120
      %v1224 = vsel %vm1202, %v1174, %v1122
      %v1226 = vsel %vm1202, %v1177, %v1124
      %v1228 = vsel %vm1202, %v1180, %v1126
      %v1230 = vsel %vm1202, %v1183, %v1128
      %v1232 = vsel %vm1202, %v1186, %v1130
      %v1234 = vsel %vm1202, %v1189, %v1132
      %v1236 = vsel %vm1202, %v1192, %v1134
      %v1238 = vsel %vm1202, %v1195, %v1136
      %v1240 = vsel %vm1202, %v1198, %v1138
      %v1242 = vsel %vm1202, %v1201, %v1140
      %v1243 = vld [vmem:[%s3] sm:$0xf]
      %v1244 = vld [vmem:[%s3 + $0x4] sm:$0x3]
      %s1245 = scalar_lea.vmem %s3, 8
      %v1246 = vld [vmem:[%s1245] sm:$0xf]
      %v1247 = vld [vmem:[%s1245 + $0x4] sm:$0x3]
      %v1250 = vunpack.c.l.b16 %v1246
      %v1251 = vunpack.c.l.b16 %v1247
      %v1252 = vpack.c.b16 %v1251, %v1250
      %vm1253 = vcmask 97280
      %v1254 = vsel %vm1253, %v1206, 0
      %v1256 = vsel %vm1253, %v1208, 0
      %v1258 = vsel %vm1253, %v1210, 0
      %v1260 = vsel %vm1253, %v1212, 0
      %v1262 = vsel %vm1253, %v1214, 0
      %v1264 = vsel %vm1253, %v1216, 0
      %v1266 = vsel %vm1253, %v1218, 0
      %v1268 = vsel %vm1253, %v1220, 0
      %v1270 = vsel %vm1253, %v1222, 0
      %v1272 = vsel %vm1253, %v1224, 0
      %v1274 = vsel %vm1253, %v1226, 0
      %v1276 = vsel %vm1253, %v1228, 0
      %v1278 = vsel %vm1253, %v1230, 0
      %v1280 = vsel %vm1253, %v1232, 0
      %v1282 = vsel %vm1253, %v1234, 0
      %v1284 = vsel %vm1253, %v1236, 0
      %v1286 = vsel %vm1253, %v1238, 0
      %v1288 = vsel %vm1253, %v1240, 0
      %vm1290 = vcmask 1045504
      %v1292 = vsel %vm1290, %v1252, 0
      %1294 = vmatprep.subr.bf16.mxu0 0
      %1295 = vmatpush1.bf16.msra.mxu0 0
      %1296 = vmatprep.subr.bf16.mxu0 0
      %1297 = vmatpush1.bf16.msra.mxu0 0
      %1298 = vmatprep.subr.bf16.mxu0 0
      %1299 = vmatpush1.bf16.msra.mxu0 0
      %1300 = vmatprep.subr.bf16.mxu0 0
      %1301 = vmatpush1.bf16.msra.mxu0 0
      %1302 = vmatprep.subr.bf16.mxu0 0
      %1303 = vmatpush1.bf16.msra.mxu0 0
      %1304 = vmatprep.subr.bf16.mxu0 0
      %1305 = vmatpush1.bf16.msra.mxu0 0
      %1306 = vmatprep.subr.bf16.mxu0 0
      %1307 = vmatpush1.bf16.msra.mxu0 0
      %1308 = vmatprep.subr.bf16.mxu0 0
      %1309 = vmatpush1.bf16.msra.mxu0 %v1292
      %1310 = vmatprep.subr.bf16.mxu0 0
      %1311 = vmatpush2.bf16.msra.mxu0 0
      %1312 = vmatprep.subr.bf16.mxu0 0
      %1313 = vmatpush2.bf16.msra.mxu0 0
      %1314 = vmatprep.subr.bf16.mxu0 0
      %1315 = vmatpush2.bf16.msra.mxu0 0
      %1316 = vmatprep.subr.bf16.mxu0 0
      %1317 = vmatpush2.bf16.msra.mxu0 0
      %1318 = vmatprep.subr.bf16.mxu0 0
      %1319 = vmatpush2.bf16.msra.mxu0 0
      %1320 = vmatprep.subr.bf16.mxu0 0
      %1321 = vmatpush2.bf16.msra.mxu0 0
      %1322 = vmatprep.subr.bf16.mxu0 0
      %1323 = vmatpush2.bf16.msra.mxu0 0
      %1324 = vmatprep.subr.bf16.mxu0 0
      %1325 = vmatpush2.bf16.msra.mxu0 0
      %1326 = vmatprep.mubr.bf16.mxu0 0
      %1327 = vmatmul.mubr.bf16.gmra.mxu0 %v1254
      %v1328 = vpop.f32.mrf.mxu0
      %v1329 = vadd.f32 0.0, %v1328
      %v1330 = vpop.f32.mrf.mxu0
      %v1331 = vpop.f32.mrf.mxu0
      %v1332 = vadd.f32 0.0, %v1331
      %v1333 = vpop.f32.mrf.mxu0
      %1334 = vmatprep.mubr.bf16.mxu0 0
      %1335 = vmatmul.mubr.bf16.gmra.mxu0 %v1256
      %v1336 = vpop.f32.mrf.mxu0
      %v1337 = vadd.f32 0.0, %v1336
      %v1338 = vpop.f32.mrf.mxu0
      %v1339 = vpop.f32.mrf.mxu0
      %v1340 = vadd.f32 0.0, %v1339
      %v1341 = vpop.f32.mrf.mxu0
      %1342 = vmatprep.mubr.bf16.mxu0 0
      %1343 = vmatmul.mubr.bf16.gmra.mxu0 %v1258
      %v1344 = vpop.f32.mrf.mxu0
      %v1345 = vadd.f32 0.0, %v1344
      %v1346 = vpop.f32.mrf.mxu0
      %v1347 = vpop.f32.mrf.mxu0
      %v1348 = vadd.f32 0.0, %v1347
      %v1349 = vpop.f32.mrf.mxu0
      %1350 = vmatprep.mubr.bf16.mxu0 0
      %1351 = vmatmul.mubr.bf16.gmra.mxu0 %v1260
      %v1352 = vpop.f32.mrf.mxu0
      %v1353 = vadd.f32 0.0, %v1352
      %v1354 = vpop.f32.mrf.mxu0
      %v1355 = vpop.f32.mrf.mxu0
      %v1356 = vadd.f32 0.0, %v1355
      %v1357 = vpop.f32.mrf.mxu0
      %1358 = vmatprep.mubr.bf16.mxu0 0
      %1359 = vmatmul.mubr.bf16.gmra.mxu0 %v1262
      %v1360 = vpop.f32.mrf.mxu0
      %v1361 = vadd.f32 0.0, %v1360
      %v1362 = vpop.f32.mrf.mxu0
      %v1363 = vpop.f32.mrf.mxu0
      %v1364 = vadd.f32 0.0, %v1363
      %v1365 = vpop.f32.mrf.mxu0
      %1366 = vmatprep.mubr.bf16.mxu0 0
      %1367 = vmatmul.mubr.bf16.gmra.mxu0 %v1264
      %v1368 = vpop.f32.mrf.mxu0
      %v1369 = vadd.f32 0.0, %v1368
      %v1370 = vpop.f32.mrf.mxu0
      %v1371 = vpop.f32.mrf.mxu0
      %v1372 = vadd.f32 0.0, %v1371
      %v1373 = vpop.f32.mrf.mxu0
      %1374 = vmatprep.mubr.bf16.mxu0 0
      %1375 = vmatmul.mubr.bf16.gmra.mxu0 %v1266
      %v1376 = vpop.f32.mrf.mxu0
      %v1377 = vadd.f32 0.0, %v1376
      %v1378 = vpop.f32.mrf.mxu0
      %v1379 = vpop.f32.mrf.mxu0
      %v1380 = vadd.f32 0.0, %v1379
      %v1381 = vpop.f32.mrf.mxu0
      %1382 = vmatprep.mubr.bf16.mxu0 0
      %1383 = vmatmul.mubr.bf16.gmra.mxu0 %v1268
      %v1384 = vpop.f32.mrf.mxu0
      %v1385 = vadd.f32 0.0, %v1384
      %v1386 = vpop.f32.mrf.mxu0
      %v1387 = vpop.f32.mrf.mxu0
      %v1388 = vadd.f32 0.0, %v1387
      %v1389 = vpop.f32.mrf.mxu0
      %1390 = vmatprep.mubr.bf16.mxu0 0
      %1391 = vmatmul.mubr.bf16.gmra.mxu0 %v1270
      %v1392 = vpop.f32.mrf.mxu0
      %v1393 = vadd.f32 0.0, %v1392
      %v1394 = vpop.f32.mrf.mxu0
      %v1395 = vpop.f32.mrf.mxu0
      %v1396 = vadd.f32 0.0, %v1395
      %v1397 = vpop.f32.mrf.mxu0
      %1398 = vmatprep.mubr.bf16.mxu0 0
      %1399 = vmatmul.mubr.bf16.gmra.mxu0 %v1272
      %v1400 = vpop.f32.mrf.mxu0
      %v1401 = vadd.f32 0.0, %v1400
      %v1402 = vpop.f32.mrf.mxu0
      %v1403 = vpop.f32.mrf.mxu0
      %v1404 = vadd.f32 0.0, %v1403
      %v1405 = vpop.f32.mrf.mxu0
      %1406 = vmatprep.mubr.bf16.mxu0 0
      %1407 = vmatmul.mubr.bf16.gmra.mxu0 %v1274
      %v1408 = vpop.f32.mrf.mxu0
      %v1409 = vadd.f32 0.0, %v1408
      %v1410 = vpop.f32.mrf.mxu0
      %v1411 = vpop.f32.mrf.mxu0
      %v1412 = vadd.f32 0.0, %v1411
      %v1413 = vpop.f32.mrf.mxu0
      %1414 = vmatprep.mubr.bf16.mxu0 0
      %1415 = vmatmul.mubr.bf16.gmra.mxu0 %v1276
      %v1416 = vpop.f32.mrf.mxu0
      %v1417 = vadd.f32 0.0, %v1416
      %v1418 = vpop.f32.mrf.mxu0
      %v1419 = vpop.f32.mrf.mxu0
      %v1420 = vadd.f32 0.0, %v1419
      %v1421 = vpop.f32.mrf.mxu0
      %1422 = vmatprep.mubr.bf16.mxu0 0
      %1423 = vmatmul.mubr.bf16.gmra.mxu0 %v1278
      %v1424 = vpop.f32.mrf.mxu0
      %v1425 = vadd.f32 0.0, %v1424
      %v1426 = vpop.f32.mrf.mxu0
      %v1427 = vpop.f32.mrf.mxu0
      %v1428 = vadd.f32 0.0, %v1427
      %v1429 = vpop.f32.mrf.mxu0
      %1430 = vmatprep.mubr.bf16.mxu0 0
      %1431 = vmatmul.mubr.bf16.gmra.mxu0 %v1280
      %v1432 = vpop.f32.mrf.mxu0
      %v1433 = vadd.f32 0.0, %v1432
      %v1434 = vpop.f32.mrf.mxu0
      %v1435 = vpop.f32.mrf.mxu0
      %v1436 = vadd.f32 0.0, %v1435
      %v1437 = vpop.f32.mrf.mxu0
      %1438 = vmatprep.mubr.bf16.mxu0 0
      %1439 = vmatmul.mubr.bf16.gmra.mxu0 %v1282
      %v1440 = vpop.f32.mrf.mxu0
      %v1441 = vadd.f32 0.0, %v1440
      %v1442 = vpop.f32.mrf.mxu0
      %v1443 = vpop.f32.mrf.mxu0
      %v1444 = vadd.f32 0.0, %v1443
      %v1445 = vpop.f32.mrf.mxu0
      %1446 = vmatprep.mubr.bf16.mxu0 0
      %1447 = vmatmul.mubr.bf16.gmra.mxu0 %v1284
      %v1448 = vpop.f32.mrf.mxu0
      %v1449 = vadd.f32 0.0, %v1448
      %v1450 = vpop.f32.mrf.mxu0
      %v1451 = vpop.f32.mrf.mxu0
      %v1452 = vadd.f32 0.0, %v1451
      %v1453 = vpop.f32.mrf.mxu0
      %1454 = vmatprep.mubr.bf16.mxu0 0
      %1455 = vmatmul.mubr.bf16.gmra.mxu0 %v1286
      %v1456 = vpop.f32.mrf.mxu0
      %v1457 = vadd.f32 0.0, %v1456
      %v1458 = vpop.f32.mrf.mxu0
      %v1459 = vpop.f32.mrf.mxu0
      %v1460 = vadd.f32 0.0, %v1459
      %v1461 = vpop.f32.mrf.mxu0
      %1462 = vmatprep.mubr.bf16.mxu0 0
      %1463 = vmatmul.mubr.bf16.gmra.mxu0 %v1288
      %v1464 = vpop.f32.mrf.mxu0
      %v1465 = vadd.f32 0.0, %v1464
      %v1466 = vpop.f32.mrf.mxu0
      %v1467 = vpop.f32.mrf.mxu0
      %v1468 = vadd.f32 0.0, %v1467
      %v1469 = vpop.f32.mrf.mxu0
      %1470 = vdwg.mxu0
      %v1473 = vunpack.c.l.b16 %v1243
      %v1474 = vunpack.c.l.b16 %v1244
      %v1475 = vpack.c.b16 %v1474, %v1473
      %v1476 = vsel %vm1253, %v1204, 0
      %v1479 = vsel %vm1290, %v1475, 0
      %1481 = vmatprep.subr.bf16.mxu0 0
      %1482 = vmatpush1.bf16.msra.mxu0 0
      %1483 = vmatprep.subr.bf16.mxu0 0
      %1484 = vmatpush1.bf16.msra.mxu0 0
      %1485 = vmatprep.subr.bf16.mxu0 0
      %1486 = vmatpush1.bf16.msra.mxu0 0
      %1487 = vmatprep.subr.bf16.mxu0 0
      %1488 = vmatpush1.bf16.msra.mxu0 0
      %1489 = vmatprep.subr.bf16.mxu0 0
      %1490 = vmatpush1.bf16.msra.mxu0 0
      %1491 = vmatprep.subr.bf16.mxu0 0
      %1492 = vmatpush1.bf16.msra.mxu0 0
      %1493 = vmatprep.subr.bf16.mxu0 0
      %1494 = vmatpush1.bf16.msra.mxu0 0
      %1495 = vmatprep.subr.bf16.mxu0 0
      %1496 = vmatpush1.bf16.msra.mxu0 %v1479
      %1497 = vmatprep.subr.bf16.mxu0 0
      %1498 = vmatpush2.bf16.msra.mxu0 0
      %1499 = vmatprep.subr.bf16.mxu0 0
      %1500 = vmatpush2.bf16.msra.mxu0 0
      %1501 = vmatprep.subr.bf16.mxu0 0
      %1502 = vmatpush2.bf16.msra.mxu0 0
      %1503 = vmatprep.subr.bf16.mxu0 0
      %1504 = vmatpush2.bf16.msra.mxu0 0
      %1505 = vmatprep.subr.bf16.mxu0 0
      %1506 = vmatpush2.bf16.msra.mxu0 0
      %1507 = vmatprep.subr.bf16.mxu0 0
      %1508 = vmatpush2.bf16.msra.mxu0 0
      %1509 = vmatprep.subr.bf16.mxu0 0
      %1510 = vmatpush2.bf16.msra.mxu0 0
      %1511 = vmatprep.subr.bf16.mxu0 0
      %1512 = vmatpush2.bf16.msra.mxu0 0
      %1513 = vmatprep.mubr.bf16.mxu0 0
      %1514 = vmatmul.mubr.bf16.gmra.mxu0 %v1476
      %v1515 = vpop.f32.mrf.mxu0
      %v1516 = vadd.f32 %v1329, %v1515
      %v1517 = vpop.f32.mrf.mxu0
      %v1518 = vpop.f32.mrf.mxu0
      %v1519 = vadd.f32 %v1332, %v1518
      %v1520 = vpop.f32.mrf.mxu0
      %1521 = vmatprep.mubr.bf16.mxu0 0
      %1522 = vmatmul.mubr.bf16.gmra.mxu0 %v1254
      %v1523 = vpop.f32.mrf.mxu0
      %v1524 = vadd.f32 %v1337, %v1523
      %v1525 = vpop.f32.mrf.mxu0
      %v1526 = vpop.f32.mrf.mxu0
      %v1527 = vadd.f32 %v1340, %v1526
      %v1528 = vpop.f32.mrf.mxu0
      %1529 = vmatprep.mubr.bf16.mxu0 0
      %1530 = vmatmul.mubr.bf16.gmra.mxu0 %v1256
      %v1531 = vpop.f32.mrf.mxu0
      %v1532 = vadd.f32 %v1345, %v1531
      %v1533 = vpop.f32.mrf.mxu0
      %v1534 = vpop.f32.mrf.mxu0
      %v1535 = vadd.f32 %v1348, %v1534
      %v1536 = vpop.f32.mrf.mxu0
      %1537 = vmatprep.mubr.bf16.mxu0 0
      %1538 = vmatmul.mubr.bf16.gmra.mxu0 %v1258
      %v1539 = vpop.f32.mrf.mxu0
      %v1540 = vadd.f32 %v1353, %v1539
      %v1541 = vpop.f32.mrf.mxu0
      %v1542 = vpop.f32.mrf.mxu0
      %v1543 = vadd.f32 %v1356, %v1542
      %v1544 = vpop.f32.mrf.mxu0
      %1545 = vmatprep.mubr.bf16.mxu0 0
      %1546 = vmatmul.mubr.bf16.gmra.mxu0 %v1260
      %v1547 = vpop.f32.mrf.mxu0
      %v1548 = vadd.f32 %v1361, %v1547
      %v1549 = vpop.f32.mrf.mxu0
      %v1550 = vpop.f32.mrf.mxu0
      %v1551 = vadd.f32 %v1364, %v1550
      %v1552 = vpop.f32.mrf.mxu0
      %1553 = vmatprep.mubr.bf16.mxu0 0
      %1554 = vmatmul.mubr.bf16.gmra.mxu0 %v1262
      %v1555 = vpop.f32.mrf.mxu0
      %v1556 = vadd.f32 %v1369, %v1555
      %v1557 = vpop.f32.mrf.mxu0
      %v1558 = vpop.f32.mrf.mxu0
      %v1559 = vadd.f32 %v1372, %v1558
      %v1560 = vpop.f32.mrf.mxu0
      %1561 = vmatprep.mubr.bf16.mxu0 0
      %1562 = vmatmul.mubr.bf16.gmra.mxu0 %v1264
      %v1563 = vpop.f32.mrf.mxu0
      %v1564 = vadd.f32 %v1377, %v1563
      %v1565 = vpop.f32.mrf.mxu0
      %v1566 = vpop.f32.mrf.mxu0
      %v1567 = vadd.f32 %v1380, %v1566
      %v1568 = vpop.f32.mrf.mxu0
      %1569 = vmatprep.mubr.bf16.mxu0 0
      %1570 = vmatmul.mubr.bf16.gmra.mxu0 %v1266
      %v1571 = vpop.f32.mrf.mxu0
      %v1572 = vadd.f32 %v1385, %v1571
      %v1573 = vpop.f32.mrf.mxu0
      %v1574 = vpop.f32.mrf.mxu0
      %v1575 = vadd.f32 %v1388, %v1574
      %v1576 = vpop.f32.mrf.mxu0
      %1577 = vmatprep.mubr.bf16.mxu0 0
      %1578 = vmatmul.mubr.bf16.gmra.mxu0 %v1268
      %v1579 = vpop.f32.mrf.mxu0
      %v1580 = vadd.f32 %v1393, %v1579
      %v1581 = vpop.f32.mrf.mxu0
      %v1582 = vpop.f32.mrf.mxu0
      %v1583 = vadd.f32 %v1396, %v1582
      %v1584 = vpop.f32.mrf.mxu0
      %1585 = vmatprep.mubr.bf16.mxu0 0
      %1586 = vmatmul.mubr.bf16.gmra.mxu0 %v1270
      %v1587 = vpop.f32.mrf.mxu0
      %v1588 = vadd.f32 %v1401, %v1587
      %v1589 = vpop.f32.mrf.mxu0
      %v1590 = vpop.f32.mrf.mxu0
      %v1591 = vadd.f32 %v1404, %v1590
      %v1592 = vpop.f32.mrf.mxu0
      %1593 = vmatprep.mubr.bf16.mxu0 0
      %1594 = vmatmul.mubr.bf16.gmra.mxu0 %v1272
      %v1595 = vpop.f32.mrf.mxu0
      %v1596 = vadd.f32 %v1409, %v1595
      %v1597 = vpop.f32.mrf.mxu0
      %v1598 = vpop.f32.mrf.mxu0
      %v1599 = vadd.f32 %v1412, %v1598
      %v1600 = vpop.f32.mrf.mxu0
      %1601 = vmatprep.mubr.bf16.mxu0 0
      %1602 = vmatmul.mubr.bf16.gmra.mxu0 %v1274
      %v1603 = vpop.f32.mrf.mxu0
      %v1604 = vadd.f32 %v1417, %v1603
      %v1605 = vpop.f32.mrf.mxu0
      %v1606 = vpop.f32.mrf.mxu0
      %v1607 = vadd.f32 %v1420, %v1606
      %v1608 = vpop.f32.mrf.mxu0
      %1609 = vmatprep.mubr.bf16.mxu0 0
      %1610 = vmatmul.mubr.bf16.gmra.mxu0 %v1276
      %v1611 = vpop.f32.mrf.mxu0
      %v1612 = vadd.f32 %v1425, %v1611
      %v1613 = vpop.f32.mrf.mxu0
      %v1614 = vpop.f32.mrf.mxu0
      %v1615 = vadd.f32 %v1428, %v1614
      %v1616 = vpop.f32.mrf.mxu0
      %1617 = vmatprep.mubr.bf16.mxu0 0
      %1618 = vmatmul.mubr.bf16.gmra.mxu0 %v1278
      %v1619 = vpop.f32.mrf.mxu0
      %v1620 = vadd.f32 %v1433, %v1619
      %v1621 = vpop.f32.mrf.mxu0
      %v1622 = vpop.f32.mrf.mxu0
      %v1623 = vadd.f32 %v1436, %v1622
      %v1624 = vpop.f32.mrf.mxu0
      %1625 = vmatprep.mubr.bf16.mxu0 0
      %1626 = vmatmul.mubr.bf16.gmra.mxu0 %v1280
      %v1627 = vpop.f32.mrf.mxu0
      %v1628 = vadd.f32 %v1441, %v1627
      %v1629 = vpop.f32.mrf.mxu0
      %v1630 = vpop.f32.mrf.mxu0
      %v1631 = vadd.f32 %v1444, %v1630
      %v1632 = vpop.f32.mrf.mxu0
      %1633 = vmatprep.mubr.bf16.mxu0 0
      %1634 = vmatmul.mubr.bf16.gmra.mxu0 %v1282
      %v1635 = vpop.f32.mrf.mxu0
      %v1636 = vadd.f32 %v1449, %v1635
      %v1637 = vpop.f32.mrf.mxu0
      %v1638 = vpop.f32.mrf.mxu0
      %v1639 = vadd.f32 %v1452, %v1638
      %v1640 = vpop.f32.mrf.mxu0
      %1641 = vmatprep.mubr.bf16.mxu0 0
      %1642 = vmatmul.mubr.bf16.gmra.mxu0 %v1284
      %v1643 = vpop.f32.mrf.mxu0
      %v1644 = vadd.f32 %v1457, %v1643
      %v1645 = vpop.f32.mrf.mxu0
      %v1646 = vpop.f32.mrf.mxu0
      %v1647 = vadd.f32 %v1460, %v1646
      %v1648 = vpop.f32.mrf.mxu0
      %1649 = vmatprep.mubr.bf16.mxu0 0
      %1650 = vmatmul.mubr.bf16.gmra.mxu0 %v1286
      %v1651 = vpop.f32.mrf.mxu0
      %v1652 = vadd.f32 %v1465, %v1651
      %v1653 = vpop.f32.mrf.mxu0
      %v1654 = vpop.f32.mrf.mxu0
      %v1655 = vadd.f32 %v1468, %v1654
      %v1656 = vpop.f32.mrf.mxu0
      %1657 = vdwg.mxu0
      %s1658 = scalar_lea.vmem %s3, 16
      %v1659 = vld [vmem:[%s1658] sm:$0xf]
      %v1660 = vld [vmem:[%s1658 + $0x4] sm:$0x3]
      %v1663 = vunpack.c.l.b16 %v1659
      %v1664 = vunpack.c.l.b16 %v1660
      %v1665 = vpack.c.b16 %v1664, %v1663
      %v1666 = vsel %vm1253, %v1242, 0
      %v1669 = vsel %vm1290, %v1665, 0
      %1671 = vmatprep.subr.bf16.mxu0 0
      %1672 = vmatpush1.bf16.msra.mxu0 0
      %1673 = vmatprep.subr.bf16.mxu0 0
      %1674 = vmatpush1.bf16.msra.mxu0 0
      %1675 = vmatprep.subr.bf16.mxu0 0
      %1676 = vmatpush1.bf16.msra.mxu0 0
      %1677 = vmatprep.subr.bf16.mxu0 0
      %1678 = vmatpush1.bf16.msra.mxu0 0
      %1679 = vmatprep.subr.bf16.mxu0 0
      %1680 = vmatpush1.bf16.msra.mxu0 0
      %1681 = vmatprep.subr.bf16.mxu0 0
      %1682 = vmatpush1.bf16.msra.mxu0 0
      %1683 = vmatprep.subr.bf16.mxu0 0
      %1684 = vmatpush1.bf16.msra.mxu0 0
      %1685 = vmatprep.subr.bf16.mxu0 0
      %1686 = vmatpush1.bf16.msra.mxu0 %v1669
      %1687 = vmatprep.subr.bf16.mxu0 0
      %1688 = vmatpush2.bf16.msra.mxu0 0
      %1689 = vmatprep.subr.bf16.mxu0 0
      %1690 = vmatpush2.bf16.msra.mxu0 0
      %1691 = vmatprep.subr.bf16.mxu0 0
      %1692 = vmatpush2.bf16.msra.mxu0 0
      %1693 = vmatprep.subr.bf16.mxu0 0
      %1694 = vmatpush2.bf16.msra.mxu0 0
      %1695 = vmatprep.subr.bf16.mxu0 0
      %1696 = vmatpush2.bf16.msra.mxu0 0
      %1697 = vmatprep.subr.bf16.mxu0 0
      %1698 = vmatpush2.bf16.msra.mxu0 0
      %1699 = vmatprep.subr.bf16.mxu0 0
      %1700 = vmatpush2.bf16.msra.mxu0 0
      %1701 = vmatprep.subr.bf16.mxu0 0
      %1702 = vmatpush2.bf16.msra.mxu0 0
      %1703 = vmatprep.mubr.bf16.mxu0 0
      %1704 = vmatmul.mubr.bf16.gmra.mxu0 %v1256
      %v1705 = vpop.f32.mrf.mxu0
      %v1706 = vadd.f32 0.0, %v1705
      %v1707 = vpop.f32.mrf.mxu0
      %v1708 = vpop.f32.mrf.mxu0
      %v1709 = vadd.f32 0.0, %v1708
      %v1710 = vpop.f32.mrf.mxu0
      %1711 = vmatprep.mubr.bf16.mxu0 0
      %1712 = vmatmul.mubr.bf16.gmra.mxu0 %v1258
      %v1713 = vpop.f32.mrf.mxu0
      %v1714 = vadd.f32 0.0, %v1713
      %v1715 = vpop.f32.mrf.mxu0
      %v1716 = vpop.f32.mrf.mxu0
      %v1717 = vadd.f32 0.0, %v1716
      %v1718 = vpop.f32.mrf.mxu0
      %1719 = vmatprep.mubr.bf16.mxu0 0
      %1720 = vmatmul.mubr.bf16.gmra.mxu0 %v1260
      %v1721 = vpop.f32.mrf.mxu0
      %v1722 = vadd.f32 0.0, %v1721
      %v1723 = vpop.f32.mrf.mxu0
      %v1724 = vpop.f32.mrf.mxu0
      %v1725 = vadd.f32 0.0, %v1724
      %v1726 = vpop.f32.mrf.mxu0
      %1727 = vmatprep.mubr.bf16.mxu0 0
      %1728 = vmatmul.mubr.bf16.gmra.mxu0 %v1262
      %v1729 = vpop.f32.mrf.mxu0
      %v1730 = vadd.f32 0.0, %v1729
      %v1731 = vpop.f32.mrf.mxu0
      %v1732 = vpop.f32.mrf.mxu0
      %v1733 = vadd.f32 0.0, %v1732
      %v1734 = vpop.f32.mrf.mxu0
      %1735 = vmatprep.mubr.bf16.mxu0 0
      %1736 = vmatmul.mubr.bf16.gmra.mxu0 %v1264
      %v1737 = vpop.f32.mrf.mxu0
      %v1738 = vadd.f32 0.0, %v1737
      %v1739 = vpop.f32.mrf.mxu0
      %v1740 = vpop.f32.mrf.mxu0
      %v1741 = vadd.f32 0.0, %v1740
      %v1742 = vpop.f32.mrf.mxu0
      %1743 = vmatprep.mubr.bf16.mxu0 0
      %1744 = vmatmul.mubr.bf16.gmra.mxu0 %v1266
      %v1745 = vpop.f32.mrf.mxu0
      %v1746 = vadd.f32 0.0, %v1745
      %v1747 = vpop.f32.mrf.mxu0
      %v1748 = vpop.f32.mrf.mxu0
      %v1749 = vadd.f32 0.0, %v1748
      %v1750 = vpop.f32.mrf.mxu0
      %1751 = vmatprep.mubr.bf16.mxu0 0
      %1752 = vmatmul.mubr.bf16.gmra.mxu0 %v1268
      %v1753 = vpop.f32.mrf.mxu0
      %v1754 = vadd.f32 0.0, %v1753
      %v1755 = vpop.f32.mrf.mxu0
      %v1756 = vpop.f32.mrf.mxu0
      %v1757 = vadd.f32 0.0, %v1756
      %v1758 = vpop.f32.mrf.mxu0
      %1759 = vmatprep.mubr.bf16.mxu0 0
      %1760 = vmatmul.mubr.bf16.gmra.mxu0 %v1270
      %v1761 = vpop.f32.mrf.mxu0
      %v1762 = vadd.f32 0.0, %v1761
      %v1763 = vpop.f32.mrf.mxu0
      %v1764 = vpop.f32.mrf.mxu0
      %v1765 = vadd.f32 0.0, %v1764
      %v1766 = vpop.f32.mrf.mxu0
      %1767 = vmatprep.mubr.bf16.mxu0 0
      %1768 = vmatmul.mubr.bf16.gmra.mxu0 %v1272
      %v1769 = vpop.f32.mrf.mxu0
      %v1770 = vadd.f32 0.0, %v1769
      %v1771 = vpop.f32.mrf.mxu0
      %v1772 = vpop.f32.mrf.mxu0
      %v1773 = vadd.f32 0.0, %v1772
      %v1774 = vpop.f32.mrf.mxu0
      %1775 = vmatprep.mubr.bf16.mxu0 0
      %1776 = vmatmul.mubr.bf16.gmra.mxu0 %v1274
      %v1777 = vpop.f32.mrf.mxu0
      %v1778 = vadd.f32 0.0, %v1777
      %v1779 = vpop.f32.mrf.mxu0
      %v1780 = vpop.f32.mrf.mxu0
      %v1781 = vadd.f32 0.0, %v1780
      %v1782 = vpop.f32.mrf.mxu0
      %1783 = vmatprep.mubr.bf16.mxu0 0
      %1784 = vmatmul.mubr.bf16.gmra.mxu0 %v1276
      %v1785 = vpop.f32.mrf.mxu0
      %v1786 = vadd.f32 0.0, %v1785
      %v1787 = vpop.f32.mrf.mxu0
      %v1788 = vpop.f32.mrf.mxu0
      %v1789 = vadd.f32 0.0, %v1788
      %v1790 = vpop.f32.mrf.mxu0
      %1791 = vmatprep.mubr.bf16.mxu0 0
      %1792 = vmatmul.mubr.bf16.gmra.mxu0 %v1278
      %v1793 = vpop.f32.mrf.mxu0
      %v1794 = vadd.f32 0.0, %v1793
      %v1795 = vpop.f32.mrf.mxu0
      %v1796 = vpop.f32.mrf.mxu0
      %v1797 = vadd.f32 0.0, %v1796
      %v1798 = vpop.f32.mrf.mxu0
      %1799 = vmatprep.mubr.bf16.mxu0 0
      %1800 = vmatmul.mubr.bf16.gmra.mxu0 %v1280
      %v1801 = vpop.f32.mrf.mxu0
      %v1802 = vadd.f32 0.0, %v1801
      %v1803 = vpop.f32.mrf.mxu0
      %v1804 = vpop.f32.mrf.mxu0
      %v1805 = vadd.f32 0.0, %v1804
      %v1806 = vpop.f32.mrf.mxu0
      %1807 = vmatprep.mubr.bf16.mxu0 0
      %1808 = vmatmul.mubr.bf16.gmra.mxu0 %v1282
      %v1809 = vpop.f32.mrf.mxu0
      %v1810 = vadd.f32 0.0, %v1809
      %v1811 = vpop.f32.mrf.mxu0
      %v1812 = vpop.f32.mrf.mxu0
      %v1813 = vadd.f32 0.0, %v1812
      %v1814 = vpop.f32.mrf.mxu0
      %1815 = vmatprep.mubr.bf16.mxu0 0
      %1816 = vmatmul.mubr.bf16.gmra.mxu0 %v1284
      %v1817 = vpop.f32.mrf.mxu0
      %v1818 = vadd.f32 0.0, %v1817
      %v1819 = vpop.f32.mrf.mxu0
      %v1820 = vpop.f32.mrf.mxu0
      %v1821 = vadd.f32 0.0, %v1820
      %v1822 = vpop.f32.mrf.mxu0
      %1823 = vmatprep.mubr.bf16.mxu0 0
      %1824 = vmatmul.mubr.bf16.gmra.mxu0 %v1286
      %v1825 = vpop.f32.mrf.mxu0
      %v1826 = vadd.f32 0.0, %v1825
      %v1827 = vpop.f32.mrf.mxu0
      %v1828 = vpop.f32.mrf.mxu0
      %v1829 = vadd.f32 0.0, %v1828
      %v1830 = vpop.f32.mrf.mxu0
      %1831 = vmatprep.mubr.bf16.mxu0 0
      %1832 = vmatmul.mubr.bf16.gmra.mxu0 %v1288
      %v1833 = vpop.f32.mrf.mxu0
      %v1834 = vadd.f32 0.0, %v1833
      %v1835 = vpop.f32.mrf.mxu0
      %v1836 = vpop.f32.mrf.mxu0
      %v1837 = vadd.f32 0.0, %v1836
      %v1838 = vpop.f32.mrf.mxu0
      %1839 = vmatprep.mubr.bf16.mxu0 0
      %1840 = vmatmul.mubr.bf16.gmra.mxu0 %v1666
      %v1841 = vpop.f32.mrf.mxu0
      %v1842 = vadd.f32 0.0, %v1841
      %v1843 = vpop.f32.mrf.mxu0
      %v1844 = vpop.f32.mrf.mxu0
      %v1845 = vadd.f32 0.0, %v1844
      %v1846 = vpop.f32.mrf.mxu0
      %1847 = vdwg.mxu0
      %v1848 = vadd.f32 %v1516, %v1706
      %v1849 = vadd.f32 %v1519, %v1709
      %v1850 = vadd.f32 %v1524, %v1714
      %v1851 = vadd.f32 %v1527, %v1717
      %v1852 = vadd.f32 %v1532, %v1722
      %v1853 = vadd.f32 %v1535, %v1725
      %v1854 = vadd.f32 %v1540, %v1730
      %v1855 = vadd.f32 %v1543, %v1733
      %v1856 = vadd.f32 %v1548, %v1738
      %v1857 = vadd.f32 %v1551, %v1741
      %v1858 = vadd.f32 %v1556, %v1746
      %v1859 = vadd.f32 %v1559, %v1749
      %v1860 = vadd.f32 %v1564, %v1754
      %v1861 = vadd.f32 %v1567, %v1757
      %v1862 = vadd.f32 %v1572, %v1762
      %v1863 = vadd.f32 %v1575, %v1765
      %v1864 = vadd.f32 %v1580, %v1770
      %v1865 = vadd.f32 %v1583, %v1773
      %v1866 = vadd.f32 %v1588, %v1778
      %v1867 = vadd.f32 %v1591, %v1781
      %v1868 = vadd.f32 %v1596, %v1786
      %v1869 = vadd.f32 %v1599, %v1789
      %v1870 = vadd.f32 %v1604, %v1794
      %v1871 = vadd.f32 %v1607, %v1797
      %v1872 = vadd.f32 %v1612, %v1802
      %v1873 = vadd.f32 %v1615, %v1805
      %v1874 = vadd.f32 %v1620, %v1810
      %v1875 = vadd.f32 %v1623, %v1813
      %v1876 = vadd.f32 %v1628, %v1818
      %v1877 = vadd.f32 %v1631, %v1821
      %v1878 = vadd.f32 %v1636, %v1826
      %v1879 = vadd.f32 %v1639, %v1829
      %v1880 = vadd.f32 %v1644, %v1834
      %v1881 = vadd.f32 %v1647, %v1837
      %v1882 = vadd.f32 %v1652, %v1842
      %v1883 = vadd.f32 %v1655, %v1845
      %v1884 = vld [vmem:[%s4] sm:$0x1]
      %v1886 = vlaneseq
      %v1887 = vshrl.u32 %v1886, 7
      %v1888 = vsub.s32 0, %v1887
      %v1889 = vrot.slane %v1884, %v1888
      %v1891 = vadd.f32 %v1848, %v1889
      %v1892 = vadd.f32 %v1849, %v1889
      %v1893 = vadd.f32 %v1850, %v1889
      %v1894 = vadd.f32 %v1851, %v1889
      %v1895 = vadd.f32 %v1852, %v1889
      %v1896 = vadd.f32 %v1853, %v1889
      %v1897 = vadd.f32 %v1854, %v1889
      %v1898 = vadd.f32 %v1855, %v1889
      %v1899 = vadd.f32 %v1856, %v1889
      %v1900 = vadd.f32 %v1857, %v1889
      %v1901 = vadd.f32 %v1858, %v1889
      %v1902 = vadd.f32 %v1859, %v1889
      %v1903 = vadd.f32 %v1860, %v1889
      %v1904 = vadd.f32 %v1861, %v1889
      %v1905 = vadd.f32 %v1862, %v1889
      %v1906 = vadd.f32 %v1863, %v1889
      %v1907 = vadd.f32 %v1864, %v1889
      %v1908 = vadd.f32 %v1865, %v1889
      %v1909 = vadd.f32 %v1866, %v1889
      %v1910 = vadd.f32 %v1867, %v1889
      %v1911 = vadd.f32 %v1868, %v1889
      %v1912 = vadd.f32 %v1869, %v1889
      %v1913 = vadd.f32 %v1870, %v1889
      %v1914 = vadd.f32 %v1871, %v1889
      %v1915 = vadd.f32 %v1872, %v1889
      %v1916 = vadd.f32 %v1873, %v1889
      %v1917 = vadd.f32 %v1874, %v1889
      %v1918 = vadd.f32 %v1875, %v1889
      %v1919 = vadd.f32 %v1876, %v1889
      %v1920 = vadd.f32 %v1877, %v1889
      %v1921 = vadd.f32 %v1878, %v1889
      %v1922 = vadd.f32 %v1879, %v1889
      %v1923 = vadd.f32 %v1880, %v1889
      %v1924 = vadd.f32 %v1881, %v1889
      %v1925 = vadd.f32 %v1882, %v1889
      %v1926 = vadd.f32 %v1883, %v1889
      %v1927 = vmin.f32 %v1891, 20.0
      %v1928 = vmin.f32 %v1892, 20.0
      %v1929 = vmin.f32 %v1893, 20.0
      %v1930 = vmin.f32 %v1894, 20.0
      %v1931 = vmin.f32 %v1895, 20.0
      %v1932 = vmin.f32 %v1896, 20.0
      %v1933 = vmin.f32 %v1897, 20.0
      %v1934 = vmin.f32 %v1898, 20.0
      %v1935 = vmin.f32 %v1899, 20.0
      %v1936 = vmin.f32 %v1900, 20.0
      %v1937 = vmin.f32 %v1901, 20.0
      %v1938 = vmin.f32 %v1902, 20.0
      %v1939 = vmin.f32 %v1903, 20.0
      %v1940 = vmin.f32 %v1904, 20.0
      %v1941 = vmin.f32 %v1905, 20.0
      %v1942 = vmin.f32 %v1906, 20.0
      %v1943 = vmin.f32 %v1907, 20.0
      %v1944 = vmin.f32 %v1908, 20.0
      %v1945 = vmin.f32 %v1909, 20.0
      %v1946 = vmin.f32 %v1910, 20.0
      %v1947 = vmin.f32 %v1911, 20.0
      %v1948 = vmin.f32 %v1912, 20.0
      %v1949 = vmin.f32 %v1913, 20.0
      %v1950 = vmin.f32 %v1914, 20.0
      %v1951 = vmin.f32 %v1915, 20.0
      %v1952 = vmin.f32 %v1916, 20.0
      %v1953 = vmin.f32 %v1917, 20.0
      %v1954 = vmin.f32 %v1918, 20.0
      %v1955 = vmin.f32 %v1919, 20.0
      %v1956 = vmin.f32 %v1920, 20.0
      %v1957 = vmin.f32 %v1921, 20.0
      %v1958 = vmin.f32 %v1922, 20.0
      %v1959 = vmin.f32 %v1923, 20.0
      %v1960 = vmin.f32 %v1924, 20.0
      %v1961 = vmin.f32 %v1925, 20.0
      %v1962 = vmin.f32 %v1926, 20.0
      %v1963 = vmul.f32 %v1927, 1.442695
      %v1964 = vpow.pop %v1963
      %v1965 = vmul.f32 %v1928, 1.442695
      %v1966 = vpow.pop %v1965
      %v1967 = vmul.f32 %v1929, 1.442695
      %v1968 = vpow.pop %v1967
      %v1969 = vmul.f32 %v1930, 1.442695
      %v1970 = vpow.pop %v1969
      %v1971 = vmul.f32 %v1931, 1.442695
      %v1972 = vpow.pop %v1971
      %v1973 = vmul.f32 %v1932, 1.442695
      %v1974 = vpow.pop %v1973
      %v1975 = vmul.f32 %v1933, 1.442695
      %v1976 = vpow.pop %v1975
      %v1977 = vmul.f32 %v1934, 1.442695
      %v1978 = vpow.pop %v1977
      %v1979 = vmul.f32 %v1935, 1.442695
      %v1980 = vpow.pop %v1979
      %v1981 = vmul.f32 %v1936, 1.442695
      %v1982 = vpow.pop %v1981
      %v1983 = vmul.f32 %v1937, 1.442695
      %v1984 = vpow.pop %v1983
      %v1985 = vmul.f32 %v1938, 1.442695
      %v1986 = vpow.pop %v1985
      %v1987 = vmul.f32 %v1939, 1.442695
      %v1988 = vpow.pop %v1987
      %v1989 = vmul.f32 %v1940, 1.442695
      %v1990 = vpow.pop %v1989
      %v1991 = vmul.f32 %v1941, 1.442695
      %v1992 = vpow.pop %v1991
      %v1993 = vmul.f32 %v1942, 1.442695
      %v1994 = vpow.pop %v1993
      %v1995 = vmul.f32 %v1943, 1.442695
      %v1996 = vpow.pop %v1995
      %v1997 = vmul.f32 %v1944, 1.442695
      %v1998 = vpow.pop %v1997
      %v1999 = vmul.f32 %v1945, 1.442695
      %v2000 = vpow.pop %v1999
      %v2001 = vmul.f32 %v1946, 1.442695
      %v2002 = vpow.pop %v2001
      %v2003 = vmul.f32 %v1947, 1.442695
      %v2004 = vpow.pop %v2003
      %v2005 = vmul.f32 %v1948, 1.442695
      %v2006 = vpow.pop %v2005
      %v2007 = vmul.f32 %v1949, 1.442695
      %v2008 = vpow.pop %v2007
      %v2009 = vmul.f32 %v1950, 1.442695
      %v2010 = vpow.pop %v2009
      %v2011 = vmul.f32 %v1951, 1.442695
      %v2012 = vpow.pop %v2011
      %v2013 = vmul.f32 %v1952, 1.442695
      %v2014 = vpow.pop %v2013
      %v2015 = vmul.f32 %v1953, 1.442695
      %v2016 = vpow.pop %v2015
      %v2017 = vmul.f32 %v1954, 1.442695
      %v2018 = vpow.pop %v2017
      %v2019 = vmul.f32 %v1955, 1.442695
      %v2020 = vpow.pop %v2019
      %v2021 = vmul.f32 %v1956, 1.442695
      %v2022 = vpow.pop %v2021
      %v2023 = vmul.f32 %v1957, 1.442695
      %v2024 = vpow.pop %v2023
      %v2025 = vmul.f32 %v1958, 1.442695
      %v2026 = vpow.pop %v2025
      %v2027 = vmul.f32 %v1959, 1.442695
      %v2028 = vpow.pop %v2027
      %v2029 = vmul.f32 %v1960, 1.442695
      %v2030 = vpow.pop %v2029
      %v2031 = vmul.f32 %v1961, 1.442695
      %v2032 = vpow.pop %v2031
      %v2033 = vmul.f32 %v1962, 1.442695
      %v2034 = vpow.pop %v2033
      %v2035 = vadd.f32 %v1964, 1.0
      %v2036 = vadd.f32 %v1966, 1.0
      %v2037 = vadd.f32 %v1968, 1.0
      %v2038 = vadd.f32 %v1970, 1.0
      %v2039 = vadd.f32 %v1972, 1.0
      %v2040 = vadd.f32 %v1974, 1.0
      %v2041 = vadd.f32 %v1976, 1.0
      %v2042 = vadd.f32 %v1978, 1.0
      %v2043 = vadd.f32 %v1980, 1.0
      %v2044 = vadd.f32 %v1982, 1.0
      %v2045 = vadd.f32 %v1984, 1.0
      %v2046 = vadd.f32 %v1986, 1.0
      %v2047 = vadd.f32 %v1988, 1.0
      %v2048 = vadd.f32 %v1990, 1.0
      %v2049 = vadd.f32 %v1992, 1.0
      %v2050 = vadd.f32 %v1994, 1.0
      %v2051 = vadd.f32 %v1996, 1.0
      %v2052 = vadd.f32 %v1998, 1.0
      %v2053 = vadd.f32 %v2000, 1.0
      %v2054 = vadd.f32 %v2002, 1.0
      %v2055 = vadd.f32 %v2004, 1.0
      %v2056 = vadd.f32 %v2006, 1.0
      %v2057 = vadd.f32 %v2008, 1.0
      %v2058 = vadd.f32 %v2010, 1.0
      %v2059 = vadd.f32 %v2012, 1.0
      %v2060 = vadd.f32 %v2014, 1.0
      %v2061 = vadd.f32 %v2016, 1.0
      %v2062 = vadd.f32 %v2018, 1.0
      %v2063 = vadd.f32 %v2020, 1.0
      %v2064 = vadd.f32 %v2022, 1.0
      %v2065 = vadd.f32 %v2024, 1.0
      %v2066 = vadd.f32 %v2026, 1.0
      %v2067 = vadd.f32 %v2028, 1.0
      %v2068 = vadd.f32 %v2030, 1.0
      %v2069 = vadd.f32 %v2032, 1.0
      %v2070 = vadd.f32 %v2034, 1.0
      %v2071 = vmul.f32 %v2035, %v2035
      %v2072 = vmul.f32 %v2036, %v2036
      %v2073 = vmul.f32 %v2037, %v2037
      %v2074 = vmul.f32 %v2038, %v2038
      %v2075 = vmul.f32 %v2039, %v2039
      %v2076 = vmul.f32 %v2040, %v2040
      %v2077 = vmul.f32 %v2041, %v2041
      %v2078 = vmul.f32 %v2042, %v2042
      %v2079 = vmul.f32 %v2043, %v2043
      %v2080 = vmul.f32 %v2044, %v2044
      %v2081 = vmul.f32 %v2045, %v2045
      %v2082 = vmul.f32 %v2046, %v2046
      %v2083 = vmul.f32 %v2047, %v2047
      %v2084 = vmul.f32 %v2048, %v2048
      %v2085 = vmul.f32 %v2049, %v2049
      %v2086 = vmul.f32 %v2050, %v2050
      %v2087 = vmul.f32 %v2051, %v2051
      %v2088 = vmul.f32 %v2052, %v2052
      %v2089 = vmul.f32 %v2053, %v2053
      %v2090 = vmul.f32 %v2054, %v2054
      %v2091 = vmul.f32 %v2055, %v2055
      %v2092 = vmul.f32 %v2056, %v2056
      %v2093 = vmul.f32 %v2057, %v2057
      %v2094 = vmul.f32 %v2058, %v2058
      %v2095 = vmul.f32 %v2059, %v2059
      %v2096 = vmul.f32 %v2060, %v2060
      %v2097 = vmul.f32 %v2061, %v2061
      %v2098 = vmul.f32 %v2062, %v2062
      %v2099 = vmul.f32 %v2063, %v2063
      %v2100 = vmul.f32 %v2064, %v2064
      %v2101 = vmul.f32 %v2065, %v2065
      %v2102 = vmul.f32 %v2066, %v2066
      %v2103 = vmul.f32 %v2067, %v2067
      %v2104 = vmul.f32 %v2068, %v2068
      %v2105 = vmul.f32 %v2069, %v2069
      %v2106 = vmul.f32 %v2070, %v2070
      %v2107 = vsub.f32 %v2071, 1.0
      %v2108 = vsub.f32 %v2072, 1.0
      %v2109 = vsub.f32 %v2073, 1.0
      %v2110 = vsub.f32 %v2074, 1.0
      %v2111 = vsub.f32 %v2075, 1.0
      %v2112 = vsub.f32 %v2076, 1.0
      %v2113 = vsub.f32 %v2077, 1.0
      %v2114 = vsub.f32 %v2078, 1.0
      %v2115 = vsub.f32 %v2079, 1.0
      %v2116 = vsub.f32 %v2080, 1.0
      %v2117 = vsub.f32 %v2081, 1.0
      %v2118 = vsub.f32 %v2082, 1.0
      %v2119 = vsub.f32 %v2083, 1.0
      %v2120 = vsub.f32 %v2084, 1.0
      %v2121 = vsub.f32 %v2085, 1.0
      %v2122 = vsub.f32 %v2086, 1.0
      %v2123 = vsub.f32 %v2087, 1.0
      %v2124 = vsub.f32 %v2088, 1.0
      %v2125 = vsub.f32 %v2089, 1.0
      %v2126 = vsub.f32 %v2090, 1.0
      %v2127 = vsub.f32 %v2091, 1.0
      %v2128 = vsub.f32 %v2092, 1.0
      %v2129 = vsub.f32 %v2093, 1.0
      %v2130 = vsub.f32 %v2094, 1.0
      %v2131 = vsub.f32 %v2095, 1.0
      %v2132 = vsub.f32 %v2096, 1.0
      %v2133 = vsub.f32 %v2097, 1.0
      %v2134 = vsub.f32 %v2098, 1.0
      %v2135 = vsub.f32 %v2099, 1.0
      %v2136 = vsub.f32 %v2100, 1.0
      %v2137 = vsub.f32 %v2101, 1.0
      %v2138 = vsub.f32 %v2102, 1.0
      %v2139 = vsub.f32 %v2103, 1.0
      %v2140 = vsub.f32 %v2104, 1.0
      %v2141 = vsub.f32 %v2105, 1.0
      %v2142 = vsub.f32 %v2106, 1.0
      %v2143 = vadd.f32 %v2071, 1.0
      %v2144 = vadd.f32 %v2072, 1.0
      %v2145 = vadd.f32 %v2073, 1.0
      %v2146 = vadd.f32 %v2074, 1.0
      %v2147 = vadd.f32 %v2075, 1.0
      %v2148 = vadd.f32 %v2076, 1.0
      %v2149 = vadd.f32 %v2077, 1.0
      %v2150 = vadd.f32 %v2078, 1.0
      %v2151 = vadd.f32 %v2079, 1.0
      %v2152 = vadd.f32 %v2080, 1.0
      %v2153 = vadd.f32 %v2081, 1.0
      %v2154 = vadd.f32 %v2082, 1.0
      %v2155 = vadd.f32 %v2083, 1.0
      %v2156 = vadd.f32 %v2084, 1.0
      %v2157 = vadd.f32 %v2085, 1.0
      %v2158 = vadd.f32 %v2086, 1.0
      %v2159 = vadd.f32 %v2087, 1.0
      %v2160 = vadd.f32 %v2088, 1.0
      %v2161 = vadd.f32 %v2089, 1.0
      %v2162 = vadd.f32 %v2090, 1.0
      %v2163 = vadd.f32 %v2091, 1.0
      %v2164 = vadd.f32 %v2092, 1.0
      %v2165 = vadd.f32 %v2093, 1.0
      %v2166 = vadd.f32 %v2094, 1.0
      %v2167 = vadd.f32 %v2095, 1.0
      %v2168 = vadd.f32 %v2096, 1.0
      %v2169 = vadd.f32 %v2097, 1.0
      %v2170 = vadd.f32 %v2098, 1.0
      %v2171 = vadd.f32 %v2099, 1.0
      %v2172 = vadd.f32 %v2100, 1.0
      %v2173 = vadd.f32 %v2101, 1.0
      %v2174 = vadd.f32 %v2102, 1.0
      %v2175 = vadd.f32 %v2103, 1.0
      %v2176 = vadd.f32 %v2104, 1.0
      %v2177 = vadd.f32 %v2105, 1.0
      %v2178 = vadd.f32 %v2106, 1.0
      %v2179 = vrcp.pop %v2143
      %v2180 = vrcp.pop %v2144
      %v2181 = vrcp.pop %v2145
      %v2182 = vrcp.pop %v2146
      %v2183 = vrcp.pop %v2147
      %v2184 = vrcp.pop %v2148
      %v2185 = vrcp.pop %v2149
      %v2186 = vrcp.pop %v2150
      %v2187 = vrcp.pop %v2151
      %v2188 = vrcp.pop %v2152
      %v2189 = vrcp.pop %v2153
      %v2190 = vrcp.pop %v2154
      %v2191 = vrcp.pop %v2155
      %v2192 = vrcp.pop %v2156
      %v2193 = vrcp.pop %v2157
      %v2194 = vrcp.pop %v2158
      %v2195 = vrcp.pop %v2159
      %v2196 = vrcp.pop %v2160
      %v2197 = vrcp.pop %v2161
      %v2198 = vrcp.pop %v2162
      %v2199 = vrcp.pop %v2163
      %v2200 = vrcp.pop %v2164
      %v2201 = vrcp.pop %v2165
      %v2202 = vrcp.pop %v2166
      %v2203 = vrcp.pop %v2167
      %v2204 = vrcp.pop %v2168
      %v2205 = vrcp.pop %v2169
      %v2206 = vrcp.pop %v2170
      %v2207 = vrcp.pop %v2171
      %v2208 = vrcp.pop %v2172
      %v2209 = vrcp.pop %v2173
      %v2210 = vrcp.pop %v2174
      %v2211 = vrcp.pop %v2175
      %v2212 = vrcp.pop %v2176
      %v2213 = vrcp.pop %v2177
      %v2214 = vrcp.pop %v2178
      %v2215 = vmul.f32 %v2107, %v2179
      %v2216 = vmul.f32 %v2108, %v2180
      %v2217 = vmul.f32 %v2109, %v2181
      %v2218 = vmul.f32 %v2110, %v2182
      %v2219 = vmul.f32 %v2111, %v2183
      %v2220 = vmul.f32 %v2112, %v2184
      %v2221 = vmul.f32 %v2113, %v2185
      %v2222 = vmul.f32 %v2114, %v2186
      %v2223 = vmul.f32 %v2115, %v2187
      %v2224 = vmul.f32 %v2116, %v2188
      %v2225 = vmul.f32 %v2117, %v2189
      %v2226 = vmul.f32 %v2118, %v2190
      %v2227 = vmul.f32 %v2119, %v2191
      %v2228 = vmul.f32 %v2120, %v2192
      %v2229 = vmul.f32 %v2121, %v2193
      %v2230 = vmul.f32 %v2122, %v2194
      %v2231 = vmul.f32 %v2123, %v2195
      %v2232 = vmul.f32 %v2124, %v2196
      %v2233 = vmul.f32 %v2125, %v2197
      %v2234 = vmul.f32 %v2126, %v2198
      %v2235 = vmul.f32 %v2127, %v2199
      %v2236 = vmul.f32 %v2128, %v2200
      %v2237 = vmul.f32 %v2129, %v2201
      %v2238 = vmul.f32 %v2130, %v2202
      %v2239 = vmul.f32 %v2131, %v2203
      %v2240 = vmul.f32 %v2132, %v2204
      %v2241 = vmul.f32 %v2133, %v2205
      %v2242 = vmul.f32 %v2134, %v2206
      %v2243 = vmul.f32 %v2135, %v2207
      %v2244 = vmul.f32 %v2136, %v2208
      %v2245 = vmul.f32 %v2137, %v2209
      %v2246 = vmul.f32 %v2138, %v2210
      %v2247 = vmul.f32 %v2139, %v2211
      %v2248 = vmul.f32 %v2140, %v2212
      %v2249 = vmul.f32 %v2141, %v2213
      %v2250 = vmul.f32 %v2142, %v2214
      %vm2251 = vcmp.gt.f32.partialorder %v1891, 20.0
      %vm2252 = vcmp.gt.f32.partialorder %v1892, 20.0
      %vm2253 = vcmp.gt.f32.partialorder %v1893, 20.0
      %vm2254 = vcmp.gt.f32.partialorder %v1894, 20.0
      %vm2255 = vcmp.gt.f32.partialorder %v1895, 20.0
      %vm2256 = vcmp.gt.f32.partialorder %v1896, 20.0
      %vm2257 = vcmp.gt.f32.partialorder %v1897, 20.0
      %vm2258 = vcmp.gt.f32.partialorder %v1898, 20.0
      %vm2259 = vcmp.gt.f32.partialorder %v1899, 20.0
      %vm2260 = vcmp.gt.f32.partialorder %v1900, 20.0
      %vm2261 = vcmp.gt.f32.partialorder %v1901, 20.0
      %vm2262 = vcmp.gt.f32.partialorder %v1902, 20.0
      %vm2263 = vcmp.gt.f32.partialorder %v1903, 20.0
      %vm2264 = vcmp.gt.f32.partialorder %v1904, 20.0
      %vm2265 = vcmp.gt.f32.partialorder %v1905, 20.0
      %vm2266 = vcmp.gt.f32.partialorder %v1906, 20.0
      %vm2267 = vcmp.gt.f32.partialorder %v1907, 20.0
      %vm2268 = vcmp.gt.f32.partialorder %v1908, 20.0
      %vm2269 = vcmp.gt.f32.partialorder %v1909, 20.0
      %vm2270 = vcmp.gt.f32.partialorder %v1910, 20.0
      %vm2271 = vcmp.gt.f32.partialorder %v1911, 20.0
      %vm2272 = vcmp.gt.f32.partialorder %v1912, 20.0
      %vm2273 = vcmp.gt.f32.partialorder %v1913, 20.0
      %vm2274 = vcmp.gt.f32.partialorder %v1914, 20.0
      %vm2275 = vcmp.gt.f32.partialorder %v1915, 20.0
      %vm2276 = vcmp.gt.f32.partialorder %v1916, 20.0
      %vm2277 = vcmp.gt.f32.partialorder %v1917, 20.0
      %vm2278 = vcmp.gt.f32.partialorder %v1918, 20.0
      %vm2279 = vcmp.gt.f32.partialorder %v1919, 20.0
      %vm2280 = vcmp.gt.f32.partialorder %v1920, 20.0
      %vm2281 = vcmp.gt.f32.partialorder %v1921, 20.0
      %vm2282 = vcmp.gt.f32.partialorder %v1922, 20.0
      %vm2283 = vcmp.gt.f32.partialorder %v1923, 20.0
      %vm2284 = vcmp.gt.f32.partialorder %v1924, 20.0
      %vm2285 = vcmp.gt.f32.partialorder %v1925, 20.0
      %vm2286 = vcmp.gt.f32.partialorder %v1926, 20.0
      %v2287 = vsel %vm2251, 1.0, %v2215
      %v2288 = vsel %vm2252, 1.0, %v2216
      %v2289 = vsel %vm2253, 1.0, %v2217
      %v2290 = vsel %vm2254, 1.0, %v2218
      %v2291 = vsel %vm2255, 1.0, %v2219
      %v2292 = vsel %vm2256, 1.0, %v2220
      %v2293 = vsel %vm2257, 1.0, %v2221
      %v2294 = vsel %vm2258, 1.0, %v2222
      %v2295 = vsel %vm2259, 1.0, %v2223
      %v2296 = vsel %vm2260, 1.0, %v2224
      %v2297 = vsel %vm2261, 1.0, %v2225
      %v2298 = vsel %vm2262, 1.0, %v2226
      %v2299 = vsel %vm2263, 1.0, %v2227
      %v2300 = vsel %vm2264, 1.0, %v2228
      %v2301 = vsel %vm2265, 1.0, %v2229
      %v2302 = vsel %vm2266, 1.0, %v2230
      %v2303 = vsel %vm2267, 1.0, %v2231
      %v2304 = vsel %vm2268, 1.0, %v2232
      %v2305 = vsel %vm2269, 1.0, %v2233
      %v2306 = vsel %vm2270, 1.0, %v2234
      %v2307 = vsel %vm2271, 1.0, %v2235
      %v2308 = vsel %vm2272, 1.0, %v2236
      %v2309 = vsel %vm2273, 1.0, %v2237
      %v2310 = vsel %vm2274, 1.0, %v2238
      %v2311 = vsel %vm2275, 1.0, %v2239
      %v2312 = vsel %vm2276, 1.0, %v2240
      %v2313 = vsel %vm2277, 1.0, %v2241
      %v2314 = vsel %vm2278, 1.0, %v2242
      %v2315 = vsel %vm2279, 1.0, %v2243
      %v2316 = vsel %vm2280, 1.0, %v2244
      %v2317 = vsel %vm2281, 1.0, %v2245
      %v2318 = vsel %vm2282, 1.0, %v2246
      %v2319 = vsel %vm2283, 1.0, %v2247
      %v2320 = vsel %vm2284, 1.0, %v2248
      %v2321 = vsel %vm2285, 1.0, %v2249
      %v2322 = vsel %vm2286, 1.0, %v2250
      %v2323 = vmul.f32 %v1891, %v2287
      %v2324 = vmul.f32 %v1892, %v2288
      %v2325 = vmul.f32 %v1893, %v2289
      %v2326 = vmul.f32 %v1894, %v2290
      %v2327 = vmul.f32 %v1895, %v2291
      %v2328 = vmul.f32 %v1896, %v2292
      %v2329 = vmul.f32 %v1897, %v2293
      %v2330 = vmul.f32 %v1898, %v2294
      %v2331 = vmul.f32 %v1899, %v2295
      %v2332 = vmul.f32 %v1900, %v2296
      %v2333 = vmul.f32 %v1901, %v2297
      %v2334 = vmul.f32 %v1902, %v2298
      %v2335 = vmul.f32 %v1903, %v2299
      %v2336 = vmul.f32 %v1904, %v2300
      %v2337 = vmul.f32 %v1905, %v2301
      %v2338 = vmul.f32 %v1906, %v2302
      %v2339 = vmul.f32 %v1907, %v2303
      %v2340 = vmul.f32 %v1908, %v2304
      %v2341 = vmul.f32 %v1909, %v2305
      %v2342 = vmul.f32 %v1910, %v2306
      %v2343 = vmul.f32 %v1911, %v2307
      %v2344 = vmul.f32 %v1912, %v2308
      %v2345 = vmul.f32 %v1913, %v2309
      %v2346 = vmul.f32 %v1914, %v2310
      %v2347 = vmul.f32 %v1915, %v2311
      %v2348 = vmul.f32 %v1916, %v2312
      %v2349 = vmul.f32 %v1917, %v2313
      %v2350 = vmul.f32 %v1918, %v2314
      %v2351 = vmul.f32 %v1919, %v2315
      %v2352 = vmul.f32 %v1920, %v2316
      %v2353 = vmul.f32 %v1921, %v2317
      %v2354 = vmul.f32 %v1922, %v2318
      %v2355 = vmul.f32 %v1923, %v2319
      %v2356 = vmul.f32 %v1924, %v2320
      %v2357 = vmul.f32 %v1925, %v2321
      %v2358 = vmul.f32 %v1926, %v2322
      %p2359 = scmp.eq.s32.totalorder %s23, 0
      %s2360 = scalar_select %p2359, 1, 0
      %v2361 = vstv %s2360
      %vm2362 = vcmp.eq.s32.totalorder %v2361, 1
      %v2363 = vsel %vm2362, 1, 0
      %vm2364 = vcmp.eq.s32.totalorder %v2363, 1
      %v2365 = vsel %vm2364, 0.0, %v2323
      %v2366 = vsel %vm2364, 0.0, %v2324
      %v2367 = vsel 0, 0.0, %v2325
      %v2368 = vsel 0, 0.0, %v2326
      %v2369 = vsel 0, 0.0, %v2327
      %v2370 = vsel 0, 0.0, %v2328
      %v2371 = vsel 0, 0.0, %v2329
      %v2372 = vsel 0, 0.0, %v2330
      %v2373 = vsel 0, 0.0, %v2331
      %v2374 = vsel 0, 0.0, %v2332
      %v2375 = vsel 0, 0.0, %v2333
      %v2376 = vsel 0, 0.0, %v2334
      %v2377 = vsel 0, 0.0, %v2335
      %v2378 = vsel 0, 0.0, %v2336
      %v2379 = vsel 0, 0.0, %v2337
      %v2380 = vsel 0, 0.0, %v2338
      %v2381 = vsel 0, 0.0, %v2339
      %v2382 = vsel 0, 0.0, %v2340
      %v2383 = vsel 0, 0.0, %v2341
      %v2384 = vsel 0, 0.0, %v2342
      %v2385 = vsel 0, 0.0, %v2343
      %v2386 = vsel 0, 0.0, %v2344
      %v2387 = vsel 0, 0.0, %v2345
      %v2388 = vsel 0, 0.0, %v2346
      %v2389 = vsel 0, 0.0, %v2347
      %v2390 = vsel 0, 0.0, %v2348
      %v2391 = vsel 0, 0.0, %v2349
      %v2392 = vsel 0, 0.0, %v2350
      %v2393 = vsel 0, 0.0, %v2351
      %v2394 = vsel 0, 0.0, %v2352
      %v2395 = vsel 0, 0.0, %v2353
      %v2396 = vsel 0, 0.0, %v2354
      %v2397 = vsel 0, 0.0, %v2355
      %v2398 = vsel 0, 0.0, %v2356
      %v2399 = vsel %vm2364, 0.0, %v2357
      %v2400 = vsel %vm2364, 0.0, %v2358
      %v2401 = vpack.c.bf16 %v2366, %v2365
      %v2402 = vpack.c.bf16 %v2368, %v2367
      %v2403 = vpack.c.bf16 %v2370, %v2369
      %v2404 = vpack.c.bf16 %v2372, %v2371
      %v2405 = vpack.c.bf16 %v2374, %v2373
      %v2406 = vpack.c.bf16 %v2376, %v2375
      %v2407 = vpack.c.bf16 %v2378, %v2377
      %v2408 = vpack.c.bf16 %v2380, %v2379
      %v2409 = vpack.c.bf16 %v2382, %v2381
      %v2410 = vpack.c.bf16 %v2384, %v2383
      %v2411 = vpack.c.bf16 %v2386, %v2385
      %v2412 = vpack.c.bf16 %v2388, %v2387
      %v2413 = vpack.c.bf16 %v2390, %v2389
      %v2414 = vpack.c.bf16 %v2392, %v2391
      %v2415 = vpack.c.bf16 %v2394, %v2393
      %v2416 = vpack.c.bf16 %v2396, %v2395
      %v2417 = vpack.c.bf16 %v2398, %v2397
      %v2418 = vpack.c.bf16 %v2400, %v2399
      %v2420 = vshrl.u32 %v2401, 16
      %v2422 = vrot.slane %v2420, 7
      %v2423 = vshll.u32 %v2401, 16
      %v2425 = vor.u32 %v2422, %v2423
      %v2427 = vshrl.u32 %v2402, 16
      %v2429 = vrot.slane %v2427, 7
      %v2430 = vshll.u32 %v2402, 16
      %v2432 = vor.u32 %v2429, %v2430
      %v2434 = vshrl.u32 %v2403, 16
      %v2436 = vrot.slane %v2434, 7
      %v2437 = vshll.u32 %v2403, 16
      %v2439 = vor.u32 %v2436, %v2437
      %v2441 = vshrl.u32 %v2404, 16
      %v2443 = vrot.slane %v2441, 7
      %v2444 = vshll.u32 %v2404, 16
      %v2446 = vor.u32 %v2443, %v2444
      %v2448 = vshrl.u32 %v2405, 16
      %v2450 = vrot.slane %v2448, 7
      %v2451 = vshll.u32 %v2405, 16
      %v2453 = vor.u32 %v2450, %v2451
      %v2455 = vshrl.u32 %v2406, 16
      %v2457 = vrot.slane %v2455, 7
      %v2458 = vshll.u32 %v2406, 16
      %v2460 = vor.u32 %v2457, %v2458
      %v2462 = vshrl.u32 %v2407, 16
      %v2464 = vrot.slane %v2462, 7
      %v2465 = vshll.u32 %v2407, 16
      %v2467 = vor.u32 %v2464, %v2465
      %v2469 = vshrl.u32 %v2408, 16
      %v2471 = vrot.slane %v2469, 7
      %v2472 = vshll.u32 %v2408, 16
      %v2474 = vor.u32 %v2471, %v2472
      %v2476 = vshrl.u32 %v2409, 16
      %v2478 = vrot.slane %v2476, 7
      %v2479 = vshll.u32 %v2409, 16
      %v2481 = vor.u32 %v2478, %v2479
      %v2483 = vshrl.u32 %v2410, 16
      %v2485 = vrot.slane %v2483, 7
      %v2486 = vshll.u32 %v2410, 16
      %v2488 = vor.u32 %v2485, %v2486
      %v2490 = vshrl.u32 %v2411, 16
      %v2492 = vrot.slane %v2490, 7
      %v2493 = vshll.u32 %v2411, 16
      %v2495 = vor.u32 %v2492, %v2493
      %v2497 = vshrl.u32 %v2412, 16
      %v2499 = vrot.slane %v2497, 7
      %v2500 = vshll.u32 %v2412, 16
      %v2502 = vor.u32 %v2499, %v2500
      %v2504 = vshrl.u32 %v2413, 16
      %v2506 = vrot.slane %v2504, 7
      %v2507 = vshll.u32 %v2413, 16
      %v2509 = vor.u32 %v2506, %v2507
      %v2511 = vshrl.u32 %v2414, 16
      %v2513 = vrot.slane %v2511, 7
      %v2514 = vshll.u32 %v2414, 16
      %v2516 = vor.u32 %v2513, %v2514
      %v2518 = vshrl.u32 %v2415, 16
      %v2520 = vrot.slane %v2518, 7
      %v2521 = vshll.u32 %v2415, 16
      %v2523 = vor.u32 %v2520, %v2521
      %v2525 = vshrl.u32 %v2416, 16
      %v2527 = vrot.slane %v2525, 7
      %v2528 = vshll.u32 %v2416, 16
      %v2530 = vor.u32 %v2527, %v2528
      %v2532 = vshrl.u32 %v2417, 16
      %v2534 = vrot.slane %v2532, 7
      %v2535 = vshll.u32 %v2417, 16
      %v2537 = vor.u32 %v2534, %v2535
      %v2539 = vshrl.u32 %v2418, 16
      %v2541 = vrot.slane %v2539, 7
      %v2542 = vshll.u32 %v2418, 16
      %v2544 = vor.u32 %v2541, %v2542
      %v2563 = vsel %vm937, 0, %v2425
      %v2564 = vsel %vm937, 0, %v2432
      %v2565 = vsel %vm937, 0, %v2439
      %v2566 = vsel %vm937, 0, %v2446
      %v2567 = vsel %vm937, 0, %v2453
      %v2568 = vsel %vm937, 0, %v2460
      %v2569 = vsel %vm937, 0, %v2467
      %v2570 = vsel %vm937, 0, %v2474
      %v2571 = vsel %vm937, 0, %v2481
      %v2572 = vsel %vm937, 0, %v2488
      %v2573 = vsel %vm937, 0, %v2495
      %v2574 = vsel %vm937, 0, %v2502
      %v2575 = vsel %vm937, 0, %v2509
      %v2576 = vsel %vm937, 0, %v2516
      %v2577 = vsel %vm937, 0, %v2523
      %v2578 = vsel %vm937, 0, %v2530
      %v2579 = vsel %vm937, 0, %v2537
      %v2580 = vsel %vm937, 0, %v2544
      %v2581 = vrot.slane %v2423, 1
      %v2582 = vor.u32 %v2420, %v2581
      %v2583 = vrot.slane %v2430, 1
      %v2584 = vor.u32 %v2427, %v2583
      %v2585 = vrot.slane %v2437, 1
      %v2586 = vor.u32 %v2434, %v2585
      %v2587 = vrot.slane %v2444, 1
      %v2588 = vor.u32 %v2441, %v2587
      %v2589 = vrot.slane %v2451, 1
      %v2590 = vor.u32 %v2448, %v2589
      %v2591 = vrot.slane %v2458, 1
      %v2592 = vor.u32 %v2455, %v2591
      %v2593 = vrot.slane %v2465, 1
      %v2594 = vor.u32 %v2462, %v2593
      %v2595 = vrot.slane %v2472, 1
      %v2596 = vor.u32 %v2469, %v2595
      %v2597 = vrot.slane %v2479, 1
      %v2598 = vor.u32 %v2476, %v2597
      %v2599 = vrot.slane %v2486, 1
      %v2600 = vor.u32 %v2483, %v2599
      %v2601 = vrot.slane %v2493, 1
      %v2602 = vor.u32 %v2490, %v2601
      %v2603 = vrot.slane %v2500, 1
      %v2604 = vor.u32 %v2497, %v2603
      %v2605 = vrot.slane %v2507, 1
      %v2606 = vor.u32 %v2504, %v2605
      %v2607 = vrot.slane %v2514, 1
      %v2608 = vor.u32 %v2511, %v2607
      %v2609 = vrot.slane %v2521, 1
      %v2610 = vor.u32 %v2518, %v2609
      %v2611 = vrot.slane %v2528, 1
      %v2612 = vor.u32 %v2525, %v2611
      %v2613 = vrot.slane %v2535, 1
      %v2614 = vor.u32 %v2532, %v2613
      %v2615 = vrot.slane %v2542, 1
      %v2616 = vor.u32 %v2539, %v2615
      %v2635 = vsel %vm1020, %v2582, 0
      %v2636 = vsel %vm1020, %v2584, 0
      %v2637 = vsel %vm1020, %v2586, 0
      %v2638 = vsel %vm1020, %v2588, 0
      %v2639 = vsel %vm1020, %v2590, 0
      %v2640 = vsel %vm1020, %v2592, 0
      %v2641 = vsel %vm1020, %v2594, 0
      %v2642 = vsel %vm1020, %v2596, 0
      %v2643 = vsel %vm1020, %v2598, 0
      %v2644 = vsel %vm1020, %v2600, 0
      %v2645 = vsel %vm1020, %v2602, 0
      %v2646 = vsel %vm1020, %v2604, 0
      %v2647 = vsel %vm1020, %v2606, 0
      %v2648 = vsel %vm1020, %v2608, 0
      %v2649 = vsel %vm1020, %v2610, 0
      %v2650 = vsel %vm1020, %v2612, 0
      %v2651 = vsel %vm1020, %v2614, 0
      %v2652 = vsel %vm1020, %v2616, 0
      %2671 = vrot.lane.b32.xlu0 %v2401, 4
      %v2672 = vpop.permute.xlu0 %2671
      %2673 = vrot.lane.b32.xlu0 %v2402, 4
      %v2674 = vpop.permute.xlu0 %2673
      %2675 = vrot.lane.b32.xlu0 %v2403, 4
      %v2676 = vpop.permute.xlu0 %2675
      %2677 = vrot.lane.b32.xlu0 %v2404, 4
      %v2678 = vpop.permute.xlu0 %2677
      %2679 = vrot.lane.b32.xlu0 %v2405, 4
      %v2680 = vpop.permute.xlu0 %2679
      %2681 = vrot.lane.b32.xlu0 %v2406, 4
      %v2682 = vpop.permute.xlu0 %2681
      %2683 = vrot.lane.b32.xlu0 %v2407, 4
      %v2684 = vpop.permute.xlu0 %2683
      %2685 = vrot.lane.b32.xlu0 %v2408, 4
      %v2686 = vpop.permute.xlu0 %2685
      %2687 = vrot.lane.b32.xlu0 %v2409, 4
      %v2688 = vpop.permute.xlu0 %2687
      %2689 = vrot.lane.b32.xlu0 %v2410, 4
      %v2690 = vpop.permute.xlu0 %2689
      %2691 = vrot.lane.b32.xlu0 %v2411, 4
      %v2692 = vpop.permute.xlu0 %2691
      %2693 = vrot.lane.b32.xlu0 %v2412, 4
      %v2694 = vpop.permute.xlu0 %2693
      %2695 = vrot.lane.b32.xlu0 %v2413, 4
      %v2696 = vpop.permute.xlu0 %2695
      %2697 = vrot.lane.b32.xlu0 %v2414, 4
      %v2698 = vpop.permute.xlu0 %2697
      %2699 = vrot.lane.b32.xlu0 %v2415, 4
      %v2700 = vpop.permute.xlu0 %2699
      %2701 = vrot.lane.b32.xlu0 %v2416, 4
      %v2702 = vpop.permute.xlu0 %2701
      %2703 = vrot.lane.b32.xlu0 %v2417, 4
      %v2704 = vpop.permute.xlu0 %2703
      %2705 = vrot.lane.b32.xlu0 %v2418, 4
      %v2706 = vpop.permute.xlu0 %2705
      %2725 = vrot.lane.b32.xlu0 %v2635, 8
      %v2726 = vpop.permute.xlu0 %2725
      %2727 = vrot.lane.b32.xlu0 %v2636, 8
      %v2728 = vpop.permute.xlu0 %2727
      %2729 = vrot.lane.b32.xlu0 %v2637, 8
      %v2730 = vpop.permute.xlu0 %2729
      %2731 = vrot.lane.b32.xlu0 %v2638, 8
      %v2732 = vpop.permute.xlu0 %2731
      %2733 = vrot.lane.b32.xlu0 %v2639, 8
      %v2734 = vpop.permute.xlu0 %2733
      %2735 = vrot.lane.b32.xlu0 %v2640, 8
      %v2736 = vpop.permute.xlu0 %2735
      %2737 = vrot.lane.b32.xlu0 %v2641, 8
      %v2738 = vpop.permute.xlu0 %2737
      %2739 = vrot.lane.b32.xlu0 %v2642, 8
      %v2740 = vpop.permute.xlu0 %2739
      %2741 = vrot.lane.b32.xlu0 %v2643, 8
      %v2742 = vpop.permute.xlu0 %2741
      %2743 = vrot.lane.b32.xlu0 %v2644, 8
      %v2744 = vpop.permute.xlu0 %2743
      %2745 = vrot.lane.b32.xlu0 %v2645, 8
      %v2746 = vpop.permute.xlu0 %2745
      %2747 = vrot.lane.b32.xlu0 %v2646, 8
      %v2748 = vpop.permute.xlu0 %2747
      %2749 = vrot.lane.b32.xlu0 %v2647, 8
      %v2750 = vpop.permute.xlu0 %2749
      %2751 = vrot.lane.b32.xlu0 %v2648, 8
      %v2752 = vpop.permute.xlu0 %2751
      %2753 = vrot.lane.b32.xlu0 %v2649, 8
      %v2754 = vpop.permute.xlu0 %2753
      %2755 = vrot.lane.b32.xlu0 %v2650, 8
      %v2756 = vpop.permute.xlu0 %2755
      %2757 = vrot.lane.b32.xlu0 %v2651, 8
      %v2758 = vpop.permute.xlu0 %2757
      %2759 = vrot.lane.b32.xlu0 %v2652, 8
      %v2760 = vpop.permute.xlu0 %2759
      %v2763 = vsel %vm1141, %v2563, %v2672
      %v2766 = vsel %vm1141, %v2564, %v2674
      %v2769 = vsel %vm1141, %v2565, %v2676
      %v2772 = vsel %vm1141, %v2566, %v2678
      %v2775 = vsel %vm1141, %v2567, %v2680
      %v2778 = vsel %vm1141, %v2568, %v2682
      %v2781 = vsel %vm1141, %v2569, %v2684
      %v2784 = vsel %vm1141, %v2570, %v2686
      %v2787 = vsel %vm1141, %v2571, %v2688
      %v2790 = vsel %vm1141, %v2572, %v2690
      %v2793 = vsel %vm1141, %v2573, %v2692
      %v2796 = vsel %vm1141, %v2574, %v2694
      %v2799 = vsel %vm1141, %v2575, %v2696
      %v2802 = vsel %vm1141, %v2576, %v2698
      %v2805 = vsel %vm1141, %v2577, %v2700
      %v2808 = vsel %vm1141, %v2578, %v2702
      %v2811 = vsel %vm1141, %v2579, %v2704
      %v2814 = vsel %vm1141, %v2580, %v2706
      %v2816 = vsel %vm1202, %v2763, %v2726
      %v2818 = vsel %vm1202, %v2766, %v2728
      %v2820 = vsel %vm1202, %v2769, %v2730
      %v2822 = vsel %vm1202, %v2772, %v2732
      %v2824 = vsel %vm1202, %v2775, %v2734
      %v2826 = vsel %vm1202, %v2778, %v2736
      %v2828 = vsel %vm1202, %v2781, %v2738
      %v2830 = vsel %vm1202, %v2784, %v2740
      %v2832 = vsel %vm1202, %v2787, %v2742
      %v2834 = vsel %vm1202, %v2790, %v2744
      %v2836 = vsel %vm1202, %v2793, %v2746
      %v2838 = vsel %vm1202, %v2796, %v2748
      %v2840 = vsel %vm1202, %v2799, %v2750
      %v2842 = vsel %vm1202, %v2802, %v2752
      %v2844 = vsel %vm1202, %v2805, %v2754
      %v2846 = vsel %vm1202, %v2808, %v2756
      %v2848 = vsel %vm1202, %v2811, %v2758
      %v2850 = vsel %vm1202, %v2814, %v2760
      %v2851 = vld [vmem:[%s5] sm:$0xf]
      %v2852 = vld [vmem:[%s5 + $0x4] sm:$0x3]
      %s2853 = scalar_lea.vmem %s5, 8
      %v2854 = vld [vmem:[%s2853] sm:$0xf]
      %v2855 = vld [vmem:[%s2853 + $0x4] sm:$0x3]
      %v2858 = vunpack.c.l.b16 %v2854
      %v2859 = vunpack.c.l.b16 %v2855
      %v2860 = vpack.c.b16 %v2859, %v2858
      %v2861 = vsel %vm1253, %v2818, 0
      %v2863 = vsel %vm1253, %v2820, 0
      %v2865 = vsel %vm1253, %v2822, 0
      %v2867 = vsel %vm1253, %v2824, 0
      %v2869 = vsel %vm1253, %v2826, 0
      %v2871 = vsel %vm1253, %v2828, 0
      %v2873 = vsel %vm1253, %v2830, 0
      %v2875 = vsel %vm1253, %v2832, 0
      %v2877 = vsel %vm1253, %v2834, 0
      %v2879 = vsel %vm1253, %v2836, 0
      %v2881 = vsel %vm1253, %v2838, 0
      %v2883 = vsel %vm1253, %v2840, 0
      %v2885 = vsel %vm1253, %v2842, 0
      %v2887 = vsel %vm1253, %v2844, 0
      %v2889 = vsel %vm1253, %v2846, 0
      %v2891 = vsel %vm1253, %v2848, 0
      %v2894 = vsel %vm1290, %v2860, 0
      %2896 = vmatprep.subr.bf16.mxu0 0
      %2897 = vmatpush1.bf16.msra.mxu0 0
      %2898 = vmatprep.subr.bf16.mxu0 0
      %2899 = vmatpush1.bf16.msra.mxu0 0
      %2900 = vmatprep.subr.bf16.mxu0 0
      %2901 = vmatpush1.bf16.msra.mxu0 0
      %2902 = vmatprep.subr.bf16.mxu0 0
      %2903 = vmatpush1.bf16.msra.mxu0 0
      %2904 = vmatprep.subr.bf16.mxu0 0
      %2905 = vmatpush1.bf16.msra.mxu0 0
      %2906 = vmatprep.subr.bf16.mxu0 0
      %2907 = vmatpush1.bf16.msra.mxu0 0
      %2908 = vmatprep.subr.bf16.mxu0 0
      %2909 = vmatpush1.bf16.msra.mxu0 0
      %2910 = vmatprep.subr.bf16.mxu0 0
      %2911 = vmatpush1.bf16.msra.mxu0 %v2894
      %2912 = vmatprep.subr.bf16.mxu0 0
      %2913 = vmatpush2.bf16.msra.mxu0 0
      %2914 = vmatprep.subr.bf16.mxu0 0
      %2915 = vmatpush2.bf16.msra.mxu0 0
      %2916 = vmatprep.subr.bf16.mxu0 0
      %2917 = vmatpush2.bf16.msra.mxu0 0
      %2918 = vmatprep.subr.bf16.mxu0 0
      %2919 = vmatpush2.bf16.msra.mxu0 0
      %2920 = vmatprep.subr.bf16.mxu0 0
      %2921 = vmatpush2.bf16.msra.mxu0 0
      %2922 = vmatprep.subr.bf16.mxu0 0
      %2923 = vmatpush2.bf16.msra.mxu0 0
      %2924 = vmatprep.subr.bf16.mxu0 0
      %2925 = vmatpush2.bf16.msra.mxu0 0
      %2926 = vmatprep.subr.bf16.mxu0 0
      %2927 = vmatpush2.bf16.msra.mxu0 0
      %2928 = vmatprep.mubr.bf16.mxu0 0
      %2929 = vmatmul.mubr.bf16.gmra.mxu0 %v2861
      %v2930 = vpop.f32.mrf.mxu0
      %v2931 = vadd.f32 0.0, %v2930
      %v2932 = vpop.f32.mrf.mxu0
      %v2933 = vpop.f32.mrf.mxu0
      %v2934 = vadd.f32 0.0, %v2933
      %v2935 = vpop.f32.mrf.mxu0
      %2936 = vmatprep.mubr.bf16.mxu0 0
      %2937 = vmatmul.mubr.bf16.gmra.mxu0 %v2863
      %v2938 = vpop.f32.mrf.mxu0
      %v2939 = vadd.f32 0.0, %v2938
      %v2940 = vpop.f32.mrf.mxu0
      %v2941 = vpop.f32.mrf.mxu0
      %v2942 = vadd.f32 0.0, %v2941
      %v2943 = vpop.f32.mrf.mxu0
      %2944 = vmatprep.mubr.bf16.mxu0 0
      %2945 = vmatmul.mubr.bf16.gmra.mxu0 %v2865
      %v2946 = vpop.f32.mrf.mxu0
      %v2947 = vadd.f32 0.0, %v2946
      %v2948 = vpop.f32.mrf.mxu0
      %v2949 = vpop.f32.mrf.mxu0
      %v2950 = vadd.f32 0.0, %v2949
      %v2951 = vpop.f32.mrf.mxu0
      %2952 = vmatprep.mubr.bf16.mxu0 0
      %2953 = vmatmul.mubr.bf16.gmra.mxu0 %v2867
      %v2954 = vpop.f32.mrf.mxu0
      %v2955 = vadd.f32 0.0, %v2954
      %v2956 = vpop.f32.mrf.mxu0
      %v2957 = vpop.f32.mrf.mxu0
      %v2958 = vadd.f32 0.0, %v2957
      %v2959 = vpop.f32.mrf.mxu0
      %2960 = vmatprep.mubr.bf16.mxu0 0
      %2961 = vmatmul.mubr.bf16.gmra.mxu0 %v2869
      %v2962 = vpop.f32.mrf.mxu0
      %v2963 = vadd.f32 0.0, %v2962
      %v2964 = vpop.f32.mrf.mxu0
      %v2965 = vpop.f32.mrf.mxu0
      %v2966 = vadd.f32 0.0, %v2965
      %v2967 = vpop.f32.mrf.mxu0
      %2968 = vmatprep.mubr.bf16.mxu0 0
      %2969 = vmatmul.mubr.bf16.gmra.mxu0 %v2871
      %v2970 = vpop.f32.mrf.mxu0
      %v2971 = vadd.f32 0.0, %v2970
      %v2972 = vpop.f32.mrf.mxu0
      %v2973 = vpop.f32.mrf.mxu0
      %v2974 = vadd.f32 0.0, %v2973
      %v2975 = vpop.f32.mrf.mxu0
      %2976 = vmatprep.mubr.bf16.mxu0 0
      %2977 = vmatmul.mubr.bf16.gmra.mxu0 %v2873
      %v2978 = vpop.f32.mrf.mxu0
      %v2979 = vadd.f32 0.0, %v2978
      %v2980 = vpop.f32.mrf.mxu0
      %v2981 = vpop.f32.mrf.mxu0
      %v2982 = vadd.f32 0.0, %v2981
      %v2983 = vpop.f32.mrf.mxu0
      %2984 = vmatprep.mubr.bf16.mxu0 0
      %2985 = vmatmul.mubr.bf16.gmra.mxu0 %v2875
      %v2986 = vpop.f32.mrf.mxu0
      %v2987 = vadd.f32 0.0, %v2986
      %v2988 = vpop.f32.mrf.mxu0
      %v2989 = vpop.f32.mrf.mxu0
      %v2990 = vadd.f32 0.0, %v2989
      %v2991 = vpop.f32.mrf.mxu0
      %2992 = vmatprep.mubr.bf16.mxu0 0
      %2993 = vmatmul.mubr.bf16.gmra.mxu0 %v2877
      %v2994 = vpop.f32.mrf.mxu0
      %v2995 = vadd.f32 0.0, %v2994
      %v2996 = vpop.f32.mrf.mxu0
      %v2997 = vpop.f32.mrf.mxu0
      %v2998 = vadd.f32 0.0, %v2997
      %v2999 = vpop.f32.mrf.mxu0
      %3000 = vmatprep.mubr.bf16.mxu0 0
      %3001 = vmatmul.mubr.bf16.gmra.mxu0 %v2879
      %v3002 = vpop.f32.mrf.mxu0
      %v3003 = vadd.f32 0.0, %v3002
      %v3004 = vpop.f32.mrf.mxu0
      %v3005 = vpop.f32.mrf.mxu0
      %v3006 = vadd.f32 0.0, %v3005
      %v3007 = vpop.f32.mrf.mxu0
      %3008 = vmatprep.mubr.bf16.mxu0 0
      %3009 = vmatmul.mubr.bf16.gmra.mxu0 %v2881
      %v3010 = vpop.f32.mrf.mxu0
      %v3011 = vadd.f32 0.0, %v3010
      %v3012 = vpop.f32.mrf.mxu0
      %v3013 = vpop.f32.mrf.mxu0
      %v3014 = vadd.f32 0.0, %v3013
      %v3015 = vpop.f32.mrf.mxu0
      %3016 = vmatprep.mubr.bf16.mxu0 0
      %3017 = vmatmul.mubr.bf16.gmra.mxu0 %v2883
      %v3018 = vpop.f32.mrf.mxu0
      %v3019 = vadd.f32 0.0, %v3018
      %v3020 = vpop.f32.mrf.mxu0
      %v3021 = vpop.f32.mrf.mxu0
      %v3022 = vadd.f32 0.0, %v3021
      %v3023 = vpop.f32.mrf.mxu0
      %3024 = vmatprep.mubr.bf16.mxu0 0
      %3025 = vmatmul.mubr.bf16.gmra.mxu0 %v2885
      %v3026 = vpop.f32.mrf.mxu0
      %v3027 = vadd.f32 0.0, %v3026
      %v3028 = vpop.f32.mrf.mxu0
      %v3029 = vpop.f32.mrf.mxu0
      %v3030 = vadd.f32 0.0, %v3029
      %v3031 = vpop.f32.mrf.mxu0
      %3032 = vmatprep.mubr.bf16.mxu0 0
      %3033 = vmatmul.mubr.bf16.gmra.mxu0 %v2887
      %v3034 = vpop.f32.mrf.mxu0
      %v3035 = vadd.f32 0.0, %v3034
      %v3036 = vpop.f32.mrf.mxu0
      %v3037 = vpop.f32.mrf.mxu0
      %v3038 = vadd.f32 0.0, %v3037
      %v3039 = vpop.f32.mrf.mxu0
      %3040 = vmatprep.mubr.bf16.mxu0 0
      %3041 = vmatmul.mubr.bf16.gmra.mxu0 %v2889
      %v3042 = vpop.f32.mrf.mxu0
      %v3043 = vadd.f32 0.0, %v3042
      %v3044 = vpop.f32.mrf.mxu0
      %v3045 = vpop.f32.mrf.mxu0
      %v3046 = vadd.f32 0.0, %v3045
      %v3047 = vpop.f32.mrf.mxu0
      %3048 = vmatprep.mubr.bf16.mxu0 0
      %3049 = vmatmul.mubr.bf16.gmra.mxu0 %v2891
      %v3050 = vpop.f32.mrf.mxu0
      %v3051 = vadd.f32 0.0, %v3050
      %v3052 = vpop.f32.mrf.mxu0
      %v3053 = vpop.f32.mrf.mxu0
      %v3054 = vadd.f32 0.0, %v3053
      %v3055 = vpop.f32.mrf.mxu0
      %3056 = vdwg.mxu0
      %v3059 = vunpack.c.l.b16 %v2851
      %v3060 = vunpack.c.l.b16 %v2852
      %v3061 = vpack.c.b16 %v3060, %v3059
      %v3062 = vsel %vm1253, %v2816, 0
      %v3065 = vsel %vm1290, %v3061, 0
      %3067 = vmatprep.subr.bf16.mxu0 0
      %3068 = vmatpush1.bf16.msra.mxu0 0
      %3069 = vmatprep.subr.bf16.mxu0 0
      %3070 = vmatpush1.bf16.msra.mxu0 0
      %3071 = vmatprep.subr.bf16.mxu0 0
      %3072 = vmatpush1.bf16.msra.mxu0 0
      %3073 = vmatprep.subr.bf16.mxu0 0
      %3074 = vmatpush1.bf16.msra.mxu0 0
      %3075 = vmatprep.subr.bf16.mxu0 0
      %3076 = vmatpush1.bf16.msra.mxu0 0
      %3077 = vmatprep.subr.bf16.mxu0 0
      %3078 = vmatpush1.bf16.msra.mxu0 0
      %3079 = vmatprep.subr.bf16.mxu0 0
      %3080 = vmatpush1.bf16.msra.mxu0 0
      %3081 = vmatprep.subr.bf16.mxu0 0
      %3082 = vmatpush1.bf16.msra.mxu0 %v3065
      %3083 = vmatprep.subr.bf16.mxu0 0
      %3084 = vmatpush2.bf16.msra.mxu0 0
      %3085 = vmatprep.subr.bf16.mxu0 0
      %3086 = vmatpush2.bf16.msra.mxu0 0
      %3087 = vmatprep.subr.bf16.mxu0 0
      %3088 = vmatpush2.bf16.msra.mxu0 0
      %3089 = vmatprep.subr.bf16.mxu0 0
      %3090 = vmatpush2.bf16.msra.mxu0 0
      %3091 = vmatprep.subr.bf16.mxu0 0
      %3092 = vmatpush2.bf16.msra.mxu0 0
      %3093 = vmatprep.subr.bf16.mxu0 0
      %3094 = vmatpush2.bf16.msra.mxu0 0
      %3095 = vmatprep.subr.bf16.mxu0 0
      %3096 = vmatpush2.bf16.msra.mxu0 0
      %3097 = vmatprep.subr.bf16.mxu0 0
      %3098 = vmatpush2.bf16.msra.mxu0 0
      %3099 = vmatprep.mubr.bf16.mxu0 0
      %3100 = vmatmul.mubr.bf16.gmra.mxu0 %v3062
      %v3101 = vpop.f32.mrf.mxu0
      %v3102 = vadd.f32 %v2931, %v3101
      %v3103 = vpop.f32.mrf.mxu0
      %v3104 = vpop.f32.mrf.mxu0
      %v3105 = vadd.f32 %v2934, %v3104
      %v3106 = vpop.f32.mrf.mxu0
      %3107 = vmatprep.mubr.bf16.mxu0 0
      %3108 = vmatmul.mubr.bf16.gmra.mxu0 %v2861
      %v3109 = vpop.f32.mrf.mxu0
      %v3110 = vadd.f32 %v2939, %v3109
      %v3111 = vpop.f32.mrf.mxu0
      %v3112 = vpop.f32.mrf.mxu0
      %v3113 = vadd.f32 %v2942, %v3112
      %v3114 = vpop.f32.mrf.mxu0
      %3115 = vmatprep.mubr.bf16.mxu0 0
      %3116 = vmatmul.mubr.bf16.gmra.mxu0 %v2863
      %v3117 = vpop.f32.mrf.mxu0
      %v3118 = vadd.f32 %v2947, %v3117
      %v3119 = vpop.f32.mrf.mxu0
      %v3120 = vpop.f32.mrf.mxu0
      %v3121 = vadd.f32 %v2950, %v3120
      %v3122 = vpop.f32.mrf.mxu0
      %3123 = vmatprep.mubr.bf16.mxu0 0
      %3124 = vmatmul.mubr.bf16.gmra.mxu0 %v2865
      %v3125 = vpop.f32.mrf.mxu0
      %v3126 = vadd.f32 %v2955, %v3125
      %v3127 = vpop.f32.mrf.mxu0
      %v3128 = vpop.f32.mrf.mxu0
      %v3129 = vadd.f32 %v2958, %v3128
      %v3130 = vpop.f32.mrf.mxu0
      %3131 = vmatprep.mubr.bf16.mxu0 0
      %3132 = vmatmul.mubr.bf16.gmra.mxu0 %v2867
      %v3133 = vpop.f32.mrf.mxu0
      %v3134 = vadd.f32 %v2963, %v3133
      %v3135 = vpop.f32.mrf.mxu0
      %v3136 = vpop.f32.mrf.mxu0
      %v3137 = vadd.f32 %v2966, %v3136
      %v3138 = vpop.f32.mrf.mxu0
      %3139 = vmatprep.mubr.bf16.mxu0 0
      %3140 = vmatmul.mubr.bf16.gmra.mxu0 %v2869
      %v3141 = vpop.f32.mrf.mxu0
      %v3142 = vadd.f32 %v2971, %v3141
      %v3143 = vpop.f32.mrf.mxu0
      %v3144 = vpop.f32.mrf.mxu0
      %v3145 = vadd.f32 %v2974, %v3144
      %v3146 = vpop.f32.mrf.mxu0
      %3147 = vmatprep.mubr.bf16.mxu0 0
      %3148 = vmatmul.mubr.bf16.gmra.mxu0 %v2871
      %v3149 = vpop.f32.mrf.mxu0
      %v3150 = vadd.f32 %v2979, %v3149
      %v3151 = vpop.f32.mrf.mxu0
      %v3152 = vpop.f32.mrf.mxu0
      %v3153 = vadd.f32 %v2982, %v3152
      %v3154 = vpop.f32.mrf.mxu0
      %3155 = vmatprep.mubr.bf16.mxu0 0
      %3156 = vmatmul.mubr.bf16.gmra.mxu0 %v2873
      %v3157 = vpop.f32.mrf.mxu0
      %v3158 = vadd.f32 %v2987, %v3157
      %v3159 = vpop.f32.mrf.mxu0
      %v3160 = vpop.f32.mrf.mxu0
      %v3161 = vadd.f32 %v2990, %v3160
      %v3162 = vpop.f32.mrf.mxu0
      %3163 = vmatprep.mubr.bf16.mxu0 0
      %3164 = vmatmul.mubr.bf16.gmra.mxu0 %v2875
      %v3165 = vpop.f32.mrf.mxu0
      %v3166 = vadd.f32 %v2995, %v3165
      %v3167 = vpop.f32.mrf.mxu0
      %v3168 = vpop.f32.mrf.mxu0
      %v3169 = vadd.f32 %v2998, %v3168
      %v3170 = vpop.f32.mrf.mxu0
      %3171 = vmatprep.mubr.bf16.mxu0 0
      %3172 = vmatmul.mubr.bf16.gmra.mxu0 %v2877
      %v3173 = vpop.f32.mrf.mxu0
      %v3174 = vadd.f32 %v3003, %v3173
      %v3175 = vpop.f32.mrf.mxu0
      %v3176 = vpop.f32.mrf.mxu0
      %v3177 = vadd.f32 %v3006, %v3176
      %v3178 = vpop.f32.mrf.mxu0
      %3179 = vmatprep.mubr.bf16.mxu0 0
      %3180 = vmatmul.mubr.bf16.gmra.mxu0 %v2879
      %v3181 = vpop.f32.mrf.mxu0
      %v3182 = vadd.f32 %v3011, %v3181
      %v3183 = vpop.f32.mrf.mxu0
      %v3184 = vpop.f32.mrf.mxu0
      %v3185 = vadd.f32 %v3014, %v3184
      %v3186 = vpop.f32.mrf.mxu0
      %3187 = vmatprep.mubr.bf16.mxu0 0
      %3188 = vmatmul.mubr.bf16.gmra.mxu0 %v2881
      %v3189 = vpop.f32.mrf.mxu0
      %v3190 = vadd.f32 %v3019, %v3189
      %v3191 = vpop.f32.mrf.mxu0
      %v3192 = vpop.f32.mrf.mxu0
      %v3193 = vadd.f32 %v3022, %v3192
      %v3194 = vpop.f32.mrf.mxu0
      %3195 = vmatprep.mubr.bf16.mxu0 0
      %3196 = vmatmul.mubr.bf16.gmra.mxu0 %v2883
      %v3197 = vpop.f32.mrf.mxu0
      %v3198 = vadd.f32 %v3027, %v3197
      %v3199 = vpop.f32.mrf.mxu0
      %v3200 = vpop.f32.mrf.mxu0
      %v3201 = vadd.f32 %v3030, %v3200
      %v3202 = vpop.f32.mrf.mxu0
      %3203 = vmatprep.mubr.bf16.mxu0 0
      %3204 = vmatmul.mubr.bf16.gmra.mxu0 %v2885
      %v3205 = vpop.f32.mrf.mxu0
      %v3206 = vadd.f32 %v3035, %v3205
      %v3207 = vpop.f32.mrf.mxu0
      %v3208 = vpop.f32.mrf.mxu0
      %v3209 = vadd.f32 %v3038, %v3208
      %v3210 = vpop.f32.mrf.mxu0
      %3211 = vmatprep.mubr.bf16.mxu0 0
      %3212 = vmatmul.mubr.bf16.gmra.mxu0 %v2887
      %v3213 = vpop.f32.mrf.mxu0
      %v3214 = vadd.f32 %v3043, %v3213
      %v3215 = vpop.f32.mrf.mxu0
      %v3216 = vpop.f32.mrf.mxu0
      %v3217 = vadd.f32 %v3046, %v3216
      %v3218 = vpop.f32.mrf.mxu0
      %3219 = vmatprep.mubr.bf16.mxu0 0
      %3220 = vmatmul.mubr.bf16.gmra.mxu0 %v2889
      %v3221 = vpop.f32.mrf.mxu0
      %v3222 = vadd.f32 %v3051, %v3221
      %v3223 = vpop.f32.mrf.mxu0
      %v3224 = vpop.f32.mrf.mxu0
      %v3225 = vadd.f32 %v3054, %v3224
      %v3226 = vpop.f32.mrf.mxu0
      %3227 = vdwg.mxu0
      %s3228 = scalar_lea.vmem %s5, 16
      %v3229 = vld [vmem:[%s3228] sm:$0xf]
      %v3230 = vld [vmem:[%s3228 + $0x4] sm:$0x3]
      %v3233 = vunpack.c.l.b16 %v3229
      %v3234 = vunpack.c.l.b16 %v3230
      %v3235 = vpack.c.b16 %v3234, %v3233
      %v3236 = vsel %vm1253, %v2850, 0
      %v3239 = vsel %vm1290, %v3235, 0
      %3241 = vmatprep.subr.bf16.mxu0 0
      %3242 = vmatpush1.bf16.msra.mxu0 0
      %3243 = vmatprep.subr.bf16.mxu0 0
      %3244 = vmatpush1.bf16.msra.mxu0 0
      %3245 = vmatprep.subr.bf16.mxu0 0
      %3246 = vmatpush1.bf16.msra.mxu0 0
      %3247 = vmatprep.subr.bf16.mxu0 0
      %3248 = vmatpush1.bf16.msra.mxu0 0
      %3249 = vmatprep.subr.bf16.mxu0 0
      %3250 = vmatpush1.bf16.msra.mxu0 0
      %3251 = vmatprep.subr.bf16.mxu0 0
      %3252 = vmatpush1.bf16.msra.mxu0 0
      %3253 = vmatprep.subr.bf16.mxu0 0
      %3254 = vmatpush1.bf16.msra.mxu0 0
      %3255 = vmatprep.subr.bf16.mxu0 0
      %3256 = vmatpush1.bf16.msra.mxu0 %v3239
      %3257 = vmatprep.subr.bf16.mxu0 0
      %3258 = vmatpush2.bf16.msra.mxu0 0
      %3259 = vmatprep.subr.bf16.mxu0 0
      %3260 = vmatpush2.bf16.msra.mxu0 0
      %3261 = vmatprep.subr.bf16.mxu0 0
      %3262 = vmatpush2.bf16.msra.mxu0 0
      %3263 = vmatprep.subr.bf16.mxu0 0
      %3264 = vmatpush2.bf16.msra.mxu0 0
      %3265 = vmatprep.subr.bf16.mxu0 0
      %3266 = vmatpush2.bf16.msra.mxu0 0
      %3267 = vmatprep.subr.bf16.mxu0 0
      %3268 = vmatpush2.bf16.msra.mxu0 0
      %3269 = vmatprep.subr.bf16.mxu0 0
      %3270 = vmatpush2.bf16.msra.mxu0 0
      %3271 = vmatprep.subr.bf16.mxu0 0
      %3272 = vmatpush2.bf16.msra.mxu0 0
      %3273 = vmatprep.mubr.bf16.mxu0 0
      %3274 = vmatmul.mubr.bf16.gmra.mxu0 %v2863
      %v3275 = vpop.f32.mrf.mxu0
      %v3276 = vadd.f32 0.0, %v3275
      %v3277 = vpop.f32.mrf.mxu0
      %v3278 = vpop.f32.mrf.mxu0
      %v3279 = vadd.f32 0.0, %v3278
      %v3280 = vpop.f32.mrf.mxu0
      %3281 = vmatprep.mubr.bf16.mxu0 0
      %3282 = vmatmul.mubr.bf16.gmra.mxu0 %v2865
      %v3283 = vpop.f32.mrf.mxu0
      %v3284 = vadd.f32 0.0, %v3283
      %v3285 = vpop.f32.mrf.mxu0
      %v3286 = vpop.f32.mrf.mxu0
      %v3287 = vadd.f32 0.0, %v3286
      %v3288 = vpop.f32.mrf.mxu0
      %3289 = vmatprep.mubr.bf16.mxu0 0
      %3290 = vmatmul.mubr.bf16.gmra.mxu0 %v2867
      %v3291 = vpop.f32.mrf.mxu0
      %v3292 = vadd.f32 0.0, %v3291
      %v3293 = vpop.f32.mrf.mxu0
      %v3294 = vpop.f32.mrf.mxu0
      %v3295 = vadd.f32 0.0, %v3294
      %v3296 = vpop.f32.mrf.mxu0
      %3297 = vmatprep.mubr.bf16.mxu0 0
      %3298 = vmatmul.mubr.bf16.gmra.mxu0 %v2869
      %v3299 = vpop.f32.mrf.mxu0
      %v3300 = vadd.f32 0.0, %v3299
      %v3301 = vpop.f32.mrf.mxu0
      %v3302 = vpop.f32.mrf.mxu0
      %v3303 = vadd.f32 0.0, %v3302
      %v3304 = vpop.f32.mrf.mxu0
      %3305 = vmatprep.mubr.bf16.mxu0 0
      %3306 = vmatmul.mubr.bf16.gmra.mxu0 %v2871
      %v3307 = vpop.f32.mrf.mxu0
      %v3308 = vadd.f32 0.0, %v3307
      %v3309 = vpop.f32.mrf.mxu0
      %v3310 = vpop.f32.mrf.mxu0
      %v3311 = vadd.f32 0.0, %v3310
      %v3312 = vpop.f32.mrf.mxu0
      %3313 = vmatprep.mubr.bf16.mxu0 0
      %3314 = vmatmul.mubr.bf16.gmra.mxu0 %v2873
      %v3315 = vpop.f32.mrf.mxu0
      %v3316 = vadd.f32 0.0, %v3315
      %v3317 = vpop.f32.mrf.mxu0
      %v3318 = vpop.f32.mrf.mxu0
      %v3319 = vadd.f32 0.0, %v3318
      %v3320 = vpop.f32.mrf.mxu0
      %3321 = vmatprep.mubr.bf16.mxu0 0
      %3322 = vmatmul.mubr.bf16.gmra.mxu0 %v2875
      %v3323 = vpop.f32.mrf.mxu0
      %v3324 = vadd.f32 0.0, %v3323
      %v3325 = vpop.f32.mrf.mxu0
      %v3326 = vpop.f32.mrf.mxu0
      %v3327 = vadd.f32 0.0, %v3326
      %v3328 = vpop.f32.mrf.mxu0
      %3329 = vmatprep.mubr.bf16.mxu0 0
      %3330 = vmatmul.mubr.bf16.gmra.mxu0 %v2877
      %v3331 = vpop.f32.mrf.mxu0
      %v3332 = vadd.f32 0.0, %v3331
      %v3333 = vpop.f32.mrf.mxu0
      %v3334 = vpop.f32.mrf.mxu0
      %v3335 = vadd.f32 0.0, %v3334
      %v3336 = vpop.f32.mrf.mxu0
      %3337 = vmatprep.mubr.bf16.mxu0 0
      %3338 = vmatmul.mubr.bf16.gmra.mxu0 %v2879
      %v3339 = vpop.f32.mrf.mxu0
      %v3340 = vadd.f32 0.0, %v3339
      %v3341 = vpop.f32.mrf.mxu0
      %v3342 = vpop.f32.mrf.mxu0
      %v3343 = vadd.f32 0.0, %v3342
      %v3344 = vpop.f32.mrf.mxu0
      %3345 = vmatprep.mubr.bf16.mxu0 0
      %3346 = vmatmul.mubr.bf16.gmra.mxu0 %v2881
      %v3347 = vpop.f32.mrf.mxu0
      %v3348 = vadd.f32 0.0, %v3347
      %v3349 = vpop.f32.mrf.mxu0
      %v3350 = vpop.f32.mrf.mxu0
      %v3351 = vadd.f32 0.0, %v3350
      %v3352 = vpop.f32.mrf.mxu0
      %3353 = vmatprep.mubr.bf16.mxu0 0
      %3354 = vmatmul.mubr.bf16.gmra.mxu0 %v2883
      %v3355 = vpop.f32.mrf.mxu0
      %v3356 = vadd.f32 0.0, %v3355
      %v3357 = vpop.f32.mrf.mxu0
      %v3358 = vpop.f32.mrf.mxu0
      %v3359 = vadd.f32 0.0, %v3358
      %v3360 = vpop.f32.mrf.mxu0
      %3361 = vmatprep.mubr.bf16.mxu0 0
      %3362 = vmatmul.mubr.bf16.gmra.mxu0 %v2885
      %v3363 = vpop.f32.mrf.mxu0
      %v3364 = vadd.f32 0.0, %v3363
      %v3365 = vpop.f32.mrf.mxu0
      %v3366 = vpop.f32.mrf.mxu0
      %v3367 = vadd.f32 0.0, %v3366
      %v3368 = vpop.f32.mrf.mxu0
      %3369 = vmatprep.mubr.bf16.mxu0 0
      %3370 = vmatmul.mubr.bf16.gmra.mxu0 %v2887
      %v3371 = vpop.f32.mrf.mxu0
      %v3372 = vadd.f32 0.0, %v3371
      %v3373 = vpop.f32.mrf.mxu0
      %v3374 = vpop.f32.mrf.mxu0
      %v3375 = vadd.f32 0.0, %v3374
      %v3376 = vpop.f32.mrf.mxu0
      %3377 = vmatprep.mubr.bf16.mxu0 0
      %3378 = vmatmul.mubr.bf16.gmra.mxu0 %v2889
      %v3379 = vpop.f32.mrf.mxu0
      %v3380 = vadd.f32 0.0, %v3379
      %v3381 = vpop.f32.mrf.mxu0
      %v3382 = vpop.f32.mrf.mxu0
      %v3383 = vadd.f32 0.0, %v3382
      %v3384 = vpop.f32.mrf.mxu0
      %3385 = vmatprep.mubr.bf16.mxu0 0
      %3386 = vmatmul.mubr.bf16.gmra.mxu0 %v2891
      %v3387 = vpop.f32.mrf.mxu0
      %v3388 = vadd.f32 0.0, %v3387
      %v3389 = vpop.f32.mrf.mxu0
      %v3390 = vpop.f32.mrf.mxu0
      %v3391 = vadd.f32 0.0, %v3390
      %v3392 = vpop.f32.mrf.mxu0
      %3393 = vmatprep.mubr.bf16.mxu0 0
      %3394 = vmatmul.mubr.bf16.gmra.mxu0 %v3236
      %v3395 = vpop.f32.mrf.mxu0
      %v3396 = vadd.f32 0.0, %v3395
      %v3397 = vpop.f32.mrf.mxu0
      %v3398 = vpop.f32.mrf.mxu0
      %v3399 = vadd.f32 0.0, %v3398
      %v3400 = vpop.f32.mrf.mxu0
      %3401 = vdwg.mxu0
      %v3402 = vadd.f32 %v3102, %v3276
      %v3403 = vadd.f32 %v3105, %v3279
      %v3404 = vadd.f32 %v3110, %v3284
      %v3405 = vadd.f32 %v3113, %v3287
      %v3406 = vadd.f32 %v3118, %v3292
      %v3407 = vadd.f32 %v3121, %v3295
      %v3408 = vadd.f32 %v3126, %v3300
      %v3409 = vadd.f32 %v3129, %v3303
      %v3410 = vadd.f32 %v3134, %v3308
      %v3411 = vadd.f32 %v3137, %v3311
      %v3412 = vadd.f32 %v3142, %v3316
      %v3413 = vadd.f32 %v3145, %v3319
      %v3414 = vadd.f32 %v3150, %v3324
      %v3415 = vadd.f32 %v3153, %v3327
      %v3416 = vadd.f32 %v3158, %v3332
      %v3417 = vadd.f32 %v3161, %v3335
      %v3418 = vadd.f32 %v3166, %v3340
      %v3419 = vadd.f32 %v3169, %v3343
      %v3420 = vadd.f32 %v3174, %v3348
      %v3421 = vadd.f32 %v3177, %v3351
      %v3422 = vadd.f32 %v3182, %v3356
      %v3423 = vadd.f32 %v3185, %v3359
      %v3424 = vadd.f32 %v3190, %v3364
      %v3425 = vadd.f32 %v3193, %v3367
      %v3426 = vadd.f32 %v3198, %v3372
      %v3427 = vadd.f32 %v3201, %v3375
      %v3428 = vadd.f32 %v3206, %v3380
      %v3429 = vadd.f32 %v3209, %v3383
      %v3430 = vadd.f32 %v3214, %v3388
      %v3431 = vadd.f32 %v3217, %v3391
      %v3432 = vadd.f32 %v3222, %v3396
      %v3433 = vadd.f32 %v3225, %v3399
      %v3434 = vld [vmem:[%s6] sm:$0x1]
      %v3436 = vlaneseq
      %v3437 = vshrl.u32 %v3436, 7
      %v3438 = vsub.s32 0, %v3437
      %v3439 = vrot.slane %v3434, %v3438
      %v3441 = vadd.f32 %v3402, %v3439
      %v3442 = vadd.f32 %v3403, %v3439
      %v3443 = vadd.f32 %v3404, %v3439
      %v3444 = vadd.f32 %v3405, %v3439
      %v3445 = vadd.f32 %v3406, %v3439
      %v3446 = vadd.f32 %v3407, %v3439
      %v3447 = vadd.f32 %v3408, %v3439
      %v3448 = vadd.f32 %v3409, %v3439
      %v3449 = vadd.f32 %v3410, %v3439
      %v3450 = vadd.f32 %v3411, %v3439
      %v3451 = vadd.f32 %v3412, %v3439
      %v3452 = vadd.f32 %v3413, %v3439
      %v3453 = vadd.f32 %v3414, %v3439
      %v3454 = vadd.f32 %v3415, %v3439
      %v3455 = vadd.f32 %v3416, %v3439
      %v3456 = vadd.f32 %v3417, %v3439
      %v3457 = vadd.f32 %v3418, %v3439
      %v3458 = vadd.f32 %v3419, %v3439
      %v3459 = vadd.f32 %v3420, %v3439
      %v3460 = vadd.f32 %v3421, %v3439
      %v3461 = vadd.f32 %v3422, %v3439
      %v3462 = vadd.f32 %v3423, %v3439
      %v3463 = vadd.f32 %v3424, %v3439
      %v3464 = vadd.f32 %v3425, %v3439
      %v3465 = vadd.f32 %v3426, %v3439
      %v3466 = vadd.f32 %v3427, %v3439
      %v3467 = vadd.f32 %v3428, %v3439
      %v3468 = vadd.f32 %v3429, %v3439
      %v3469 = vadd.f32 %v3430, %v3439
      %v3470 = vadd.f32 %v3431, %v3439
      %v3471 = vadd.f32 %v3432, %v3439
      %v3472 = vadd.f32 %v3433, %v3439
      %v3473 = vmin.f32 %v3441, 20.0
      %v3474 = vmin.f32 %v3442, 20.0
      %v3475 = vmin.f32 %v3443, 20.0
      %v3476 = vmin.f32 %v3444, 20.0
      %v3477 = vmin.f32 %v3445, 20.0
      %v3478 = vmin.f32 %v3446, 20.0
      %v3479 = vmin.f32 %v3447, 20.0
      %v3480 = vmin.f32 %v3448, 20.0
      %v3481 = vmin.f32 %v3449, 20.0
      %v3482 = vmin.f32 %v3450, 20.0
      %v3483 = vmin.f32 %v3451, 20.0
      %v3484 = vmin.f32 %v3452, 20.0
      %v3485 = vmin.f32 %v3453, 20.0
      %v3486 = vmin.f32 %v3454, 20.0
      %v3487 = vmin.f32 %v3455, 20.0
      %v3488 = vmin.f32 %v3456, 20.0
      %v3489 = vmin.f32 %v3457, 20.0
      %v3490 = vmin.f32 %v3458, 20.0
      %v3491 = vmin.f32 %v3459, 20.0
      %v3492 = vmin.f32 %v3460, 20.0
      %v3493 = vmin.f32 %v3461, 20.0
      %v3494 = vmin.f32 %v3462, 20.0
      %v3495 = vmin.f32 %v3463, 20.0
      %v3496 = vmin.f32 %v3464, 20.0
      %v3497 = vmin.f32 %v3465, 20.0
      %v3498 = vmin.f32 %v3466, 20.0
      %v3499 = vmin.f32 %v3467, 20.0
      %v3500 = vmin.f32 %v3468, 20.0
      %v3501 = vmin.f32 %v3469, 20.0
      %v3502 = vmin.f32 %v3470, 20.0
      %v3503 = vmin.f32 %v3471, 20.0
      %v3504 = vmin.f32 %v3472, 20.0
      %v3505 = vmul.f32 %v3473, 1.442695
      %v3506 = vpow.pop %v3505
      %v3507 = vmul.f32 %v3474, 1.442695
      %v3508 = vpow.pop %v3507
      %v3509 = vmul.f32 %v3475, 1.442695
      %v3510 = vpow.pop %v3509
      %v3511 = vmul.f32 %v3476, 1.442695
      %v3512 = vpow.pop %v3511
      %v3513 = vmul.f32 %v3477, 1.442695
      %v3514 = vpow.pop %v3513
      %v3515 = vmul.f32 %v3478, 1.442695
      %v3516 = vpow.pop %v3515
      %v3517 = vmul.f32 %v3479, 1.442695
      %v3518 = vpow.pop %v3517
      %v3519 = vmul.f32 %v3480, 1.442695
      %v3520 = vpow.pop %v3519
      %v3521 = vmul.f32 %v3481, 1.442695
      %v3522 = vpow.pop %v3521
      %v3523 = vmul.f32 %v3482, 1.442695
      %v3524 = vpow.pop %v3523
      %v3525 = vmul.f32 %v3483, 1.442695
      %v3526 = vpow.pop %v3525
      %v3527 = vmul.f32 %v3484, 1.442695
      %v3528 = vpow.pop %v3527
      %v3529 = vmul.f32 %v3485, 1.442695
      %v3530 = vpow.pop %v3529
      %v3531 = vmul.f32 %v3486, 1.442695
      %v3532 = vpow.pop %v3531
      %v3533 = vmul.f32 %v3487, 1.442695
      %v3534 = vpow.pop %v3533
      %v3535 = vmul.f32 %v3488, 1.442695
      %v3536 = vpow.pop %v3535
      %v3537 = vmul.f32 %v3489, 1.442695
      %v3538 = vpow.pop %v3537
      %v3539 = vmul.f32 %v3490, 1.442695
      %v3540 = vpow.pop %v3539
      %v3541 = vmul.f32 %v3491, 1.442695
      %v3542 = vpow.pop %v3541
      %v3543 = vmul.f32 %v3492, 1.442695
      %v3544 = vpow.pop %v3543
      %v3545 = vmul.f32 %v3493, 1.442695
      %v3546 = vpow.pop %v3545
      %v3547 = vmul.f32 %v3494, 1.442695
      %v3548 = vpow.pop %v3547
      %v3549 = vmul.f32 %v3495, 1.442695
      %v3550 = vpow.pop %v3549
      %v3551 = vmul.f32 %v3496, 1.442695
      %v3552 = vpow.pop %v3551
      %v3553 = vmul.f32 %v3497, 1.442695
      %v3554 = vpow.pop %v3553
      %v3555 = vmul.f32 %v3498, 1.442695
      %v3556 = vpow.pop %v3555
      %v3557 = vmul.f32 %v3499, 1.442695
      %v3558 = vpow.pop %v3557
      %v3559 = vmul.f32 %v3500, 1.442695
      %v3560 = vpow.pop %v3559
      %v3561 = vmul.f32 %v3501, 1.442695
      %v3562 = vpow.pop %v3561
      %v3563 = vmul.f32 %v3502, 1.442695
      %v3564 = vpow.pop %v3563
      %v3565 = vmul.f32 %v3503, 1.442695
      %v3566 = vpow.pop %v3565
      %v3567 = vmul.f32 %v3504, 1.442695
      %v3568 = vpow.pop %v3567
      %v3569 = vadd.f32 %v3506, 1.0
      %v3570 = vadd.f32 %v3508, 1.0
      %v3571 = vadd.f32 %v3510, 1.0
      %v3572 = vadd.f32 %v3512, 1.0
      %v3573 = vadd.f32 %v3514, 1.0
      %v3574 = vadd.f32 %v3516, 1.0
      %v3575 = vadd.f32 %v3518, 1.0
      %v3576 = vadd.f32 %v3520, 1.0
      %v3577 = vadd.f32 %v3522, 1.0
      %v3578 = vadd.f32 %v3524, 1.0
      %v3579 = vadd.f32 %v3526, 1.0
      %v3580 = vadd.f32 %v3528, 1.0
      %v3581 = vadd.f32 %v3530, 1.0
      %v3582 = vadd.f32 %v3532, 1.0
      %v3583 = vadd.f32 %v3534, 1.0
      %v3584 = vadd.f32 %v3536, 1.0
      %v3585 = vadd.f32 %v3538, 1.0
      %v3586 = vadd.f32 %v3540, 1.0
      %v3587 = vadd.f32 %v3542, 1.0
      %v3588 = vadd.f32 %v3544, 1.0
      %v3589 = vadd.f32 %v3546, 1.0
      %v3590 = vadd.f32 %v3548, 1.0
      %v3591 = vadd.f32 %v3550, 1.0
      %v3592 = vadd.f32 %v3552, 1.0
      %v3593 = vadd.f32 %v3554, 1.0
      %v3594 = vadd.f32 %v3556, 1.0
      %v3595 = vadd.f32 %v3558, 1.0
      %v3596 = vadd.f32 %v3560, 1.0
      %v3597 = vadd.f32 %v3562, 1.0
      %v3598 = vadd.f32 %v3564, 1.0
      %v3599 = vadd.f32 %v3566, 1.0
      %v3600 = vadd.f32 %v3568, 1.0
      %v3601 = vmul.f32 %v3569, %v3569
      %v3602 = vmul.f32 %v3570, %v3570
      %v3603 = vmul.f32 %v3571, %v3571
      %v3604 = vmul.f32 %v3572, %v3572
      %v3605 = vmul.f32 %v3573, %v3573
      %v3606 = vmul.f32 %v3574, %v3574
      %v3607 = vmul.f32 %v3575, %v3575
      %v3608 = vmul.f32 %v3576, %v3576
      %v3609 = vmul.f32 %v3577, %v3577
      %v3610 = vmul.f32 %v3578, %v3578
      %v3611 = vmul.f32 %v3579, %v3579
      %v3612 = vmul.f32 %v3580, %v3580
      %v3613 = vmul.f32 %v3581, %v3581
      %v3614 = vmul.f32 %v3582, %v3582
      %v3615 = vmul.f32 %v3583, %v3583
      %v3616 = vmul.f32 %v3584, %v3584
      %v3617 = vmul.f32 %v3585, %v3585
      %v3618 = vmul.f32 %v3586, %v3586
      %v3619 = vmul.f32 %v3587, %v3587
      %v3620 = vmul.f32 %v3588, %v3588
      %v3621 = vmul.f32 %v3589, %v3589
      %v3622 = vmul.f32 %v3590, %v3590
      %v3623 = vmul.f32 %v3591, %v3591
      %v3624 = vmul.f32 %v3592, %v3592
      %v3625 = vmul.f32 %v3593, %v3593
      %v3626 = vmul.f32 %v3594, %v3594
      %v3627 = vmul.f32 %v3595, %v3595
      %v3628 = vmul.f32 %v3596, %v3596
      %v3629 = vmul.f32 %v3597, %v3597
      %v3630 = vmul.f32 %v3598, %v3598
      %v3631 = vmul.f32 %v3599, %v3599
      %v3632 = vmul.f32 %v3600, %v3600
      %v3633 = vsub.f32 %v3601, 1.0
      %v3634 = vsub.f32 %v3602, 1.0
      %v3635 = vsub.f32 %v3603, 1.0
      %v3636 = vsub.f32 %v3604, 1.0
      %v3637 = vsub.f32 %v3605, 1.0
      %v3638 = vsub.f32 %v3606, 1.0
      %v3639 = vsub.f32 %v3607, 1.0
      %v3640 = vsub.f32 %v3608, 1.0
      %v3641 = vsub.f32 %v3609, 1.0
      %v3642 = vsub.f32 %v3610, 1.0
      %v3643 = vsub.f32 %v3611, 1.0
      %v3644 = vsub.f32 %v3612, 1.0
      %v3645 = vsub.f32 %v3613, 1.0
      %v3646 = vsub.f32 %v3614, 1.0
      %v3647 = vsub.f32 %v3615, 1.0
      %v3648 = vsub.f32 %v3616, 1.0
      %v3649 = vsub.f32 %v3617, 1.0
      %v3650 = vsub.f32 %v3618, 1.0
      %v3651 = vsub.f32 %v3619, 1.0
      %v3652 = vsub.f32 %v3620, 1.0
      %v3653 = vsub.f32 %v3621, 1.0
      %v3654 = vsub.f32 %v3622, 1.0
      %v3655 = vsub.f32 %v3623, 1.0
      %v3656 = vsub.f32 %v3624, 1.0
      %v3657 = vsub.f32 %v3625, 1.0
      %v3658 = vsub.f32 %v3626, 1.0
      %v3659 = vsub.f32 %v3627, 1.0
      %v3660 = vsub.f32 %v3628, 1.0
      %v3661 = vsub.f32 %v3629, 1.0
      %v3662 = vsub.f32 %v3630, 1.0
      %v3663 = vsub.f32 %v3631, 1.0
      %v3664 = vsub.f32 %v3632, 1.0
      %v3665 = vadd.f32 %v3601, 1.0
      %v3666 = vadd.f32 %v3602, 1.0
      %v3667 = vadd.f32 %v3603, 1.0
      %v3668 = vadd.f32 %v3604, 1.0
      %v3669 = vadd.f32 %v3605, 1.0
      %v3670 = vadd.f32 %v3606, 1.0
      %v3671 = vadd.f32 %v3607, 1.0
      %v3672 = vadd.f32 %v3608, 1.0
      %v3673 = vadd.f32 %v3609, 1.0
      %v3674 = vadd.f32 %v3610, 1.0
      %v3675 = vadd.f32 %v3611, 1.0
      %v3676 = vadd.f32 %v3612, 1.0
      %v3677 = vadd.f32 %v3613, 1.0
      %v3678 = vadd.f32 %v3614, 1.0
      %v3679 = vadd.f32 %v3615, 1.0
      %v3680 = vadd.f32 %v3616, 1.0
      %v3681 = vadd.f32 %v3617, 1.0
      %v3682 = vadd.f32 %v3618, 1.0
      %v3683 = vadd.f32 %v3619, 1.0
      %v3684 = vadd.f32 %v3620, 1.0
      %v3685 = vadd.f32 %v3621, 1.0
      %v3686 = vadd.f32 %v3622, 1.0
      %v3687 = vadd.f32 %v3623, 1.0
      %v3688 = vadd.f32 %v3624, 1.0
      %v3689 = vadd.f32 %v3625, 1.0
      %v3690 = vadd.f32 %v3626, 1.0
      %v3691 = vadd.f32 %v3627, 1.0
      %v3692 = vadd.f32 %v3628, 1.0
      %v3693 = vadd.f32 %v3629, 1.0
      %v3694 = vadd.f32 %v3630, 1.0
      %v3695 = vadd.f32 %v3631, 1.0
      %v3696 = vadd.f32 %v3632, 1.0
      %v3697 = vrcp.pop %v3665
      %v3698 = vrcp.pop %v3666
      %v3699 = vrcp.pop %v3667
      %v3700 = vrcp.pop %v3668
      %v3701 = vrcp.pop %v3669
      %v3702 = vrcp.pop %v3670
      %v3703 = vrcp.pop %v3671
      %v3704 = vrcp.pop %v3672
      %v3705 = vrcp.pop %v3673
      %v3706 = vrcp.pop %v3674
      %v3707 = vrcp.pop %v3675
      %v3708 = vrcp.pop %v3676
      %v3709 = vrcp.pop %v3677
      %v3710 = vrcp.pop %v3678
      %v3711 = vrcp.pop %v3679
      %v3712 = vrcp.pop %v3680
      %v3713 = vrcp.pop %v3681
      %v3714 = vrcp.pop %v3682
      %v3715 = vrcp.pop %v3683
      %v3716 = vrcp.pop %v3684
      %v3717 = vrcp.pop %v3685
      %v3718 = vrcp.pop %v3686
      %v3719 = vrcp.pop %v3687
      %v3720 = vrcp.pop %v3688
      %v3721 = vrcp.pop %v3689
      %v3722 = vrcp.pop %v3690
      %v3723 = vrcp.pop %v3691
      %v3724 = vrcp.pop %v3692
      %v3725 = vrcp.pop %v3693
      %v3726 = vrcp.pop %v3694
      %v3727 = vrcp.pop %v3695
      %v3728 = vrcp.pop %v3696
      %v3729 = vmul.f32 %v3633, %v3697
      %v3730 = vmul.f32 %v3634, %v3698
      %v3731 = vmul.f32 %v3635, %v3699
      %v3732 = vmul.f32 %v3636, %v3700
      %v3733 = vmul.f32 %v3637, %v3701
      %v3734 = vmul.f32 %v3638, %v3702
      %v3735 = vmul.f32 %v3639, %v3703
      %v3736 = vmul.f32 %v3640, %v3704
      %v3737 = vmul.f32 %v3641, %v3705
      %v3738 = vmul.f32 %v3642, %v3706
      %v3739 = vmul.f32 %v3643, %v3707
      %v3740 = vmul.f32 %v3644, %v3708
      %v3741 = vmul.f32 %v3645, %v3709
      %v3742 = vmul.f32 %v3646, %v3710
      %v3743 = vmul.f32 %v3647, %v3711
      %v3744 = vmul.f32 %v3648, %v3712
      %v3745 = vmul.f32 %v3649, %v3713
      %v3746 = vmul.f32 %v3650, %v3714
      %v3747 = vmul.f32 %v3651, %v3715
      %v3748 = vmul.f32 %v3652, %v3716
      %v3749 = vmul.f32 %v3653, %v3717
      %v3750 = vmul.f32 %v3654, %v3718
      %v3751 = vmul.f32 %v3655, %v3719
      %v3752 = vmul.f32 %v3656, %v3720
      %v3753 = vmul.f32 %v3657, %v3721
      %v3754 = vmul.f32 %v3658, %v3722
      %v3755 = vmul.f32 %v3659, %v3723
      %v3756 = vmul.f32 %v3660, %v3724
      %v3757 = vmul.f32 %v3661, %v3725
      %v3758 = vmul.f32 %v3662, %v3726
      %v3759 = vmul.f32 %v3663, %v3727
      %v3760 = vmul.f32 %v3664, %v3728
      %vm3761 = vcmp.gt.f32.partialorder %v3441, 20.0
      %vm3762 = vcmp.gt.f32.partialorder %v3442, 20.0
      %vm3763 = vcmp.gt.f32.partialorder %v3443, 20.0
      %vm3764 = vcmp.gt.f32.partialorder %v3444, 20.0
      %vm3765 = vcmp.gt.f32.partialorder %v3445, 20.0
      %vm3766 = vcmp.gt.f32.partialorder %v3446, 20.0
      %vm3767 = vcmp.gt.f32.partialorder %v3447, 20.0
      %vm3768 = vcmp.gt.f32.partialorder %v3448, 20.0
      %vm3769 = vcmp.gt.f32.partialorder %v3449, 20.0
      %vm3770 = vcmp.gt.f32.partialorder %v3450, 20.0
      %vm3771 = vcmp.gt.f32.partialorder %v3451, 20.0
      %vm3772 = vcmp.gt.f32.partialorder %v3452, 20.0
      %vm3773 = vcmp.gt.f32.partialorder %v3453, 20.0
      %vm3774 = vcmp.gt.f32.partialorder %v3454, 20.0
      %vm3775 = vcmp.gt.f32.partialorder %v3455, 20.0
      %vm3776 = vcmp.gt.f32.partialorder %v3456, 20.0
      %vm3777 = vcmp.gt.f32.partialorder %v3457, 20.0
      %vm3778 = vcmp.gt.f32.partialorder %v3458, 20.0
      %vm3779 = vcmp.gt.f32.partialorder %v3459, 20.0
      %vm3780 = vcmp.gt.f32.partialorder %v3460, 20.0
      %vm3781 = vcmp.gt.f32.partialorder %v3461, 20.0
      %vm3782 = vcmp.gt.f32.partialorder %v3462, 20.0
      %vm3783 = vcmp.gt.f32.partialorder %v3463, 20.0
      %vm3784 = vcmp.gt.f32.partialorder %v3464, 20.0
      %vm3785 = vcmp.gt.f32.partialorder %v3465, 20.0
      %vm3786 = vcmp.gt.f32.partialorder %v3466, 20.0
      %vm3787 = vcmp.gt.f32.partialorder %v3467, 20.0
      %vm3788 = vcmp.gt.f32.partialorder %v3468, 20.0
      %vm3789 = vcmp.gt.f32.partialorder %v3469, 20.0
      %vm3790 = vcmp.gt.f32.partialorder %v3470, 20.0
      %vm3791 = vcmp.gt.f32.partialorder %v3471, 20.0
      %vm3792 = vcmp.gt.f32.partialorder %v3472, 20.0
      %v3793 = vsel %vm3761, 1.0, %v3729
      %v3794 = vsel %vm3762, 1.0, %v3730
      %v3795 = vsel %vm3763, 1.0, %v3731
      %v3796 = vsel %vm3764, 1.0, %v3732
      %v3797 = vsel %vm3765, 1.0, %v3733
      %v3798 = vsel %vm3766, 1.0, %v3734
      %v3799 = vsel %vm3767, 1.0, %v3735
      %v3800 = vsel %vm3768, 1.0, %v3736
      %v3801 = vsel %vm3769, 1.0, %v3737
      %v3802 = vsel %vm3770, 1.0, %v3738
      %v3803 = vsel %vm3771, 1.0, %v3739
      %v3804 = vsel %vm3772, 1.0, %v3740
      %v3805 = vsel %vm3773, 1.0, %v3741
      %v3806 = vsel %vm3774, 1.0, %v3742
      %v3807 = vsel %vm3775, 1.0, %v3743
      %v3808 = vsel %vm3776, 1.0, %v3744
      %v3809 = vsel %vm3777, 1.0, %v3745
      %v3810 = vsel %vm3778, 1.0, %v3746
      %v3811 = vsel %vm3779, 1.0, %v3747
      %v3812 = vsel %vm3780, 1.0, %v3748
      %v3813 = vsel %vm3781, 1.0, %v3749
      %v3814 = vsel %vm3782, 1.0, %v3750
      %v3815 = vsel %vm3783, 1.0, %v3751
      %v3816 = vsel %vm3784, 1.0, %v3752
      %v3817 = vsel %vm3785, 1.0, %v3753
      %v3818 = vsel %vm3786, 1.0, %v3754
      %v3819 = vsel %vm3787, 1.0, %v3755
      %v3820 = vsel %vm3788, 1.0, %v3756
      %v3821 = vsel %vm3789, 1.0, %v3757
      %v3822 = vsel %vm3790, 1.0, %v3758
      %v3823 = vsel %vm3791, 1.0, %v3759
      %v3824 = vsel %vm3792, 1.0, %v3760
      %v3825 = vmul.f32 %v3441, %v3793
      %v3826 = vmul.f32 %v3442, %v3794
      %v3827 = vmul.f32 %v3443, %v3795
      %v3828 = vmul.f32 %v3444, %v3796
      %v3829 = vmul.f32 %v3445, %v3797
      %v3830 = vmul.f32 %v3446, %v3798
      %v3831 = vmul.f32 %v3447, %v3799
      %v3832 = vmul.f32 %v3448, %v3800
      %v3833 = vmul.f32 %v3449, %v3801
      %v3834 = vmul.f32 %v3450, %v3802
      %v3835 = vmul.f32 %v3451, %v3803
      %v3836 = vmul.f32 %v3452, %v3804
      %v3837 = vmul.f32 %v3453, %v3805
      %v3838 = vmul.f32 %v3454, %v3806
      %v3839 = vmul.f32 %v3455, %v3807
      %v3840 = vmul.f32 %v3456, %v3808
      %v3841 = vmul.f32 %v3457, %v3809
      %v3842 = vmul.f32 %v3458, %v3810
      %v3843 = vmul.f32 %v3459, %v3811
      %v3844 = vmul.f32 %v3460, %v3812
      %v3845 = vmul.f32 %v3461, %v3813
      %v3846 = vmul.f32 %v3462, %v3814
      %v3847 = vmul.f32 %v3463, %v3815
      %v3848 = vmul.f32 %v3464, %v3816
      %v3849 = vmul.f32 %v3465, %v3817
      %v3850 = vmul.f32 %v3466, %v3818
      %v3851 = vmul.f32 %v3467, %v3819
      %v3852 = vmul.f32 %v3468, %v3820
      %v3853 = vmul.f32 %v3469, %v3821
      %v3854 = vmul.f32 %v3470, %v3822
      %v3855 = vmul.f32 %v3471, %v3823
      %v3856 = vmul.f32 %v3472, %v3824
      %v3857 = vadd.f32 %v3825, %v392
      %v3858 = vadd.f32 %v3826, %v393
      %v3859 = vadd.f32 %v3827, %v394
      %v3860 = vadd.f32 %v3828, %v395
      %v3861 = vadd.f32 %v3829, %v396
      %v3862 = vadd.f32 %v3830, %v397
      %v3863 = vadd.f32 %v3831, %v398
      %v3864 = vadd.f32 %v3832, %v399
      %v3865 = vadd.f32 %v3833, %v400
      %v3866 = vadd.f32 %v3834, %v401
      %v3867 = vadd.f32 %v3835, %v402
      %v3868 = vadd.f32 %v3836, %v403
      %v3869 = vadd.f32 %v3837, %v404
      %v3870 = vadd.f32 %v3838, %v405
      %v3871 = vadd.f32 %v3839, %v406
      %v3872 = vadd.f32 %v3840, %v407
      %v3873 = vadd.f32 %v3841, %v408
      %v3874 = vadd.f32 %v3842, %v409
      %v3875 = vadd.f32 %v3843, %v410
      %v3876 = vadd.f32 %v3844, %v411
      %v3877 = vadd.f32 %v3845, %v412
      %v3878 = vadd.f32 %v3846, %v413
      %v3879 = vadd.f32 %v3847, %v414
      %v3880 = vadd.f32 %v3848, %v415
      %v3881 = vadd.f32 %v3849, %v416
      %v3882 = vadd.f32 %v3850, %v417
      %v3883 = vadd.f32 %v3851, %v418
      %v3884 = vadd.f32 %v3852, %v419
      %v3885 = vadd.f32 %v3853, %v420
      %v3886 = vadd.f32 %v3854, %v421
      %v3887 = vadd.f32 %v3855, %v422
      %v3888 = vadd.f32 %v3856, %v423
      %v3889 = vpack.c.bf16 %v3858, %v3857
      %v3890 = vpack.c.bf16 %v3860, %v3859
      %v3891 = vpack.c.bf16 %v3862, %v3861
      %v3892 = vpack.c.bf16 %v3864, %v3863
      %v3893 = vpack.c.bf16 %v3866, %v3865
      %v3894 = vpack.c.bf16 %v3868, %v3867
      %v3895 = vpack.c.bf16 %v3870, %v3869
      %v3896 = vpack.c.bf16 %v3872, %v3871
      %v3897 = vpack.c.bf16 %v3874, %v3873
      %v3898 = vpack.c.bf16 %v3876, %v3875
      %v3899 = vpack.c.bf16 %v3878, %v3877
      %v3900 = vpack.c.bf16 %v3880, %v3879
      %v3901 = vpack.c.bf16 %v3882, %v3881
      %v3902 = vpack.c.bf16 %v3884, %v3883
      %v3903 = vpack.c.bf16 %v3886, %v3885
      %v3904 = vpack.c.bf16 %v3888, %v3887
      %v3921 = vunpack.c.l.b16 %v3889
      %v3922 = vunpack.c.h.b16 %v3889
      %v3923 = vunpack.c.l.b16 %v3890
      %v3924 = vunpack.c.h.b16 %v3890
      %v3925 = vunpack.c.l.b16 %v3891
      %v3926 = vunpack.c.h.b16 %v3891
      %v3927 = vunpack.c.l.b16 %v3892
      %v3928 = vunpack.c.h.b16 %v3892
      %v3929 = vunpack.c.l.b16 %v3893
      %v3930 = vunpack.c.h.b16 %v3893
      %v3931 = vunpack.c.l.b16 %v3894
      %v3932 = vunpack.c.h.b16 %v3894
      %v3933 = vunpack.c.l.b16 %v3895
      %v3934 = vunpack.c.h.b16 %v3895
      %v3935 = vunpack.c.l.b16 %v3896
      %v3936 = vunpack.c.h.b16 %v3896
      %v3937 = vunpack.c.l.b16 %v3897
      %v3938 = vunpack.c.h.b16 %v3897
      %v3939 = vunpack.c.l.b16 %v3898
      %v3940 = vunpack.c.h.b16 %v3898
      %v3941 = vunpack.c.l.b16 %v3899
      %v3942 = vunpack.c.h.b16 %v3899
      %v3943 = vunpack.c.l.b16 %v3900
      %v3944 = vunpack.c.h.b16 %v3900
      %v3945 = vunpack.c.l.b16 %v3901
      %v3946 = vunpack.c.h.b16 %v3901
      %v3947 = vunpack.c.l.b16 %v3902
      %v3948 = vunpack.c.h.b16 %v3902
      %v3949 = vunpack.c.l.b16 %v3903
      %v3950 = vunpack.c.h.b16 %v3903
      %v3951 = vunpack.c.l.b16 %v3904
      %v3952 = vunpack.c.h.b16 %v3904
      %v3953 = vpack.c.b16 %v3921, %v3921
      %v3954 = vpack.c.b16 %v3922, %v3922
      %v3955 = vpack.c.b16 %v3923, %v3923
      %v3956 = vpack.c.b16 %v3924, %v3924
      %v3957 = vpack.c.b16 %v3925, %v3925
      %v3958 = vpack.c.b16 %v3926, %v3926
      %v3959 = vpack.c.b16 %v3927, %v3927
      %v3960 = vpack.c.b16 %v3928, %v3928
      %v3961 = vpack.c.b16 %v3929, %v3929
      %v3962 = vpack.c.b16 %v3930, %v3930
      %v3963 = vpack.c.b16 %v3931, %v3931
      %v3964 = vpack.c.b16 %v3932, %v3932
      %v3965 = vpack.c.b16 %v3933, %v3933
      %v3966 = vpack.c.b16 %v3934, %v3934
      %v3967 = vpack.c.b16 %v3935, %v3935
      %v3968 = vpack.c.b16 %v3936, %v3936
      %v3969 = vpack.c.b16 %v3937, %v3937
      %v3970 = vpack.c.b16 %v3938, %v3938
      %v3971 = vpack.c.b16 %v3939, %v3939
      %v3972 = vpack.c.b16 %v3940, %v3940
      %v3973 = vpack.c.b16 %v3941, %v3941
      %v3974 = vpack.c.b16 %v3942, %v3942
      %v3975 = vpack.c.b16 %v3943, %v3943
      %v3976 = vpack.c.b16 %v3944, %v3944
      %v3977 = vpack.c.b16 %v3945, %v3945
      %v3978 = vpack.c.b16 %v3946, %v3946
      %v3979 = vpack.c.b16 %v3947, %v3947
      %v3980 = vpack.c.b16 %v3948, %v3948
      %v3981 = vpack.c.b16 %v3949, %v3949
      %v3982 = vpack.c.b16 %v3950, %v3950
      %v3983 = vpack.c.b16 %v3951, %v3951
      %v3984 = vpack.c.b16 %v3952, %v3952
      %4017 = vst.msk [vmem:[%s389] sm:$0xf] %vm444, %v3953
      %4018 = vst.msk [vmem:[%s389 + $0x4] sm:$0xf] %vm444, %v3954
      %4019 = vst.msk [vmem:[%s389 + $0x8] sm:$0xf] %vm444, %v3955
      %4020 = vst.msk [vmem:[%s389 + $0xc] sm:$0xf] %vm444, %v3956
      %4021 = vst.msk [vmem:[%s389 + $0x10] sm:$0xf] %vm444, %v3957
      %4022 = vst.msk [vmem:[%s389 + $0x14] sm:$0xf] %vm444, %v3958
      %4023 = vst.msk [vmem:[%s389 + $0x18] sm:$0xf] %vm444, %v3959
      %4024 = vst.msk [vmem:[%s389 + $0x1c] sm:$0xf] %vm444, %v3960
      %4025 = vst.msk [vmem:[%s389 + $0x20] sm:$0xf] %vm444, %v3961
      %4026 = vst.msk [vmem:[%s389 + $0x24] sm:$0xf] %vm444, %v3962
      %4027 = vst.msk [vmem:[%s389 + $0x28] sm:$0xf] %vm444, %v3963
      %4028 = vst.msk [vmem:[%s389 + $0x2c] sm:$0xf] %vm444, %v3964
      %4029 = vst.msk [vmem:[%s389 + $0x30] sm:$0xf] %vm444, %v3965
      %4030 = vst.msk [vmem:[%s389 + $0x34] sm:$0xf] %vm444, %v3966
      %4031 = vst.msk [vmem:[%s389 + $0x38] sm:$0xf] %vm444, %v3967
      %4032 = vst.msk [vmem:[%s389 + $0x3c] sm:$0xf] %vm444, %v3968
      %4033 = vst.msk [vmem:[%s389 + $0x40] sm:$0xf] %vm444, %v3969
      %4034 = vst.msk [vmem:[%s389 + $0x44] sm:$0xf] %vm444, %v3970
      %4035 = vst.msk [vmem:[%s389 + $0x48] sm:$0xf] %vm444, %v3971
      %4036 = vst.msk [vmem:[%s389 + $0x4c] sm:$0xf] %vm444, %v3972
      %4037 = vst.msk [vmem:[%s389 + $0x50] sm:$0xf] %vm444, %v3973
      %4038 = vst.msk [vmem:[%s389 + $0x54] sm:$0xf] %vm444, %v3974
      %4039 = vst.msk [vmem:[%s389 + $0x58] sm:$0xf] %vm444, %v3975
      %4040 = vst.msk [vmem:[%s389 + $0x5c] sm:$0xf] %vm444, %v3976
      %4041 = vst.msk [vmem:[%s389 + $0x60] sm:$0xf] %vm444, %v3977
      %4042 = vst.msk [vmem:[%s389 + $0x64] sm:$0xf] %vm444, %v3978
      %4043 = vst.msk [vmem:[%s389 + $0x68] sm:$0xf] %vm444, %v3979
      %4044 = vst.msk [vmem:[%s389 + $0x6c] sm:$0xf] %vm444, %v3980
      %4045 = vst.msk [vmem:[%s389 + $0x70] sm:$0xf] %vm444, %v3981
      %4046 = vst.msk [vmem:[%s389 + $0x74] sm:$0xf] %vm444, %v3982
      %4047 = vst.msk [vmem:[%s389 + $0x78] sm:$0xf] %vm444, %v3983
      %4048 = vst.msk [vmem:[%s389 + $0x7c] sm:$0xf] %vm444, %v3984
      %s4049 = smul.u32 16, %s23
      %p4050 = scmp.lt.s32.totalorder %s22, 1
      %s4051 = scalar_select %p4050, %s22, 1
      %p4052 = scmp.lt.s32.totalorder %s4049, 15
      %s4053 = scalar_select %p4052, %s4049, 15
      %s4054 = smul.addr %s4053, 2
      %s4055 = smul.addr %s4051, 32
      %s4056 = sadd.s32 %s4054, %s4055
      %s4057 = smul.addr %s4056, 4
      %s4058 = scalar_lea.vmem %s7, %s4057
      // Predicated region
      $region49: #{residual_block.1} parent=47 // pred_check
        %p4059 = pneg %p218
      $region50: #{residual_block.1} parent=47 // pred_check_branch
        %4061 = sbr.rel (%p4059) target = $region52
      $region51: #{residual_block.1} parent=47 // pred_region
        %s4062 = smul.u32 16, %s23
      $region52: #{residual_block.1} parent=47 // pred_fallthru
        _
    $region48: #{residual_block.1} parent=5 // pred_fallthru
      _
    %p4063 = scmp.le.s32.totalorder 2, %s13
    // Predicated region
    $region53: #{residual_block.1} parent=5 // pred_check
      %p4064 = pneg %p4063
    $region54: #{residual_block.1} parent=5 // pred_check_branch
      %4066 = sbr.rel (%p4064) target = $region56
    $region55: #{residual_block.1} parent=5 // pred_region
      %s4067 = ssub.s32 %s13, 2
      // Predicated region
      $region57: #{residual_block.1} parent=55 // pred_check
        %p4068 = pneg %p224
      $region58: #{residual_block.1} parent=55 // pred_check_branch
        %4070 = sbr.rel (%p4068) target = $region60
      $region59: #{residual_block.1} parent=55 // pred_region
        %s4071 = smul.u32 16, %s25
        %p4072 = scmp.lt.s32.totalorder %s24, 1
        %s4073 = scalar_select %p4072, %s24, 1
        %p4074 = scmp.lt.s32.totalorder %s4071, 15
        %s4075 = scalar_select %p4074, %s4071, 15
        %s4076 = smul.addr %s4075, 2
        %s4077 = smul.addr %s4073, 32
        %s4078 = sadd.s32 %s4076, %s4077
        %s4079 = smul.addr %s4078, 4
        %s4080 = scalar_lea.vmem %s7, %s4079
      $region60: #{residual_block.1} parent=55 // pred_fallthru
        _
    $region56: #{residual_block.1} parent=5 // pred_fallthru
      _
  $region6: #{residual_block.1} parent=0 // loop_footer
    %s17 = sadd.s32 1, %s13
  $region7: #{residual_block.1} parent=0 // loop_footer_branch
    %12 = sbr.rel target = $region3
  $region8: #{residual_block.1} parent=0 // loop_exit
    _

</llo_original>
